<compile_context>
chip_gen: v7x
topology: tpu7x:2x2x1
jax: 0.10.0
libtpu: 0.0.40
codegen_flags: <defaults>
</compile_context>

<pallas_src>
import math

import jax
import jax.numpy as jnp
from jax import lax
from jax.experimental import pallas as pl
from jax.experimental.pallas import tpu as pltpu

_LANE = 128


def _ceil_to(x, m):
    return ((x + m - 1) // m) * m


def _pick_group(n_items, rows_per_item, target_rows=512):
    """Largest divisor of n_items whose block reaches ~target_rows of work."""
    g = max(1, min(n_items, target_rows // max(int(rows_per_item), 1)))
    while n_items % g:
        g -= 1
    return g


def _compiler_params():
    return pltpu.CompilerParams(
        dimension_semantics=("parallel",),
        vmem_limit_bytes=32 * 1024 * 1024,
    )


# ----------------------------------------------------------------------------
# Shared Pallas kernel: "tap matmul" = conv-as-single-matmul + affine + ReLU
# ----------------------------------------------------------------------------

def _make_tap_matmul_kernel(offsets, m_out, group, with_residual):
    """Build a kernel computing, for each of `group` items in the block:

        out = relu( concat_k(x[off_k : off_k + m_out, :]) @ W  + shift [+ res] )

    x_ref     : (group, P_in,  Cin_p)   flattened, pre-padded input rows
    w_ref     : (len(offsets)*Cin_p, Cout_p)  bf16, BN scale pre-folded
    shift_ref : (1, Cout_p)  f32
    res_ref   : (group, m_out, Cout_p)  f32 (only if with_residual)
    o_ref     : (group, m_out, Cout_p)
    """
    offsets = tuple(int(o) for o in offsets)
    m_out = int(m_out)
    group = int(group)

    def kernel(x_ref, w_ref, shift_ref, *rest):
        if with_residual:
            res_ref, o_ref = rest
        else:
            (o_ref,) = rest
        w = w_ref[...]              # (taps*Cin_p, Cout_p) bf16
        shift = shift_ref[...]      # (1, Cout_p) f32
        for f in range(group):      # static; each iteration is independent
            lhs = jnp.concatenate(
                [x_ref[f, pl.ds(off, m_out), :] for off in offsets],
                axis=1,
            ).astype(jnp.bfloat16)                       # (m_out, taps*Cin_p)
            acc = jnp.dot(lhs, w, preferred_element_type=jnp.float32)
            y = acc + shift
            if with_residual:
                y = y + res_ref[f]
            o_ref[f] = jnp.maximum(y, 0.0).astype(o_ref.dtype)

    return kernel


# ----------------------------------------------------------------------------
# Wrappers (padding / flattening glue around the pallas_calls)
# ----------------------------------------------------------------------------

def spatial_conv_bn_relu(x, w, scale, shift, *, group=1, out_dtype=jnp.bfloat16):
    """Fused 3x3 spatial conv (stride 1, pad 1) + folded BN + ReLU.

    x : (N, T, H, W, Cx) with Cx >= Cin (channels beyond Cin must be zero).
    w : (3, 3, Cin, Cout); scale/shift: (Cout,) folded BN affine.
    Returns (N, T, H, W+2, Cout_p) in "row-padded width" layout: columns
    [0, W) valid, [W, W+2) junk, channels [Cout, Cout_p) are exactly zero.
    """
    n, t, h, wd, cx = x.shape
    cin, cout = w.shape[2], w.shape[3]
    cin_p = _ceil_to(max(cin, cx), _LANE)
    cout_p = _ceil_to(cout, _LANE)
    wp2 = wd + 2
    p_in = (h + 3) * wp2              # H padded (1, 2), W padded (1, 1)
    m_out = h * wp2
    nt = n * t

    xp = jnp.pad(x, ((0, 0), (0, 0), (1, 2), (1, 1), (0, cin_p - cx)))
    xp = xp.reshape(nt, p_in, cin_p)

    # Fold BN scale into the conv weights; pad to (9*Cin_p, Cout_p) bf16.
    wf = w.astype(jnp.float32) * scale.astype(jnp.float32)[None, None, None, :]
    wk = jnp.zeros((3, 3, cin_p, cout_p), jnp.float32)
    wk = wk.at[:, :, :cin, :cout].set(wf).reshape(9 * cin_p, cout_p)
    wk = wk.astype(jnp.bfloat16)
    shift_p = jnp.zeros((1, cout_p), jnp.float32).at[0, :cout].set(
        shift.astype(jnp.float32))

    offsets = tuple(kh * wp2 + kw for kh in range(3) for kw in range(3))
    g = group if (group >= 1 and nt % group == 0) else 1

    out = pl.pallas_call(
        _make_tap_matmul_kernel(offsets, m_out, g, with_residual=False),
        out_shape=jax.ShapeDtypeStruct((nt, m_out, cout_p), out_dtype),
        grid=(nt // g,),
        in_specs=[
            pl.BlockSpec((g, p_in, cin_p), lambda i: (i, 0, 0)),
            pl.BlockSpec((9 * cin_p, cout_p), lambda i: (0, 0)),
            pl.BlockSpec((1, cout_p), lambda i: (0, 0)),
        ],
        out_specs=pl.BlockSpec((g, m_out, cout_p), lambda i: (i, 0, 0)),
        compiler_params=_compiler_params(),
    )(xp, wk, shift_p)
    return out.reshape(n, t, h, wp2, cout_p)


def temporal_conv_bn_relu(x, w, scale, shift, *, residual=None,
                          out_dtype=jnp.float32):
    """Fused k=3 temporal conv (stride 1, pad 1) + folded BN (+res) + ReLU.

    x : (N, T, H, Wp2, Cx) in row-padded-width layout, Cx >= Cin (extra zero).
    w : (3, Cin, Cout); residual (optional): (N, T, H, Wp2, Cout_p) float32.
    Returns (N, T, H, Wp2, Cout_p) in the same layout.
    """
    n, t, h, wp2, cx = x.shape
    cin, cout = w.shape[1], w.shape[2]
    cin_p = _ceil_to(max(cin, cx), _LANE)
    cout_p = _ceil_to(cout, _LANE)
    hwp = h * wp2
    m_out = t * hwp
    p_in = (t + 2) * hwp

    if cx != cin_p:
        x = jnp.pad(x, ((0, 0),) * 4 + ((0, cin_p - cx),))
    # bf16 inputs need 16-row-aligned tap offsets; fall back to f32 otherwise.
    if x.dtype == jnp.bfloat16 and hwp % 16 != 0:
        x = x.astype(jnp.float32)
    xt = jnp.pad(x.reshape(n, t, hwp, cin_p), ((0, 0), (1, 1), (0, 0), (0, 0)))
    xt = xt.reshape(n, p_in, cin_p)

    wf = w.astype(jnp.float32) * scale.astype(jnp.float32)[None, None, :]
    wk = jnp.zeros((3, cin_p, cout_p), jnp.float32)
    wk = wk.at[:, :cin, :cout].set(wf).reshape(3 * cin_p, cout_p)
    wk = wk.astype(jnp.bfloat16)
    shift_p = jnp.zeros((1, cout_p), jnp.float32).at[0, :cout].set(
        shift.astype(jnp.float32))

    offsets = (0, hwp, 2 * hwp)
    in_specs = [
        pl.BlockSpec((1, p_in, cin_p), lambda i: (i, 0, 0)),
        pl.BlockSpec((3 * cin_p, cout_p), lambda i: (0, 0)),
        pl.BlockSpec((1, cout_p), lambda i: (0, 0)),
    ]
    args = [xt, wk, shift_p]
    with_res = residual is not None
    if with_res:
        res = residual.astype(jnp.float32).reshape(n, m_out, cout_p)
        in_specs.append(pl.BlockSpec((1, m_out, cout_p), lambda i: (i, 0, 0)))
        args.append(res)

    out = pl.pallas_call(
        _make_tap_matmul_kernel(offsets, m_out, 1, with_residual=with_res),
        out_shape=jax.ShapeDtypeStruct((n, m_out, cout_p), out_dtype),
        grid=(n,),
        in_specs=in_specs,
        out_specs=pl.BlockSpec((1, m_out, cout_p), lambda i: (i, 0, 0)),
        compiler_params=_compiler_params(),
    )(*args)
    return out.reshape(n, t, h, wp2, cout_p)


# ----------------------------------------------------------------------------
# Parameters (deterministic synthetic init) and BN folding
# ----------------------------------------------------------------------------

def _intermed_channels(cin, cout, k=3):
    return int(math.floor(k * k * k * cin * cout / (k * k * cin + k * cout)))


def init_params(key, inplanes, planes):
    cm1 = _intermed_channels(inplanes, planes)
    cm2 = _intermed_channels(planes, planes)
    ks = jax.random.split(key, 12)

    def w(k, shape, s=0.1):
        return s * jax.random.normal(k, shape, jnp.float32)

    def bn(k, c):
        k1, k2, k3, k4 = jax.random.split(k, 4)
        return dict(
            gamma=1.0 + 0.1 * jax.random.normal(k1, (c,), jnp.float32),
            beta=0.1 * jax.random.normal(k2, (c,), jnp.float32),
            mean=0.1 * jax.random.normal(k3, (c,), jnp.float32),
            var=1.0 + 0.1 * jax.random.uniform(k4, (c,), jnp.float32),
        )

    return {
        "c1s_w": w(ks[0], (3, 3, inplanes, cm1)), "c1s_b": w(ks[1], (cm1,)),
        "c1_bn": bn(ks[2], cm1),
        "c1t_w": w(ks[3], (3, cm1, planes)), "c1t_b": w(ks[4], (planes,)),
        "bn1": bn(ks[5], planes),
        "c2s_w": w(ks[6], (3, 3, planes, cm2)), "c2s_b": w(ks[7], (cm2,)),
        "c2_bn": bn(ks[8], cm2),
        "c2t_w": w(ks[9], (3, cm2, planes)), "c2t_b": w(ks[10], (planes,)),
        "bn2": bn(ks[11], planes),
    }


def _fold_bn(bn, conv_bias, eps=1e-5):
    scale = bn["gamma"] / jnp.sqrt(bn["var"] + eps)
    shift = (conv_bias - bn["mean"]) * scale + bn["beta"]
    return scale, shift


# ----------------------------------------------------------------------------
# Full block forward (Pallas) and pure-JAX reference
# ----------------------------------------------------------------------------

def basic_block_2plus1d(x_ncdhw, p):
    """x_ncdhw: (N, C, T, H, W) float32 -> (N, planes, T, H, W) float32."""
    x = jnp.transpose(x_ncdhw, (0, 2, 3, 4, 1)).astype(jnp.float32)  # NTHWC
    n, t, h, w, cin = x.shape
    planes = p["c1t_w"].shape[-1]
    planes_p = _ceil_to(planes, _LANE)
    assert cin == planes, "stride=1 / no-downsample path needs inplanes == planes"

    s1 = _fold_bn(p["c1_bn"], p["c1s_b"])   # conv1.spatial bias + conv1.bn
    t1 = _fold_bn(p["bn1"], p["c1t_b"])     # conv1.temporal bias + bn1
    s2 = _fold_bn(p["c2_bn"], p["c2s_b"])   # conv2.spatial bias + conv2.bn
    t2 = _fold_bn(p["bn2"], p["c2t_b"])     # conv2.temporal bias + bn2

    g = _pick_group(n * t, h * (w + 2))

    # conv1 (SpatioTemporalConv) + bn1 + relu
    y = spatial_conv_bn_relu(x, p["c1s_w"], *s1, group=g)
    y = temporal_conv_bn_relu(y, p["c1t_w"], *t1, out_dtype=jnp.float32)
    # conv2 (SpatioTemporalConv) + bn2 + identity + relu
    y = spatial_conv_bn_relu(y[:, :, :, :w, :], p["c2s_w"], *s2, group=g)
    identity = jnp.pad(x, ((0, 0), (0, 0), (0, 0), (0, 2), (0, planes_p - cin)))
    y = temporal_conv_bn_relu(y, p["c2t_w"], *t2, residual=identity,
                              out_dtype=jnp.float32)

    out = y[:, :, :, :w, :planes]
    return jnp.transpose(out, (0, 4, 1, 2, 3))  # back to NCDHW


def ref_forward(x_ncdhw, p, eps=1e-5):
    x = jnp.transpose(x_ncdhw, (0, 2, 3, 4, 1)).astype(jnp.float32)

    def conv3d(xx, w, b, pad):
        y = lax.conv_general_dilated(
            xx, w, window_strides=(1, 1, 1),
            padding=[(pad[0], pad[0]), (pad[1], pad[1]), (pad[2], pad[2])],
            dimension_numbers=("NDHWC", "DHWIO", "NDHWC"))
        return y + b

    def bn(xx, d):
        return (xx - d["mean"]) / jnp.sqrt(d["var"] + eps) * d["gamma"] + d["beta"]

    def st_conv(xx, sw, sb, bnd, tw, tb):
        y = conv3d(xx, sw[None], sb, (0, 1, 1))
        y = jnp.maximum(bn(y, bnd), 0.0)
        return conv3d(y, tw[:, None, None], tb, (1, 0, 0))

    identity = x
    out = st_conv(x, p["c1s_w"], p["c1s_b"], p["c1_bn"], p["c1t_w"], p["c1t_b"])
    out = jnp.maximum(bn(out, p["bn1"]), 0.0)
    out = st_conv(out, p["c2s_w"], p["c2s_b"], p["c2_bn"], p["c2t_w"], p["c2t_b"])
    out = jnp.maximum(bn(out, p["bn2"]) + identity, 0.0)
    return jnp.transpose(out, (0, 4, 1, 2, 3))


# ----------------------------------------------------------------------------

if __name__ == "__main__":
    key = jax.random.PRNGKey(0)
    k_x, k_p = jax.random.split(key)

    N, C, T, H, W = 2, 4, 4, 8, 8          # inplanes = planes = 4, stride = 1
    x = jax.random.normal(k_x, (N, C, T, H, W), jnp.float32)
    params = init_params(k_p, inplanes=C, planes=C)

    fwd = jax.jit(basic_block_2plus1d)
    out = jax.block_until_ready(fwd(x, params))
    ref = jax.block_until_ready(ref_forward(x, params))

    assert out.shape == (N, C, T, H, W), out.shape
    max_err = float(jnp.max(jnp.abs(out - ref)))
    # bf16 MXU operands with f32 accumulation vs. the all-f32 XLA reference.
    assert max_err < 5e-2, f"mismatch vs reference: max abs err {max_err}"

    print("KERNEL_OK")
</pallas_src>

<mosaic_0001>
module attributes {stable_mosaic.version = 11 : i64} {
  func.func @kernel(%arg0: i32, %arg1: memref<4x110x128xf32, #tpu.memory_space<vmem>>, %arg2: memref<1152x128xbf16, #tpu.memory_space<vmem>>, %arg3: memref<1x128xf32, #tpu.memory_space<vmem>>, %arg4: memref<4x80x128xbf16, #tpu.memory_space<vmem>>) attributes {dimension_semantics = [#tpu.dimension_semantics<parallel>], iteration_bounds = array<i64: 2>, scalar_prefetch = 0 : i64, scratch_operands = 0 : i64, tpu.core_type = #tpu.core_type<tc>, window_params = [{transform_indices = @transform_0, window_bounds = array<i64: 4, 110, 128>}, {pipeline_mode = #tpu.pipeline_mode<synchronous>, transform_indices = @transform_1, window_bounds = array<i64: 1152, 128>}, {pipeline_mode = #tpu.pipeline_mode<synchronous>, transform_indices = @transform_2, window_bounds = array<i64: 1, 128>}, {transform_indices = @transform_3, window_bounds = array<i64: 4, 80, 128>}]} {
    %c0 = arith.constant 0 : index
    %c0_0 = arith.constant 0 : index
    %0 = vector.load %arg2[%c0, %c0_0] : memref<1152x128xbf16, #tpu.memory_space<vmem>>, vector<1152x128xbf16>
    %c0_1 = arith.constant 0 : index
    %c0_2 = arith.constant 0 : index
    %1 = vector.load %arg3[%c0_1, %c0_2] : memref<1x128xf32, #tpu.memory_space<vmem>>, vector<1x128xf32>
    %c0_3 = arith.constant 0 : index
    %c0_4 = arith.constant 0 : index
    %c0_5 = arith.constant 0 : index
    %2 = vector.load %arg1[%c0_3, %c0_4, %c0_5] : memref<4x110x128xf32, #tpu.memory_space<vmem>>, vector<1x80x128xf32>
    %3 = vector.shape_cast %2 : vector<1x80x128xf32> to vector<80x128xf32>
    %c0_6 = arith.constant 0 : index
    %c1 = arith.constant 1 : index
    %c0_7 = arith.constant 0 : index
    %4 = vector.load %arg1[%c0_6, %c1, %c0_7] : memref<4x110x128xf32, #tpu.memory_space<vmem>>, vector<1x80x128xf32>
    %5 = vector.shape_cast %4 : vector<1x80x128xf32> to vector<80x128xf32>
    %c0_8 = arith.constant 0 : index
    %c2 = arith.constant 2 : index
    %c0_9 = arith.constant 0 : index
    %6 = vector.load %arg1[%c0_8, %c2, %c0_9] : memref<4x110x128xf32, #tpu.memory_space<vmem>>, vector<1x80x128xf32>
    %7 = vector.shape_cast %6 : vector<1x80x128xf32> to vector<80x128xf32>
    %c0_10 = arith.constant 0 : index
    %c10 = arith.constant 10 : index
    %c0_11 = arith.constant 0 : index
    %8 = vector.load %arg1[%c0_10, %c10, %c0_11] : memref<4x110x128xf32, #tpu.memory_space<vmem>>, vector<1x80x128xf32>
    %9 = vector.shape_cast %8 : vector<1x80x128xf32> to vector<80x128xf32>
    %c0_12 = arith.constant 0 : index
    %c11 = arith.constant 11 : index
    %c0_13 = arith.constant 0 : index
    %10 = vector.load %arg1[%c0_12, %c11, %c0_13] : memref<4x110x128xf32, #tpu.memory_space<vmem>>, vector<1x80x128xf32>
    %11 = vector.shape_cast %10 : vector<1x80x128xf32> to vector<80x128xf32>
    %c0_14 = arith.constant 0 : index
    %c12 = arith.constant 12 : index
    %c0_15 = arith.constant 0 : index
    %12 = vector.load %arg1[%c0_14, %c12, %c0_15] : memref<4x110x128xf32, #tpu.memory_space<vmem>>, vector<1x80x128xf32>
    %13 = vector.shape_cast %12 : vector<1x80x128xf32> to vector<80x128xf32>
    %c0_16 = arith.constant 0 : index
    %c20 = arith.constant 20 : index
    %c0_17 = arith.constant 0 : index
    %14 = vector.load %arg1[%c0_16, %c20, %c0_17] : memref<4x110x128xf32, #tpu.memory_space<vmem>>, vector<1x80x128xf32>
    %15 = vector.shape_cast %14 : vector<1x80x128xf32> to vector<80x128xf32>
    %c0_18 = arith.constant 0 : index
    %c21 = arith.constant 21 : index
    %c0_19 = arith.constant 0 : index
    %16 = vector.load %arg1[%c0_18, %c21, %c0_19] : memref<4x110x128xf32, #tpu.memory_space<vmem>>, vector<1x80x128xf32>
    %17 = vector.shape_cast %16 : vector<1x80x128xf32> to vector<80x128xf32>
    %c0_20 = arith.constant 0 : index
    %c22 = arith.constant 22 : index
    %c0_21 = arith.constant 0 : index
    %18 = vector.load %arg1[%c0_20, %c22, %c0_21] : memref<4x110x128xf32, #tpu.memory_space<vmem>>, vector<1x80x128xf32>
    %19 = vector.shape_cast %18 : vector<1x80x128xf32> to vector<80x128xf32>
    %20 = tpu.concatenate %3, %5, %7, %9, %11, %13, %15, %17, %19 in 1 : vector<80x128xf32>, vector<80x128xf32>, vector<80x128xf32>, vector<80x128xf32>, vector<80x128xf32>, vector<80x128xf32>, vector<80x128xf32>, vector<80x128xf32>, vector<80x128xf32> -> vector<80x1152xf32>
    %21 = arith.truncf %20 : vector<80x1152xf32> to vector<80x1152xbf16>
    %cst = arith.constant dense<0.000000e+00> : vector<80x128xf32>
    %22 = tpu.matmul %21, %0, %cst {dimension_numbers = #tpu.dot_dimension_numbers<[1], [0], [0], [1], [0, 0, 1, 1], [], []>} : vector<80x1152xbf16>, vector<1152x128xbf16>, vector<80x128xf32> -> vector<80x128xf32>
    %23 = vector.broadcast %1 : vector<1x128xf32> to vector<80x128xf32>
    %24 = arith.addf %22, %23 : vector<80x128xf32>
    %cst_22 = arith.constant 0.000000e+00 : f32
    %25 = vector.broadcast %cst_22 : f32 to vector<80x128xf32>
    %26 = arith.maximumf %24, %25 : vector<80x128xf32>
    %27 = arith.truncf %26 : vector<80x128xf32> to vector<80x128xbf16>
    %c0_23 = arith.constant 0 : index
    %c0_24 = arith.constant 0 : index
    %c0_25 = arith.constant 0 : index
    %28 = vector.load %arg4[%c0_23, %c0_24, %c0_25] : memref<4x80x128xbf16, #tpu.memory_space<vmem>>, vector<1x80x128xbf16>
    %29 = vector.shape_cast %28 : vector<1x80x128xbf16> to vector<80x128xbf16>
    %30 = vector.shape_cast %27 : vector<80x128xbf16> to vector<1x80x128xbf16>
    tpu.vector_store %arg4[%c0_23, %c0_24, %c0_25], %30 {strides = array<i32>} : memref<4x80x128xbf16, #tpu.memory_space<vmem>>, vector<1x80x128xbf16>,
    %c1_26 = arith.constant 1 : index
    %c0_27 = arith.constant 0 : index
    %c0_28 = arith.constant 0 : index
    %31 = vector.load %arg1[%c1_26, %c0_27, %c0_28] : memref<4x110x128xf32, #tpu.memory_space<vmem>>, vector<1x80x128xf32>
    %32 = vector.shape_cast %31 : vector<1x80x128xf32> to vector<80x128xf32>
    %c1_29 = arith.constant 1 : index
    %c1_30 = arith.constant 1 : index
    %c0_31 = arith.constant 0 : index
    %33 = vector.load %arg1[%c1_29, %c1_30, %c0_31] : memref<4x110x128xf32, #tpu.memory_space<vmem>>, vector<1x80x128xf32>
    %34 = vector.shape_cast %33 : vector<1x80x128xf32> to vector<80x128xf32>
    %c1_32 = arith.constant 1 : index
    %c2_33 = arith.constant 2 : index
    %c0_34 = arith.constant 0 : index
    %35 = vector.load %arg1[%c1_32, %c2_33, %c0_34] : memref<4x110x128xf32, #tpu.memory_space<vmem>>, vector<1x80x128xf32>
    %36 = vector.shape_cast %35 : vector<1x80x128xf32> to vector<80x128xf32>
    %c1_35 = arith.constant 1 : index
    %c10_36 = arith.constant 10 : index
    %c0_37 = arith.constant 0 : index
    %37 = vector.load %arg1[%c1_35, %c10_36, %c0_37] : memref<4x110x128xf32, #tpu.memory_space<vmem>>, vector<1x80x128xf32>
    %38 = vector.shape_cast %37 : vector<1x80x128xf32> to vector<80x128xf32>
    %c1_38 = arith.constant 1 : index
    %c11_39 = arith.constant 11 : index
    %c0_40 = arith.constant 0 : index
    %39 = vector.load %arg1[%c1_38, %c11_39, %c0_40] : memref<4x110x128xf32, #tpu.memory_space<vmem>>, vector<1x80x128xf32>
    %40 = vector.shape_cast %39 : vector<1x80x128xf32> to vector<80x128xf32>
    %c1_41 = arith.constant 1 : index
    %c12_42 = arith.constant 12 : index
    %c0_43 = arith.constant 0 : index
    %41 = vector.load %arg1[%c1_41, %c12_42, %c0_43] : memref<4x110x128xf32, #tpu.memory_space<vmem>>, vector<1x80x128xf32>
    %42 = vector.shape_cast %41 : vector<1x80x128xf32> to vector<80x128xf32>
    %c1_44 = arith.constant 1 : index
    %c20_45 = arith.constant 20 : index
    %c0_46 = arith.constant 0 : index
    %43 = vector.load %arg1[%c1_44, %c20_45, %c0_46] : memref<4x110x128xf32, #tpu.memory_space<vmem>>, vector<1x80x128xf32>
    %44 = vector.shape_cast %43 : vector<1x80x128xf32> to vector<80x128xf32>
    %c1_47 = arith.constant 1 : index
    %c21_48 = arith.constant 21 : index
    %c0_49 = arith.constant 0 : index
    %45 = vector.load %arg1[%c1_47, %c21_48, %c0_49] : memref<4x110x128xf32, #tpu.memory_space<vmem>>, vector<1x80x128xf32>
    %46 = vector.shape_cast %45 : vector<1x80x128xf32> to vector<80x128xf32>
    %c1_50 = arith.constant 1 : index
    %c22_51 = arith.constant 22 : index
    %c0_52 = arith.constant 0 : index
    %47 = vector.load %arg1[%c1_50, %c22_51, %c0_52] : memref<4x110x128xf32, #tpu.memory_space<vmem>>, vector<1x80x128xf32>
    %48 = vector.shape_cast %47 : vector<1x80x128xf32> to vector<80x128xf32>
    %49 = tpu.concatenate %32, %34, %36, %38, %40, %42, %44, %46, %48 in 1 : vector<80x128xf32>, vector<80x128xf32>, vector<80x128xf32>, vector<80x128xf32>, vector<80x128xf32>, vector<80x128xf32>, vector<80x128xf32>, vector<80x128xf32>, vector<80x128xf32> -> vector<80x1152xf32>
    %50 = arith.truncf %49 : vector<80x1152xf32> to vector<80x1152xbf16>
    %cst_53 = arith.constant dense<0.000000e+00> : vector<80x128xf32>
    %51 = tpu.matmul %50, %0, %cst_53 {dimension_numbers = #tpu.dot_dimension_numbers<[1], [0], [0], [1], [0, 0, 1, 1], [], []>} : vector<80x1152xbf16>, vector<1152x128xbf16>, vector<80x128xf32> -> vector<80x128xf32>
    %52 = vector.broadcast %1 : vector<1x128xf32> to vector<80x128xf32>
    %53 = arith.addf %51, %52 : vector<80x128xf32>
    %cst_54 = arith.constant 0.000000e+00 : f32
    %54 = vector.broadcast %cst_54 : f32 to vector<80x128xf32>
    %55 = arith.maximumf %53, %54 : vector<80x128xf32>
    %56 = arith.truncf %55 : vector<80x128xf32> to vector<80x128xbf16>
    %c1_55 = arith.constant 1 : index
    %c0_56 = arith.constant 0 : index
    %c0_57 = arith.constant 0 : index
    %57 = vector.load %arg4[%c1_55, %c0_56, %c0_57] : memref<4x80x128xbf16, #tpu.memory_space<vmem>>, vector<1x80x128xbf16>
    %58 = vector.shape_cast %57 : vector<1x80x128xbf16> to vector<80x128xbf16>
    %59 = vector.shape_cast %56 : vector<80x128xbf16> to vector<1x80x128xbf16>
    tpu.vector_store %arg4[%c1_55, %c0_56, %c0_57], %59 {strides = array<i32>} : memref<4x80x128xbf16, #tpu.memory_space<vmem>>, vector<1x80x128xbf16>,
    %c2_58 = arith.constant 2 : index
    %c0_59 = arith.constant 0 : index
    %c0_60 = arith.constant 0 : index
    %60 = vector.load %arg1[%c2_58, %c0_59, %c0_60] : memref<4x110x128xf32, #tpu.memory_space<vmem>>, vector<1x80x128xf32>
    %61 = vector.shape_cast %60 : vector<1x80x128xf32> to vector<80x128xf32>
    %c2_61 = arith.constant 2 : index
    %c1_62 = arith.constant 1 : index
    %c0_63 = arith.constant 0 : index
    %62 = vector.load %arg1[%c2_61, %c1_62, %c0_63] : memref<4x110x128xf32, #tpu.memory_space<vmem>>, vector<1x80x128xf32>
    %63 = vector.shape_cast %62 : vector<1x80x128xf32> to vector<80x128xf32>
    %c2_64 = arith.constant 2 : index
    %c2_65 = arith.constant 2 : index
    %c0_66 = arith.constant 0 : index
    %64 = vector.load %arg1[%c2_64, %c2_65, %c0_66] : memref<4x110x128xf32, #tpu.memory_space<vmem>>, vector<1x80x128xf32>
    %65 = vector.shape_cast %64 : vector<1x80x128xf32> to vector<80x128xf32>
    %c2_67 = arith.constant 2 : index
    %c10_68 = arith.constant 10 : index
    %c0_69 = arith.constant 0 : index
    %66 = vector.load %arg1[%c2_67, %c10_68, %c0_69] : memref<4x110x128xf32, #tpu.memory_space<vmem>>, vector<1x80x128xf32>
    %67 = vector.shape_cast %66 : vector<1x80x128xf32> to vector<80x128xf32>
    %c2_70 = arith.constant 2 : index
    %c11_71 = arith.constant 11 : index
    %c0_72 = arith.constant 0 : index
    %68 = vector.load %arg1[%c2_70, %c11_71, %c0_72] : memref<4x110x128xf32, #tpu.memory_space<vmem>>, vector<1x80x128xf32>
    %69 = vector.shape_cast %68 : vector<1x80x128xf32> to vector<80x128xf32>
    %c2_73 = arith.constant 2 : index
    %c12_74 = arith.constant 12 : index
    %c0_75 = arith.constant 0 : index
    %70 = vector.load %arg1[%c2_73, %c12_74, %c0_75] : memref<4x110x128xf32, #tpu.memory_space<vmem>>, vector<1x80x128xf32>
    %71 = vector.shape_cast %70 : vector<1x80x128xf32> to vector<80x128xf32>
    %c2_76 = arith.constant 2 : index
    %c20_77 = arith.constant 20 : index
    %c0_78 = arith.constant 0 : index
    %72 = vector.load %arg1[%c2_76, %c20_77, %c0_78] : memref<4x110x128xf32, #tpu.memory_space<vmem>>, vector<1x80x128xf32>
    %73 = vector.shape_cast %72 : vector<1x80x128xf32> to vector<80x128xf32>
    %c2_79 = arith.constant 2 : index
    %c21_80 = arith.constant 21 : index
    %c0_81 = arith.constant 0 : index
    %74 = vector.load %arg1[%c2_79, %c21_80, %c0_81] : memref<4x110x128xf32, #tpu.memory_space<vmem>>, vector<1x80x128xf32>
    %75 = vector.shape_cast %74 : vector<1x80x128xf32> to vector<80x128xf32>
    %c2_82 = arith.constant 2 : index
    %c22_83 = arith.constant 22 : index
    %c0_84 = arith.constant 0 : index
    %76 = vector.load %arg1[%c2_82, %c22_83, %c0_84] : memref<4x110x128xf32, #tpu.memory_space<vmem>>, vector<1x80x128xf32>
    %77 = vector.shape_cast %76 : vector<1x80x128xf32> to vector<80x128xf32>
    %78 = tpu.concatenate %61, %63, %65, %67, %69, %71, %73, %75, %77 in 1 : vector<80x128xf32>, vector<80x128xf32>, vector<80x128xf32>, vector<80x128xf32>, vector<80x128xf32>, vector<80x128xf32>, vector<80x128xf32>, vector<80x128xf32>, vector<80x128xf32> -> vector<80x1152xf32>
    %79 = arith.truncf %78 : vector<80x1152xf32> to vector<80x1152xbf16>
    %cst_85 = arith.constant dense<0.000000e+00> : vector<80x128xf32>
    %80 = tpu.matmul %79, %0, %cst_85 {dimension_numbers = #tpu.dot_dimension_numbers<[1], [0], [0], [1], [0, 0, 1, 1], [], []>} : vector<80x1152xbf16>, vector<1152x128xbf16>, vector<80x128xf32> -> vector<80x128xf32>
    %81 = vector.broadcast %1 : vector<1x128xf32> to vector<80x128xf32>
    %82 = arith.addf %80, %81 : vector<80x128xf32>
    %cst_86 = arith.constant 0.000000e+00 : f32
    %83 = vector.broadcast %cst_86 : f32 to vector<80x128xf32>
    %84 = arith.maximumf %82, %83 : vector<80x128xf32>
    %85 = arith.truncf %84 : vector<80x128xf32> to vector<80x128xbf16>
    %c2_87 = arith.constant 2 : index
    %c0_88 = arith.constant 0 : index
    %c0_89 = arith.constant 0 : index
    %86 = vector.load %arg4[%c2_87, %c0_88, %c0_89] : memref<4x80x128xbf16, #tpu.memory_space<vmem>>, vector<1x80x128xbf16>
    %87 = vector.shape_cast %86 : vector<1x80x128xbf16> to vector<80x128xbf16>
    %88 = vector.shape_cast %85 : vector<80x128xbf16> to vector<1x80x128xbf16>
    tpu.vector_store %arg4[%c2_87, %c0_88, %c0_89], %88 {strides = array<i32>} : memref<4x80x128xbf16, #tpu.memory_space<vmem>>, vector<1x80x128xbf16>,
    %c3 = arith.constant 3 : index
    %c0_90 = arith.constant 0 : index
    %c0_91 = arith.constant 0 : index
    %89 = vector.load %arg1[%c3, %c0_90, %c0_91] : memref<4x110x128xf32, #tpu.memory_space<vmem>>, vector<1x80x128xf32>
    %90 = vector.shape_cast %89 : vector<1x80x128xf32> to vector<80x128xf32>
    %c3_92 = arith.constant 3 : index
    %c1_93 = arith.constant 1 : index
    %c0_94 = arith.constant 0 : index
    %91 = vector.load %arg1[%c3_92, %c1_93, %c0_94] : memref<4x110x128xf32, #tpu.memory_space<vmem>>, vector<1x80x128xf32>
    %92 = vector.shape_cast %91 : vector<1x80x128xf32> to vector<80x128xf32>
    %c3_95 = arith.constant 3 : index
    %c2_96 = arith.constant 2 : index
    %c0_97 = arith.constant 0 : index
    %93 = vector.load %arg1[%c3_95, %c2_96, %c0_97] : memref<4x110x128xf32, #tpu.memory_space<vmem>>, vector<1x80x128xf32>
    %94 = vector.shape_cast %93 : vector<1x80x128xf32> to vector<80x128xf32>
    %c3_98 = arith.constant 3 : index
    %c10_99 = arith.constant 10 : index
    %c0_100 = arith.constant 0 : index
    %95 = vector.load %arg1[%c3_98, %c10_99, %c0_100] : memref<4x110x128xf32, #tpu.memory_space<vmem>>, vector<1x80x128xf32>
    %96 = vector.shape_cast %95 : vector<1x80x128xf32> to vector<80x128xf32>
    %c3_101 = arith.constant 3 : index
    %c11_102 = arith.constant 11 : index
    %c0_103 = arith.constant 0 : index
    %97 = vector.load %arg1[%c3_101, %c11_102, %c0_103] : memref<4x110x128xf32, #tpu.memory_space<vmem>>, vector<1x80x128xf32>
    %98 = vector.shape_cast %97 : vector<1x80x128xf32> to vector<80x128xf32>
    %c3_104 = arith.constant 3 : index
    %c12_105 = arith.constant 12 : index
    %c0_106 = arith.constant 0 : index
    %99 = vector.load %arg1[%c3_104, %c12_105, %c0_106] : memref<4x110x128xf32, #tpu.memory_space<vmem>>, vector<1x80x128xf32>
    %100 = vector.shape_cast %99 : vector<1x80x128xf32> to vector<80x128xf32>
    %c3_107 = arith.constant 3 : index
    %c20_108 = arith.constant 20 : index
    %c0_109 = arith.constant 0 : index
    %101 = vector.load %arg1[%c3_107, %c20_108, %c0_109] : memref<4x110x128xf32, #tpu.memory_space<vmem>>, vector<1x80x128xf32>
    %102 = vector.shape_cast %101 : vector<1x80x128xf32> to vector<80x128xf32>
    %c3_110 = arith.constant 3 : index
    %c21_111 = arith.constant 21 : index
    %c0_112 = arith.constant 0 : index
    %103 = vector.load %arg1[%c3_110, %c21_111, %c0_112] : memref<4x110x128xf32, #tpu.memory_space<vmem>>, vector<1x80x128xf32>
    %104 = vector.shape_cast %103 : vector<1x80x128xf32> to vector<80x128xf32>
    %c3_113 = arith.constant 3 : index
    %c22_114 = arith.constant 22 : index
    %c0_115 = arith.constant 0 : index
    %105 = vector.load %arg1[%c3_113, %c22_114, %c0_115] : memref<4x110x128xf32, #tpu.memory_space<vmem>>, vector<1x80x128xf32>
    %106 = vector.shape_cast %105 : vector<1x80x128xf32> to vector<80x128xf32>
    %107 = tpu.concatenate %90, %92, %94, %96, %98, %100, %102, %104, %106 in 1 : vector<80x128xf32>, vector<80x128xf32>, vector<80x128xf32>, vector<80x128xf32>, vector<80x128xf32>, vector<80x128xf32>, vector<80x128xf32>, vector<80x128xf32>, vector<80x128xf32> -> vector<80x1152xf32>
    %108 = arith.truncf %107 : vector<80x1152xf32> to vector<80x1152xbf16>
    %cst_116 = arith.constant dense<0.000000e+00> : vector<80x128xf32>
    %109 = tpu.matmul %108, %0, %cst_116 {dimension_numbers = #tpu.dot_dimension_numbers<[1], [0], [0], [1], [0, 0, 1, 1], [], []>} : vector<80x1152xbf16>, vector<1152x128xbf16>, vector<80x128xf32> -> vector<80x128xf32>
    %110 = vector.broadcast %1 : vector<1x128xf32> to vector<80x128xf32>
    %111 = arith.addf %109, %110 : vector<80x128xf32>
    %cst_117 = arith.constant 0.000000e+00 : f32
    %112 = vector.broadcast %cst_117 : f32 to vector<80x128xf32>
    %113 = arith.maximumf %111, %112 : vector<80x128xf32>
    %114 = arith.truncf %113 : vector<80x128xf32> to vector<80x128xbf16>
    %c3_118 = arith.constant 3 : index
    %c0_119 = arith.constant 0 : index
    %c0_120 = arith.constant 0 : index
    %115 = vector.load %arg4[%c3_118, %c0_119, %c0_120] : memref<4x80x128xbf16, #tpu.memory_space<vmem>>, vector<1x80x128xbf16>
    %116 = vector.shape_cast %115 : vector<1x80x128xbf16> to vector<80x128xbf16>
    %117 = vector.shape_cast %114 : vector<80x128xbf16> to vector<1x80x128xbf16>
    tpu.vector_store %arg4[%c3_118, %c0_119, %c0_120], %117 {strides = array<i32>} : memref<4x80x128xbf16, #tpu.memory_space<vmem>>, vector<1x80x128xbf16>,
    return
  }
  func.func @transform_0(%arg0: i32) -> (i32, i32, i32) {
    %c0_i32 = arith.constant 0 : i32
    %c0_i32_0 = arith.constant 0 : i32
    %c0_i32_1 = arith.constant 0 : i32
    return %arg0, %c0_i32, %c0_i32_0 : i32, i32, i32
  }
  func.func @transform_1(%arg0: i32) -> (i32, i32) {
    %c0_i32 = arith.constant 0 : i32
    %c0_i32_0 = arith.constant 0 : i32
    %c0_i32_1 = arith.constant 0 : i32
    return %c0_i32, %c0_i32_0 : i32, i32
  }
  func.func @transform_2(%arg0: i32) -> (i32, i32) {
    %c0_i32 = arith.constant 0 : i32
    %c0_i32_0 = arith.constant 0 : i32
    %c0_i32_1 = arith.constant 0 : i32
    return %c0_i32, %c0_i32_0 : i32, i32
  }
  func.func @transform_3(%arg0: i32) -> (i32, i32, i32) {
    %c0_i32 = arith.constant 0 : i32
    %c0_i32_0 = arith.constant 0 : i32
    %c0_i32_1 = arith.constant 0 : i32
    return %arg0, %c0_i32, %c0_i32_0 : i32, i32, i32
  }
}

module attributes {stable_mosaic.version = 11 : i64} {
  func.func @kernel(%arg0: i32, %arg1: memref<1x480x128xbf16, #tpu.memory_space<vmem>>, %arg2: memref<384x128xbf16, #tpu.memory_space<vmem>>, %arg3: memref<1x128xf32, #tpu.memory_space<vmem>>, %arg4: memref<1x320x128xf32, #tpu.memory_space<vmem>>) attributes {dimension_semantics = [#tpu.dimension_semantics<parallel>], iteration_bounds = array<i64: 2>, scalar_prefetch = 0 : i64, scratch_operands = 0 : i64, tpu.core_type = #tpu.core_type<tc>, window_params = [{transform_indices = @transform_0, window_bounds = array<i64: 1, 480, 128>}, {pipeline_mode = #tpu.pipeline_mode<synchronous>, transform_indices = @transform_1, window_bounds = array<i64: 384, 128>}, {pipeline_mode = #tpu.pipeline_mode<synchronous>, transform_indices = @transform_2, window_bounds = array<i64: 1, 128>}, {transform_indices = @transform_3, window_bounds = array<i64: 1, 320, 128>}]} {
    %c0 = arith.constant 0 : index
    %c0_0 = arith.constant 0 : index
    %0 = vector.load %arg2[%c0, %c0_0] : memref<384x128xbf16, #tpu.memory_space<vmem>>, vector<384x128xbf16>
    %c0_1 = arith.constant 0 : index
    %c0_2 = arith.constant 0 : index
    %1 = vector.load %arg3[%c0_1, %c0_2] : memref<1x128xf32, #tpu.memory_space<vmem>>, vector<1x128xf32>
    %c0_3 = arith.constant 0 : index
    %c0_4 = arith.constant 0 : index
    %c0_5 = arith.constant 0 : index
    %2 = vector.load %arg1[%c0_3, %c0_4, %c0_5] : memref<1x480x128xbf16, #tpu.memory_space<vmem>>, vector<1x320x128xbf16>
    %3 = vector.shape_cast %2 : vector<1x320x128xbf16> to vector<320x128xbf16>
    %c0_6 = arith.constant 0 : index
    %c80 = arith.constant 80 : index
    %c0_7 = arith.constant 0 : index
    %4 = vector.load %arg1[%c0_6, %c80, %c0_7] : memref<1x480x128xbf16, #tpu.memory_space<vmem>>, vector<1x320x128xbf16>
    %5 = vector.shape_cast %4 : vector<1x320x128xbf16> to vector<320x128xbf16>
    %c0_8 = arith.constant 0 : index
    %c160 = arith.constant 160 : index
    %c0_9 = arith.constant 0 : index
    %6 = vector.load %arg1[%c0_8, %c160, %c0_9] : memref<1x480x128xbf16, #tpu.memory_space<vmem>>, vector<1x320x128xbf16>
    %7 = vector.shape_cast %6 : vector<1x320x128xbf16> to vector<320x128xbf16>
    %8 = tpu.concatenate %3, %5, %7 in 1 : vector<320x128xbf16>, vector<320x128xbf16>, vector<320x128xbf16> -> vector<320x384xbf16>
    %cst = arith.constant dense<0.000000e+00> : vector<320x128xf32>
    %9 = tpu.matmul %8, %0, %cst {dimension_numbers = #tpu.dot_dimension_numbers<[1], [0], [0], [1], [0, 0, 1, 1], [], []>} : vector<320x384xbf16>, vector<384x128xbf16>, vector<320x128xf32> -> vector<320x128xf32>
    %10 = vector.broadcast %1 : vector<1x128xf32> to vector<320x128xf32>
    %11 = arith.addf %9, %10 : vector<320x128xf32>
    %cst_10 = arith.constant 0.000000e+00 : f32
    %12 = vector.broadcast %cst_10 : f32 to vector<320x128xf32>
    %13 = arith.maximumf %11, %12 : vector<320x128xf32>
    %c0_11 = arith.constant 0 : index
    %c0_12 = arith.constant 0 : index
    %c0_13 = arith.constant 0 : index
    %14 = vector.load %arg4[%c0_11, %c0_12, %c0_13] : memref<1x320x128xf32, #tpu.memory_space<vmem>>, vector<1x320x128xf32>
    %15 = vector.shape_cast %14 : vector<1x320x128xf32> to vector<320x128xf32>
    %16 = vector.shape_cast %13 : vector<320x128xf32> to vector<1x320x128xf32>
    tpu.vector_store %arg4[%c0_11, %c0_12, %c0_13], %16 {strides = array<i32>} : memref<1x320x128xf32, #tpu.memory_space<vmem>>, vector<1x320x128xf32>,
    return
  }
  func.func @transform_0(%arg0: i32) -> (i32, i32, i32) {
    %c0_i32 = arith.constant 0 : i32
    %c0_i32_0 = arith.constant 0 : i32
    %c0_i32_1 = arith.constant 0 : i32
    return %arg0, %c0_i32, %c0_i32_0 : i32, i32, i32
  }
  func.func @transform_1(%arg0: i32) -> (i32, i32) {
    %c0_i32 = arith.constant 0 : i32
    %c0_i32_0 = arith.constant 0 : i32
    %c0_i32_1 = arith.constant 0 : i32
    return %c0_i32, %c0_i32_0 : i32, i32
  }
  func.func @transform_2(%arg0: i32) -> (i32, i32) {
    %c0_i32 = arith.constant 0 : i32
    %c0_i32_0 = arith.constant 0 : i32
    %c0_i32_1 = arith.constant 0 : i32
    return %c0_i32, %c0_i32_0 : i32, i32
  }
  func.func @transform_3(%arg0: i32) -> (i32, i32, i32) {
    %c0_i32 = arith.constant 0 : i32
    %c0_i32_0 = arith.constant 0 : i32
    %c0_i32_1 = arith.constant 0 : i32
    return %arg0, %c0_i32, %c0_i32_0 : i32, i32, i32
  }
}

module attributes {stable_mosaic.version = 11 : i64} {
  func.func @kernel(%arg0: i32, %arg1: memref<1x480x128xbf16, #tpu.memory_space<vmem>>, %arg2: memref<384x128xbf16, #tpu.memory_space<vmem>>, %arg3: memref<1x128xf32, #tpu.memory_space<vmem>>, %arg4: memref<1x320x128xf32, #tpu.memory_space<vmem>>, %arg5: memref<1x320x128xf32, #tpu.memory_space<vmem>>) attributes {dimension_semantics = [#tpu.dimension_semantics<parallel>], iteration_bounds = array<i64: 2>, scalar_prefetch = 0 : i64, scratch_operands = 0 : i64, tpu.core_type = #tpu.core_type<tc>, window_params = [{transform_indices = @transform_0, window_bounds = array<i64: 1, 480, 128>}, {pipeline_mode = #tpu.pipeline_mode<synchronous>, transform_indices = @transform_1, window_bounds = array<i64: 384, 128>}, {pipeline_mode = #tpu.pipeline_mode<synchronous>, transform_indices = @transform_2, window_bounds = array<i64: 1, 128>}, {transform_indices = @transform_3, window_bounds = array<i64: 1, 320, 128>}, {transform_indices = @transform_4, window_bounds = array<i64: 1, 320, 128>}]} {
    %c0 = arith.constant 0 : index
    %c0_0 = arith.constant 0 : index
    %0 = vector.load %arg2[%c0, %c0_0] : memref<384x128xbf16, #tpu.memory_space<vmem>>, vector<384x128xbf16>
    %c0_1 = arith.constant 0 : index
    %c0_2 = arith.constant 0 : index
    %1 = vector.load %arg3[%c0_1, %c0_2] : memref<1x128xf32, #tpu.memory_space<vmem>>, vector<1x128xf32>
    %c0_3 = arith.constant 0 : index
    %c0_4 = arith.constant 0 : index
    %c0_5 = arith.constant 0 : index
    %2 = vector.load %arg1[%c0_3, %c0_4, %c0_5] : memref<1x480x128xbf16, #tpu.memory_space<vmem>>, vector<1x320x128xbf16>
    %3 = vector.shape_cast %2 : vector<1x320x128xbf16> to vector<320x128xbf16>
    %c0_6 = arith.constant 0 : index
    %c80 = arith.constant 80 : index
    %c0_7 = arith.constant 0 : index
    %4 = vector.load %arg1[%c0_6, %c80, %c0_7] : memref<1x480x128xbf16, #tpu.memory_space<vmem>>, vector<1x320x128xbf16>
    %5 = vector.shape_cast %4 : vector<1x320x128xbf16> to vector<320x128xbf16>
    %c0_8 = arith.constant 0 : index
    %c160 = arith.constant 160 : index
    %c0_9 = arith.constant 0 : index
    %6 = vector.load %arg1[%c0_8, %c160, %c0_9] : memref<1x480x128xbf16, #tpu.memory_space<vmem>>, vector<1x320x128xbf16>
    %7 = vector.shape_cast %6 : vector<1x320x128xbf16> to vector<320x128xbf16>
    %8 = tpu.concatenate %3, %5, %7 in 1 : vector<320x128xbf16>, vector<320x128xbf16>, vector<320x128xbf16> -> vector<320x384xbf16>
    %cst = arith.constant dense<0.000000e+00> : vector<320x128xf32>
    %9 = tpu.matmul %8, %0, %cst {dimension_numbers = #tpu.dot_dimension_numbers<[1], [0], [0], [1], [0, 0, 1, 1], [], []>} : vector<320x384xbf16>, vector<384x128xbf16>, vector<320x128xf32> -> vector<320x128xf32>
    %10 = vector.broadcast %1 : vector<1x128xf32> to vector<320x128xf32>
    %11 = arith.addf %9, %10 : vector<320x128xf32>
    %c0_10 = arith.constant 0 : index
    %c0_11 = arith.constant 0 : index
    %c0_12 = arith.constant 0 : index
    %12 = vector.load %arg4[%c0_10, %c0_11, %c0_12] : memref<1x320x128xf32, #tpu.memory_space<vmem>>, vector<1x320x128xf32>
    %13 = vector.shape_cast %12 : vector<1x320x128xf32> to vector<320x128xf32>
    %14 = arith.addf %11, %13 : vector<320x128xf32>
    %cst_13 = arith.constant 0.000000e+00 : f32
    %15 = vector.broadcast %cst_13 : f32 to vector<320x128xf32>
    %16 = arith.maximumf %14, %15 : vector<320x128xf32>
    %c0_14 = arith.constant 0 : index
    %c0_15 = arith.constant 0 : index
    %c0_16 = arith.constant 0 : index
    %17 = vector.load %arg5[%c0_14, %c0_15, %c0_16] : memref<1x320x128xf32, #tpu.memory_space<vmem>>, vector<1x320x128xf32>
    %18 = vector.shape_cast %17 : vector<1x320x128xf32> to vector<320x128xf32>
    %19 = vector.shape_cast %16 : vector<320x128xf32> to vector<1x320x128xf32>
    tpu.vector_store %arg5[%c0_14, %c0_15, %c0_16], %19 {strides = array<i32>} : memref<1x320x128xf32, #tpu.memory_space<vmem>>, vector<1x320x128xf32>,
    return
  }
  func.func @transform_0(%arg0: i32) -> (i32, i32, i32) {
    %c0_i32 = arith.constant 0 : i32
    %c0_i32_0 = arith.constant 0 : i32
    %c0_i32_1 = arith.constant 0 : i32
    return %arg0, %c0_i32, %c0_i32_0 : i32, i32, i32
  }
  func.func @transform_1(%arg0: i32) -> (i32, i32) {
    %c0_i32 = arith.constant 0 : i32
    %c0_i32_0 = arith.constant 0 : i32
    %c0_i32_1 = arith.constant 0 : i32
    return %c0_i32, %c0_i32_0 : i32, i32
  }
  func.func @transform_2(%arg0: i32) -> (i32, i32) {
    %c0_i32 = arith.constant 0 : i32
    %c0_i32_0 = arith.constant 0 : i32
    %c0_i32_1 = arith.constant 0 : i32
    return %c0_i32, %c0_i32_0 : i32, i32
  }
  func.func @transform_3(%arg0: i32) -> (i32, i32, i32) {
    %c0_i32 = arith.constant 0 : i32
    %c0_i32_0 = arith.constant 0 : i32
    %c0_i32_1 = arith.constant 0 : i32
    return %arg0, %c0_i32, %c0_i32_0 : i32, i32, i32
  }
  func.func @transform_4(%arg0: i32) -> (i32, i32, i32) {
    %c0_i32 = arith.constant 0 : i32
    %c0_i32_0 = arith.constant 0 : i32
    %c0_i32_1 = arith.constant 0 : i32
    return %arg0, %c0_i32, %c0_i32_0 : i32, i32, i32
  }
}

</mosaic_0001>

<llo_original>
// kernel: basic_block_2plus1d.5
$region0: #{basic_block_2plus1d.5}
  #allocation0 [shape = 'u32[]', space=smem, size = 0x4, offset = 0x4, fixed_abs, tag = 'smem constant byte address 0x4 - core index']
  #allocation1 [shape = 'u32[144,128]{1,0:T(1,128)}', space=vmem, size = 0x12000, scoped, tag = 'internal scratch']
  %s0 = inlined_call_operand.vmem [shape: bf16[2,480,128], index: 0, kind: input, shape index: {}]
  %s1 = inlined_call_operand.vmem [shape: bf16[384,128], index: 1, kind: input, shape index: {}]
  %s2 = inlined_call_operand.vmem [shape: f32[1,128], index: 2, kind: input, shape index: {}]
  %s3 = inlined_call_operand.vmem [shape: f32[2,320,128], index: 3, kind: output, shape index: {}]
  %s4 = sld [smem:[#allocation0]]
  $region45: #{basic_block_2plus1d.5} parent=0
    _
  %s6 = ssub.s32 1, %s4
  %s7 = scalar_select 0, %s6, %s4
  loop: start=0, step=1, limit=4
  $region2: #{basic_block_2plus1d.5} parent=0 // loop_pre_header
    _
  $region3: #{basic_block_2plus1d.5} parent=0 // loop_header
    %s9 = sphi 0, %s13
    %p10 = scmp.ge.s32.totalorder %s9, 4
    %s19 = sphi 0, %s21
    %s22 = sphi 0, %s19
    %s23 = sphi 0, %s22
    %s39 = sphi 0, %s23
    %s43 = sphi 0, %s43
    %s45 = sphi 0, %s43
    %s46 = sphi 0, %s45
    %s60 = sphi 0, %s46
    %s64 = sphi 0, %s64
    %s66 = sphi 0, %s64
    %s67 = sphi 0, %s66
    %s81 = sphi 0, %s67
    %s87 = sphi 0, %s89
    %s90 = sphi 0, %s87
    %s91 = sphi 0, %s90
    %s107 = sphi 0, %s91
  $region4: #{basic_block_2plus1d.5} parent=0 // loop_header_branch
    %12 = sbr.rel (%p10) target = $region8
  $region5: #{basic_block_2plus1d.5} parent=0 // loop_body
    %s14 = ssub.s32 %s9, 1
    %s15 = ssub.s32 %s9, 2
    %s16 = sadd.s32 %s9, 1
    %s17 = ssub.s32 %s9, %s16
    %p18 = scmp.eq.s32.totalorder %s17, 0
    %s20 = sadd.s32 %s19, 1
    %s21 = scalar_select %p18, %s19, %s20
    %p24 = pneg %p18
    %p25 = scmp.eq.s32.totalorder %s9, 1
    %p26 = por %p24, %p25
    %p27 = scmp.ne.s32.totalorder %s19, %s22
    %p28 = scmp.eq.s32.totalorder %s9, 0
    %p29 = por %p27, %p28
    %p30 = scmp.ne.s32.totalorder %s19, %s22
    %p31 = scmp.eq.s32.totalorder %s14, 1
    %p32 = por %p30, %p31
    %p33 = scmp.ne.s32.totalorder %s22, %s23
    %p34 = scmp.eq.s32.totalorder %s14, 0
    %p35 = por %p33, %p34
    %p36 = scmp.ne.s32.totalorder %s22, %s23
    %p37 = scmp.eq.s32.totalorder %s15, 1
    %p38 = por %p36, %p37
    %p40 = scmp.ne.s32.totalorder %s23, %s39
    %p41 = scmp.eq.s32.totalorder %s15, 0
    %p42 = por %p40, %p41
    %s44 = sadd.s32 %s43, 1
    %p47 = scmp.eq.s32.totalorder %s9, 1
    %p48 = scmp.ne.s32.totalorder %s43, %s45
    %p49 = scmp.eq.s32.totalorder %s9, 0
    %p50 = por %p48, %p49
    %p51 = scmp.ne.s32.totalorder %s43, %s45
    %p52 = scmp.eq.s32.totalorder %s14, 1
    %p53 = por %p51, %p52
    %p54 = scmp.ne.s32.totalorder %s45, %s46
    %p55 = scmp.eq.s32.totalorder %s14, 0
    %p56 = por %p54, %p55
    %p57 = scmp.ne.s32.totalorder %s45, %s46
    %p58 = scmp.eq.s32.totalorder %s15, 1
    %p59 = por %p57, %p58
    %p61 = scmp.ne.s32.totalorder %s46, %s60
    %p62 = scmp.eq.s32.totalorder %s15, 0
    %p63 = por %p61, %p62
    %s65 = sadd.s32 %s64, 1
    %p68 = scmp.eq.s32.totalorder %s9, 1
    %p69 = scmp.ne.s32.totalorder %s64, %s66
    %p70 = scmp.eq.s32.totalorder %s9, 0
    %p71 = por %p69, %p70
    %p72 = scmp.ne.s32.totalorder %s64, %s66
    %p73 = scmp.eq.s32.totalorder %s14, 1
    %p74 = por %p72, %p73
    %p75 = scmp.ne.s32.totalorder %s66, %s67
    %p76 = scmp.eq.s32.totalorder %s14, 0
    %p77 = por %p75, %p76
    %p78 = scmp.ne.s32.totalorder %s66, %s67
    %p79 = scmp.eq.s32.totalorder %s15, 1
    %p80 = por %p78, %p79
    %p82 = scmp.ne.s32.totalorder %s67, %s81
    %p83 = scmp.eq.s32.totalorder %s15, 0
    %p84 = por %p82, %p83
    %s85 = ssub.s32 %s9, %s16
    %p86 = scmp.eq.s32.totalorder %s85, 0
    %s88 = sadd.s32 %s87, 1
    %s89 = scalar_select %p86, %s87, %s88
    %p92 = pneg %p86
    %p93 = scmp.eq.s32.totalorder %s9, 1
    %p94 = por %p92, %p93
    %p95 = scmp.ne.s32.totalorder %s87, %s90
    %p96 = scmp.eq.s32.totalorder %s9, 0
    %p97 = por %p95, %p96
    %p98 = scmp.ne.s32.totalorder %s87, %s90
    %p99 = scmp.eq.s32.totalorder %s14, 1
    %p100 = por %p98, %p99
    %p101 = scmp.ne.s32.totalorder %s90, %s91
    %p102 = scmp.eq.s32.totalorder %s14, 0
    %p103 = por %p101, %p102
    %p104 = scmp.ne.s32.totalorder %s90, %s91
    %p105 = scmp.eq.s32.totalorder %s15, 1
    %p106 = por %p104, %p105
    %p108 = scmp.ne.s32.totalorder %s91, %s107
    %p109 = scmp.eq.s32.totalorder %s15, 0
    %p110 = por %p108, %p109
    %p111 = scmp.le.s32.totalorder 1, %s9
    %p112 = scmp.lt.s32.totalorder %s9, 3
    %p113 = pnand %p111, %p112
    %p114 = pneg %p113
    // Predicated region
    $region9: #{basic_block_2plus1d.5} parent=5 // pred_check
      _
    $region10: #{basic_block_2plus1d.5} parent=5 // pred_check_branch
      %116 = sbr.rel (%p113) target = $region12
    $region11: #{basic_block_2plus1d.5} parent=5 // pred_region
      %s117 = ssub.s32 %s9, 1
      // Predicated region
      $region13: #{basic_block_2plus1d.5} parent=11 // pred_check
        %p118 = pneg %p56
      $region14: #{basic_block_2plus1d.5} parent=11 // pred_check_branch
        %120 = sbr.rel (%p118) target = $region16
      $region15: #{basic_block_2plus1d.5} parent=11 // pred_region
        _
      $region16: #{basic_block_2plus1d.5} parent=11 // pred_fallthru
        _
      // Predicated region
      $region17: #{basic_block_2plus1d.5} parent=11 // pred_check
        %p121 = pneg %p77
      $region18: #{basic_block_2plus1d.5} parent=11 // pred_check_branch
        %123 = sbr.rel (%p121) target = $region20
      $region19: #{basic_block_2plus1d.5} parent=11 // pred_region
        _
      $region20: #{basic_block_2plus1d.5} parent=11 // pred_fallthru
        _
    $region12: #{basic_block_2plus1d.5} parent=5 // pred_fallthru
      _
    %p124 = scmp.lt.s32.totalorder %s9, 2
    // Predicated region
    $region21: #{basic_block_2plus1d.5} parent=5 // pred_check
      %p125 = pneg %p124
    $region22: #{basic_block_2plus1d.5} parent=5 // pred_check_branch
      %127 = sbr.rel (%p125) target = $region24
    $region23: #{basic_block_2plus1d.5} parent=5 // pred_region
      // Predicated region
      $region25: #{basic_block_2plus1d.5} parent=23 // pred_check
        %p128 = pneg %p29
      $region26: #{basic_block_2plus1d.5} parent=23 // pred_check_branch
        %130 = sbr.rel (%p128) target = $region28
      $region27: #{basic_block_2plus1d.5} parent=23 // pred_region
        %p131 = scmp.lt.s32.totalorder %s9, 1
        %s132 = scalar_select %p131, %s9, 1
        %s133 = smul.addr %s132, 60
        %s134 = smul.addr %s133, 4
        %s135 = scalar_lea.vmem %s0, %s134
      $region28: #{basic_block_2plus1d.5} parent=23 // pred_fallthru
        _
    $region24: #{basic_block_2plus1d.5} parent=5 // pred_fallthru
      _
    %p136 = scmp.le.s32.totalorder 1, %s9
    %p137 = scmp.lt.s32.totalorder %s9, 3
    %p138 = pnand %p136, %p137
    %p139 = pneg %p138
    // Predicated region
    $region29: #{basic_block_2plus1d.5} parent=5 // pred_check
      _
    $region30: #{basic_block_2plus1d.5} parent=5 // pred_check_branch
      %141 = sbr.rel (%p138) target = $region32
    $region31: #{basic_block_2plus1d.5} parent=5 // pred_region
      %s142 = ssub.s32 %s9, 1
      %p143 = scmp.lt.s32.totalorder %s14, 1
      %s144 = scalar_select %p143, %s14, 1
      %s145 = smul.addr %s144, 60
      %s146 = smul.addr %s145, 4
      %s147 = scalar_lea.vmem %s0, %s146
      %p148 = pneg %p35
      %p149 = pneg %p32
      %p150 = pneg %p56
      %p151 = pneg %p53
      %p152 = pneg %p77
      %p153 = pneg %p74
      %p154 = pneg %p103
      %p155 = pneg %p100
      %p156 = scmp.lt.s32.totalorder %s14, 1
      %s157 = scalar_select %p156, %s14, 1
      %s158 = smul.addr %s157, 40
      %s159 = smul.addr %s158, 8
      %s160 = scalar_lea.vmem %s3, %s159
      %p161 = scmp.lt.s32.totalorder %s14, 1
      %s162 = scalar_select %p161, %s14, 1
      %s163 = smul.addr %s162, 60
      %s164 = smul.addr %s163, 4
      %s165 = scalar_lea.vmem %s0, %s164
      %p166 = scmp.lt.s32.totalorder %s14, 1
      %s167 = scalar_select %p166, %s14, 1
      %s168 = smul.addr %s167, 40
      %s169 = smul.addr %s168, 8
      %s170 = scalar_lea.vmem %s3, %s169
      %v172 = vld [vmem:[%s1] sm:$0xf]
      %v173 = vld [vmem:[%s1 + $0x4] sm:$0xf]
      %v174 = vld [vmem:[%s1 + $0x8] sm:$0xf]
      %v175 = vld [vmem:[%s1 + $0xc] sm:$0xf]
      %v176 = vld [vmem:[%s1 + $0x10] sm:$0xf]
      %v177 = vld [vmem:[%s1 + $0x14] sm:$0xf]
      %v178 = vld [vmem:[%s1 + $0x18] sm:$0xf]
      %v179 = vld [vmem:[%s1 + $0x1c] sm:$0xf]
      %v180 = vld [vmem:[%s1 + $0x20] sm:$0xf]
      %v181 = vld [vmem:[%s1 + $0x24] sm:$0xf]
      %v182 = vld [vmem:[%s1 + $0x28] sm:$0xf]
      %v183 = vld [vmem:[%s1 + $0x2c] sm:$0xf]
      %v184 = vld [vmem:[%s1 + $0x30] sm:$0xf]
      %v185 = vld [vmem:[%s1 + $0x34] sm:$0xf]
      %v186 = vld [vmem:[%s1 + $0x38] sm:$0xf]
      %v187 = vld [vmem:[%s1 + $0x3c] sm:$0xf]
      %v188 = vld [vmem:[%s1 + $0x40] sm:$0xf]
      %v189 = vld [vmem:[%s1 + $0x44] sm:$0xf]
      %v190 = vld [vmem:[%s1 + $0x48] sm:$0xf]
      %v191 = vld [vmem:[%s1 + $0x4c] sm:$0xf]
      %v192 = vld [vmem:[%s1 + $0x50] sm:$0xf]
      %v193 = vld [vmem:[%s1 + $0x54] sm:$0xf]
      %v194 = vld [vmem:[%s1 + $0x58] sm:$0xf]
      %v195 = vld [vmem:[%s1 + $0x5c] sm:$0xf]
      %v196 = vld [vmem:[%s1 + $0x60] sm:$0xf]
      %v197 = vld [vmem:[%s1 + $0x64] sm:$0xf]
      %v198 = vld [vmem:[%s1 + $0x68] sm:$0xf]
      %v199 = vld [vmem:[%s1 + $0x6c] sm:$0xf]
      %v200 = vld [vmem:[%s1 + $0x70] sm:$0xf]
      %v201 = vld [vmem:[%s1 + $0x74] sm:$0xf]
      %v202 = vld [vmem:[%s1 + $0x78] sm:$0xf]
      %v203 = vld [vmem:[%s1 + $0x7c] sm:$0xf]
      %v204 = vld [vmem:[%s1 + $0x80] sm:$0xf]
      %v205 = vld [vmem:[%s1 + $0x84] sm:$0xf]
      %v206 = vld [vmem:[%s1 + $0x88] sm:$0xf]
      %v207 = vld [vmem:[%s1 + $0x8c] sm:$0xf]
      %v208 = vld [vmem:[%s1 + $0x90] sm:$0xf]
      %v209 = vld [vmem:[%s1 + $0x94] sm:$0xf]
      %v210 = vld [vmem:[%s1 + $0x98] sm:$0xf]
      %v211 = vld [vmem:[%s1 + $0x9c] sm:$0xf]
      %v212 = vld [vmem:[%s1 + $0xa0] sm:$0xf]
      %v213 = vld [vmem:[%s1 + $0xa4] sm:$0xf]
      %v214 = vld [vmem:[%s1 + $0xa8] sm:$0xf]
      %v215 = vld [vmem:[%s1 + $0xac] sm:$0xf]
      %v216 = vld [vmem:[%s1 + $0xb0] sm:$0xf]
      %v217 = vld [vmem:[%s1 + $0xb4] sm:$0xf]
      %v218 = vld [vmem:[%s1 + $0xb8] sm:$0xf]
      %v219 = vld [vmem:[%s1 + $0xbc] sm:$0xf]
      %v220 = vld [vmem:[%s2] sm:$0x1]
      %v221 = vld [vmem:[%s165] sm:$0xf]
      %v222 = vld [vmem:[%s165 + $0x4] sm:$0xf]
      %v223 = vld [vmem:[%s165 + $0x8] sm:$0xf]
      %v224 = vld [vmem:[%s165 + $0xc] sm:$0xf]
      %v225 = vld [vmem:[%s165 + $0x10] sm:$0xf]
      %v226 = vld [vmem:[%s165 + $0x14] sm:$0xf]
      %v227 = vld [vmem:[%s165 + $0x18] sm:$0xf]
      %v228 = vld [vmem:[%s165 + $0x1c] sm:$0xf]
      %v229 = vld [vmem:[%s165 + $0x20] sm:$0xf]
      %v230 = vld [vmem:[%s165 + $0x24] sm:$0xf]
      %v231 = vld [vmem:[%s165 + $0x28] sm:$0xf]
      %v232 = vld [vmem:[%s165 + $0x2c] sm:$0xf]
      %v233 = vld [vmem:[%s165 + $0x30] sm:$0xf]
      %v234 = vld [vmem:[%s165 + $0x34] sm:$0xf]
      %v235 = vld [vmem:[%s165 + $0x38] sm:$0xf]
      %v236 = vld [vmem:[%s165 + $0x3c] sm:$0xf]
      %v237 = vld [vmem:[%s165 + $0x40] sm:$0xf]
      %v238 = vld [vmem:[%s165 + $0x44] sm:$0xf]
      %v239 = vld [vmem:[%s165 + $0x48] sm:$0xf]
      %v240 = vld [vmem:[%s165 + $0x4c] sm:$0xf]
      %v241 = vld [vmem:[%s165 + $0x50] sm:$0xf]
      %v242 = vld [vmem:[%s165 + $0x54] sm:$0xf]
      %v243 = vld [vmem:[%s165 + $0x58] sm:$0xf]
      %v244 = vld [vmem:[%s165 + $0x5c] sm:$0xf]
      %v245 = vld [vmem:[%s165 + $0x60] sm:$0xf]
      %v246 = vld [vmem:[%s165 + $0x64] sm:$0xf]
      %v247 = vld [vmem:[%s165 + $0x68] sm:$0xf]
      %v248 = vld [vmem:[%s165 + $0x6c] sm:$0xf]
      %v249 = vld [vmem:[%s165 + $0x70] sm:$0xf]
      %v250 = vld [vmem:[%s165 + $0x74] sm:$0xf]
      %v251 = vld [vmem:[%s165 + $0x78] sm:$0xf]
      %v252 = vld [vmem:[%s165 + $0x7c] sm:$0xf]
      %v253 = vld [vmem:[%s165 + $0x80] sm:$0xf]
      %v254 = vld [vmem:[%s165 + $0x84] sm:$0xf]
      %v255 = vld [vmem:[%s165 + $0x88] sm:$0xf]
      %v256 = vld [vmem:[%s165 + $0x8c] sm:$0xf]
      %v257 = vld [vmem:[%s165 + $0x90] sm:$0xf]
      %v258 = vld [vmem:[%s165 + $0x94] sm:$0xf]
      %v259 = vld [vmem:[%s165 + $0x98] sm:$0xf]
      %v260 = vld [vmem:[%s165 + $0x9c] sm:$0xf]
      %v261 = vld [vmem:[%s165 + $0xa0] sm:$0xf]
      %v262 = vld [vmem:[%s165 + $0xa4] sm:$0xf]
      %v263 = vld [vmem:[%s165 + $0xa8] sm:$0xf]
      %v264 = vld [vmem:[%s165 + $0xac] sm:$0xf]
      %v265 = vld [vmem:[%s165 + $0xb0] sm:$0xf]
      %v266 = vld [vmem:[%s165 + $0xb4] sm:$0xf]
      %v267 = vld [vmem:[%s165 + $0xb8] sm:$0xf]
      %v268 = vld [vmem:[%s165 + $0xbc] sm:$0xf]
      %v269 = vld [vmem:[%s165 + $0xc0] sm:$0xf]
      %v270 = vld [vmem:[%s165 + $0xc4] sm:$0xf]
      %v271 = vld [vmem:[%s165 + $0x50] sm:$0xf]
      %v272 = vld [vmem:[%s165 + $0x54] sm:$0xf]
      %v273 = vld [vmem:[%s165 + $0x58] sm:$0xf]
      %v274 = vld [vmem:[%s165 + $0x5c] sm:$0xf]
      %v275 = vld [vmem:[%s165 + $0x60] sm:$0xf]
      %v276 = vld [vmem:[%s165 + $0x64] sm:$0xf]
      %v277 = vld [vmem:[%s165 + $0x68] sm:$0xf]
      %v278 = vld [vmem:[%s165 + $0x6c] sm:$0xf]
      %v279 = vld [vmem:[%s165 + $0x70] sm:$0xf]
      %v280 = vld [vmem:[%s165 + $0x74] sm:$0xf]
      %v281 = vld [vmem:[%s165 + $0x78] sm:$0xf]
      %v282 = vld [vmem:[%s165 + $0x7c] sm:$0xf]
      %v283 = vld [vmem:[%s165 + $0x80] sm:$0xf]
      %v284 = vld [vmem:[%s165 + $0x84] sm:$0xf]
      %v285 = vld [vmem:[%s165 + $0x88] sm:$0xf]
      %v286 = vld [vmem:[%s165 + $0x8c] sm:$0xf]
      %v287 = vld [vmem:[%s165 + $0x90] sm:$0xf]
      %v288 = vld [vmem:[%s165 + $0x94] sm:$0xf]
      %v289 = vld [vmem:[%s165 + $0x98] sm:$0xf]
      %v290 = vld [vmem:[%s165 + $0x9c] sm:$0xf]
      %v291 = vld [vmem:[%s165 + $0xa0] sm:$0xf]
      %v292 = vld [vmem:[%s165 + $0xa4] sm:$0xf]
      %v293 = vld [vmem:[%s165 + $0xa8] sm:$0xf]
      %v294 = vld [vmem:[%s165 + $0xac] sm:$0xf]
      %v295 = vld [vmem:[%s165 + $0xb0] sm:$0xf]
      %v296 = vld [vmem:[%s165 + $0xb4] sm:$0xf]
      %v297 = vld [vmem:[%s165 + $0xb8] sm:$0xf]
      %v298 = vld [vmem:[%s165 + $0xbc] sm:$0xf]
      %v299 = vld [vmem:[%s165 + $0xc0] sm:$0xf]
      %v300 = vld [vmem:[%s165 + $0xc4] sm:$0xf]
      %v301 = vld [vmem:[%s165 + $0xc8] sm:$0xf]
      %v302 = vld [vmem:[%s165 + $0xcc] sm:$0xf]
      %v303 = vld [vmem:[%s165 + $0xd0] sm:$0xf]
      %v304 = vld [vmem:[%s165 + $0xd4] sm:$0xf]
      %v305 = vld [vmem:[%s165 + $0xd8] sm:$0xf]
      %v306 = vld [vmem:[%s165 + $0xdc] sm:$0xf]
      %v307 = vld [vmem:[%s165 + $0xe0] sm:$0xf]
      %v308 = vld [vmem:[%s165 + $0xe4] sm:$0xf]
      %v309 = vld [vmem:[%s165 + $0xe8] sm:$0xf]
      %v310 = vld [vmem:[%s165 + $0xec] sm:$0xf]
      %v351 = vunpack.c.l.b16 %v221
      %v352 = vunpack.c.l.b16 %v222
      %v353 = vunpack.c.l.b16 %v223
      %v354 = vunpack.c.l.b16 %v224
      %v355 = vunpack.c.l.b16 %v225
      %v356 = vunpack.c.l.b16 %v226
      %v357 = vunpack.c.l.b16 %v227
      %v358 = vunpack.c.l.b16 %v228
      %v359 = vunpack.c.l.b16 %v229
      %v360 = vunpack.c.l.b16 %v230
      %v361 = vunpack.c.l.b16 %v231
      %v362 = vunpack.c.l.b16 %v232
      %v363 = vunpack.c.l.b16 %v233
      %v364 = vunpack.c.l.b16 %v234
      %v365 = vunpack.c.l.b16 %v235
      %v366 = vunpack.c.l.b16 %v236
      %v367 = vunpack.c.l.b16 %v237
      %v368 = vunpack.c.l.b16 %v238
      %v369 = vunpack.c.l.b16 %v239
      %v370 = vunpack.c.l.b16 %v240
      %v371 = vunpack.c.l.b16 %v241
      %v372 = vunpack.c.l.b16 %v242
      %v373 = vunpack.c.l.b16 %v243
      %v374 = vunpack.c.l.b16 %v244
      %v375 = vunpack.c.l.b16 %v245
      %v376 = vunpack.c.l.b16 %v246
      %v377 = vunpack.c.l.b16 %v247
      %v378 = vunpack.c.l.b16 %v248
      %v379 = vunpack.c.l.b16 %v249
      %v380 = vunpack.c.l.b16 %v250
      %v381 = vunpack.c.l.b16 %v251
      %v382 = vunpack.c.l.b16 %v252
      %v383 = vunpack.c.l.b16 %v253
      %v384 = vunpack.c.l.b16 %v254
      %v385 = vunpack.c.l.b16 %v255
      %v386 = vunpack.c.l.b16 %v256
      %v387 = vunpack.c.l.b16 %v257
      %v388 = vunpack.c.l.b16 %v258
      %v389 = vunpack.c.l.b16 %v259
      %v390 = vunpack.c.l.b16 %v260
      %v391 = vpack.c.b16 %v352, %v351
      %v392 = vpack.c.b16 %v354, %v353
      %v393 = vpack.c.b16 %v356, %v355
      %v394 = vpack.c.b16 %v358, %v357
      %v395 = vpack.c.b16 %v360, %v359
      %v396 = vpack.c.b16 %v362, %v361
      %v397 = vpack.c.b16 %v364, %v363
      %v398 = vpack.c.b16 %v366, %v365
      %v399 = vpack.c.b16 %v368, %v367
      %v400 = vpack.c.b16 %v370, %v369
      %v401 = vpack.c.b16 %v372, %v371
      %v402 = vpack.c.b16 %v374, %v373
      %v403 = vpack.c.b16 %v376, %v375
      %v404 = vpack.c.b16 %v378, %v377
      %v405 = vpack.c.b16 %v380, %v379
      %v406 = vpack.c.b16 %v382, %v381
      %v407 = vpack.c.b16 %v384, %v383
      %v408 = vpack.c.b16 %v386, %v385
      %v409 = vpack.c.b16 %v388, %v387
      %v410 = vpack.c.b16 %v390, %v389
      %v441 = vunpack.c.l.b16 %v261
      %v442 = vunpack.c.l.b16 %v262
      %v443 = vunpack.c.l.b16 %v263
      %v444 = vunpack.c.l.b16 %v264
      %v445 = vunpack.c.l.b16 %v265
      %v446 = vunpack.c.l.b16 %v266
      %v447 = vunpack.c.l.b16 %v267
      %v448 = vunpack.c.l.b16 %v268
      %v449 = vunpack.c.l.b16 %v269
      %v450 = vunpack.c.l.b16 %v270
      %v451 = vpack.c.b16 %v442, %v441
      %v452 = vpack.c.b16 %v444, %v443
      %v453 = vpack.c.b16 %v446, %v445
      %v454 = vpack.c.b16 %v448, %v447
      %v455 = vpack.c.b16 %v450, %v449
      %v501 = vunpack.c.l.b16 %v271
      %v502 = vunpack.c.l.b16 %v272
      %v503 = vunpack.c.l.b16 %v273
      %v504 = vunpack.c.l.b16 %v274
      %v505 = vunpack.c.l.b16 %v275
      %v506 = vunpack.c.l.b16 %v276
      %v507 = vunpack.c.l.b16 %v277
      %v508 = vunpack.c.l.b16 %v278
      %v509 = vunpack.c.l.b16 %v279
      %v510 = vunpack.c.l.b16 %v280
      %v511 = vunpack.c.l.b16 %v281
      %v512 = vunpack.c.l.b16 %v282
      %v513 = vunpack.c.l.b16 %v283
      %v514 = vunpack.c.l.b16 %v284
      %v515 = vunpack.c.l.b16 %v285
      %v516 = vunpack.c.l.b16 %v286
      %v517 = vunpack.c.l.b16 %v287
      %v518 = vunpack.c.l.b16 %v288
      %v519 = vunpack.c.l.b16 %v289
      %v520 = vunpack.c.l.b16 %v290
      %v521 = vunpack.c.l.b16 %v291
      %v522 = vunpack.c.l.b16 %v292
      %v523 = vunpack.c.l.b16 %v293
      %v524 = vunpack.c.l.b16 %v294
      %v525 = vunpack.c.l.b16 %v295
      %v526 = vunpack.c.l.b16 %v296
      %v527 = vunpack.c.l.b16 %v297
      %v528 = vunpack.c.l.b16 %v298
      %v529 = vunpack.c.l.b16 %v299
      %v530 = vunpack.c.l.b16 %v300
      %v531 = vunpack.c.l.b16 %v301
      %v532 = vunpack.c.l.b16 %v302
      %v533 = vunpack.c.l.b16 %v303
      %v534 = vunpack.c.l.b16 %v304
      %v535 = vunpack.c.l.b16 %v305
      %v536 = vunpack.c.l.b16 %v306
      %v537 = vunpack.c.l.b16 %v307
      %v538 = vunpack.c.l.b16 %v308
      %v539 = vunpack.c.l.b16 %v309
      %v540 = vunpack.c.l.b16 %v310
      %v541 = vpack.c.b16 %v502, %v501
      %v542 = vpack.c.b16 %v504, %v503
      %v543 = vpack.c.b16 %v506, %v505
      %v544 = vpack.c.b16 %v508, %v507
      %v545 = vpack.c.b16 %v510, %v509
      %v546 = vpack.c.b16 %v512, %v511
      %v547 = vpack.c.b16 %v514, %v513
      %v548 = vpack.c.b16 %v516, %v515
      %v549 = vpack.c.b16 %v518, %v517
      %v550 = vpack.c.b16 %v520, %v519
      %v551 = vpack.c.b16 %v522, %v521
      %v552 = vpack.c.b16 %v524, %v523
      %v553 = vpack.c.b16 %v526, %v525
      %v554 = vpack.c.b16 %v528, %v527
      %v555 = vpack.c.b16 %v530, %v529
      %v556 = vpack.c.b16 %v532, %v531
      %v557 = vpack.c.b16 %v534, %v533
      %v558 = vpack.c.b16 %v536, %v535
      %v559 = vpack.c.b16 %v538, %v537
      %v560 = vpack.c.b16 %v540, %v539
      %v582 = vlaneseq
      %v583 = vshrl.u32 %v582, 7
      %v584 = vsub.s32 0, %v583
      %v585 = vrot.slane %v220, %v584
      %v635 = vunpack.c.l.b16 %v172
      %v636 = vunpack.c.l.b16 %v173
      %v637 = vunpack.c.l.b16 %v174
      %v638 = vunpack.c.l.b16 %v175
      %v639 = vunpack.c.l.b16 %v176
      %v640 = vunpack.c.l.b16 %v177
      %v641 = vunpack.c.l.b16 %v178
      %v642 = vunpack.c.l.b16 %v179
      %v643 = vunpack.c.l.b16 %v180
      %v644 = vunpack.c.l.b16 %v181
      %v645 = vunpack.c.l.b16 %v182
      %v646 = vunpack.c.l.b16 %v183
      %v647 = vunpack.c.l.b16 %v184
      %v648 = vunpack.c.l.b16 %v185
      %v649 = vunpack.c.l.b16 %v186
      %v650 = vunpack.c.l.b16 %v187
      %v651 = vunpack.c.l.b16 %v188
      %v652 = vunpack.c.l.b16 %v189
      %v653 = vunpack.c.l.b16 %v190
      %v654 = vunpack.c.l.b16 %v191
      %v655 = vunpack.c.l.b16 %v192
      %v656 = vunpack.c.l.b16 %v193
      %v657 = vunpack.c.l.b16 %v194
      %v658 = vunpack.c.l.b16 %v195
      %v659 = vunpack.c.l.b16 %v196
      %v660 = vunpack.c.l.b16 %v197
      %v661 = vunpack.c.l.b16 %v198
      %v662 = vunpack.c.l.b16 %v199
      %v663 = vunpack.c.l.b16 %v200
      %v664 = vunpack.c.l.b16 %v201
      %v665 = vunpack.c.l.b16 %v202
      %v666 = vunpack.c.l.b16 %v203
      %v667 = vunpack.c.l.b16 %v204
      %v668 = vunpack.c.l.b16 %v205
      %v669 = vunpack.c.l.b16 %v206
      %v670 = vunpack.c.l.b16 %v207
      %v671 = vunpack.c.l.b16 %v208
      %v672 = vunpack.c.l.b16 %v209
      %v673 = vunpack.c.l.b16 %v210
      %v674 = vunpack.c.l.b16 %v211
      %v675 = vunpack.c.l.b16 %v212
      %v676 = vunpack.c.l.b16 %v213
      %v677 = vunpack.c.l.b16 %v214
      %v678 = vunpack.c.l.b16 %v215
      %v679 = vunpack.c.l.b16 %v216
      %v680 = vunpack.c.l.b16 %v217
      %v681 = vunpack.c.l.b16 %v218
      %v682 = vunpack.c.l.b16 %v219
      %v683 = vpack.c.b16 %v636, %v635
      %v684 = vpack.c.b16 %v638, %v637
      %v685 = vpack.c.b16 %v640, %v639
      %v686 = vpack.c.b16 %v642, %v641
      %v687 = vpack.c.b16 %v644, %v643
      %v688 = vpack.c.b16 %v646, %v645
      %v689 = vpack.c.b16 %v648, %v647
      %v690 = vpack.c.b16 %v650, %v649
      %v691 = vpack.c.b16 %v652, %v651
      %v692 = vpack.c.b16 %v654, %v653
      %v693 = vpack.c.b16 %v656, %v655
      %v694 = vpack.c.b16 %v658, %v657
      %v695 = vpack.c.b16 %v660, %v659
      %v696 = vpack.c.b16 %v662, %v661
      %v697 = vpack.c.b16 %v664, %v663
      %v698 = vpack.c.b16 %v666, %v665
      %v699 = vpack.c.b16 %v668, %v667
      %v700 = vpack.c.b16 %v670, %v669
      %v701 = vpack.c.b16 %v672, %v671
      %v702 = vpack.c.b16 %v674, %v673
      %v703 = vpack.c.b16 %v676, %v675
      %v704 = vpack.c.b16 %v678, %v677
      %v705 = vpack.c.b16 %v680, %v679
      %v706 = vpack.c.b16 %v682, %v681
      %731 = vmatprep.subr.bf16.mxu0 0
      %732 = vmatpush1.bf16.msra.mxu0 %v683
      %733 = vmatprep.subr.bf16.mxu0 0
      %734 = vmatpush1.bf16.msra.mxu0 %v684
      %735 = vmatprep.subr.bf16.mxu0 0
      %736 = vmatpush1.bf16.msra.mxu0 %v685
      %737 = vmatprep.subr.bf16.mxu0 0
      %738 = vmatpush1.bf16.msra.mxu0 %v686
      %739 = vmatprep.subr.bf16.mxu0 0
      %740 = vmatpush1.bf16.msra.mxu0 %v687
      %741 = vmatprep.subr.bf16.mxu0 0
      %742 = vmatpush1.bf16.msra.mxu0 %v688
      %743 = vmatprep.subr.bf16.mxu0 0
      %744 = vmatpush1.bf16.msra.mxu0 %v689
      %745 = vmatprep.subr.bf16.mxu0 0
      %746 = vmatpush1.bf16.msra.mxu0 %v690
      %747 = vmatprep.subr.bf16.mxu0 0
      %748 = vmatpush1.bf16.msra.mxu0 %v691
      %749 = vmatprep.subr.bf16.mxu0 0
      %750 = vmatpush1.bf16.msra.mxu0 %v692
      %751 = vmatprep.subr.bf16.mxu0 0
      %752 = vmatpush1.bf16.msra.mxu0 %v693
      %753 = vmatprep.subr.bf16.mxu0 0
      %754 = vmatpush1.bf16.msra.mxu0 %v694
      %755 = vmatprep.subr.bf16.mxu0 0
      %756 = vmatpush1.bf16.msra.mxu0 %v695
      %757 = vmatprep.subr.bf16.mxu0 0
      %758 = vmatpush1.bf16.msra.mxu0 %v696
      %759 = vmatprep.subr.bf16.mxu0 0
      %760 = vmatpush1.bf16.msra.mxu0 %v697
      %761 = vmatprep.subr.bf16.mxu0 0
      %762 = vmatpush1.bf16.msra.mxu0 %v698
      %763 = vmatprep.mubr.bf16.mxu0 %v396
      %764 = vmatmul.mubr.bf16.gmra.mrb[0].mxu0 %v391
      %v765 = vpop.f32.mrb[0].mxu0
      %v766 = vadd.f32 %v585, %v765
      %v767 = vpop.f32.mrb[0].mxu0
      %v768 = vpop.f32.mrb[0].mxu0
      %v769 = vadd.f32 %v585, %v768
      %v770 = vpop.f32.mrb[0].mxu0
      %771 = vmatprep.mubr.bf16.mxu0 %v397
      %772 = vmatmul.mubr.bf16.gmra.mrb[0].mxu0 %v392
      %v773 = vpop.f32.mrb[0].mxu0
      %v774 = vadd.f32 %v585, %v773
      %v775 = vpop.f32.mrb[0].mxu0
      %v776 = vpop.f32.mrb[0].mxu0
      %v777 = vadd.f32 %v585, %v776
      %v778 = vpop.f32.mrb[0].mxu0
      %779 = vmatprep.mubr.bf16.mxu0 %v398
      %780 = vmatmul.mubr.bf16.gmra.mrb[0].mxu0 %v393
      %v781 = vpop.f32.mrb[0].mxu0
      %v782 = vadd.f32 %v585, %v781
      %v783 = vpop.f32.mrb[0].mxu0
      %v784 = vpop.f32.mrb[0].mxu0
      %v785 = vadd.f32 %v585, %v784
      %v786 = vpop.f32.mrb[0].mxu0
      %787 = vmatprep.mubr.bf16.mxu0 %v399
      %788 = vmatmul.mubr.bf16.gmra.mrb[0].mxu0 %v394
      %v789 = vpop.f32.mrb[0].mxu0
      %v790 = vadd.f32 %v585, %v789
      %v791 = vpop.f32.mrb[0].mxu0
      %v792 = vpop.f32.mrb[0].mxu0
      %v793 = vadd.f32 %v585, %v792
      %v794 = vpop.f32.mrb[0].mxu0
      %795 = vmatprep.mubr.bf16.mxu0 %v400
      %796 = vmatmul.mubr.bf16.gmra.mrb[0].mxu0 %v395
      %v797 = vpop.f32.mrb[0].mxu0
      %v798 = vadd.f32 %v585, %v797
      %v799 = vpop.f32.mrb[0].mxu0
      %v800 = vpop.f32.mrb[0].mxu0
      %v801 = vadd.f32 %v585, %v800
      %v802 = vpop.f32.mrb[0].mxu0
      %803 = vmatprep.mubr.bf16.mxu0 %v401
      %804 = vmatmul.mubr.bf16.gmra.mrb[0].mxu0 %v396
      %v805 = vpop.f32.mrb[0].mxu0
      %v806 = vadd.f32 %v585, %v805
      %v807 = vpop.f32.mrb[0].mxu0
      %v808 = vpop.f32.mrb[0].mxu0
      %v809 = vadd.f32 %v585, %v808
      %v810 = vpop.f32.mrb[0].mxu0
      %811 = vmatprep.mubr.bf16.mxu0 %v402
      %812 = vmatmul.mubr.bf16.gmra.mrb[0].mxu0 %v397
      %v813 = vpop.f32.mrb[0].mxu0
      %v814 = vadd.f32 %v585, %v813
      %v815 = vpop.f32.mrb[0].mxu0
      %v816 = vpop.f32.mrb[0].mxu0
      %v817 = vadd.f32 %v585, %v816
      %v818 = vpop.f32.mrb[0].mxu0
      %819 = vmatprep.mubr.bf16.mxu0 %v403
      %820 = vmatmul.mubr.bf16.gmra.mrb[0].mxu0 %v398
      %v821 = vpop.f32.mrb[0].mxu0
      %v822 = vadd.f32 %v585, %v821
      %v823 = vpop.f32.mrb[0].mxu0
      %v824 = vpop.f32.mrb[0].mxu0
      %v825 = vadd.f32 %v585, %v824
      %v826 = vpop.f32.mrb[0].mxu0
      %827 = vmatprep.mubr.bf16.mxu0 %v404
      %828 = vmatmul.mubr.bf16.gmra.mrb[0].mxu0 %v399
      %v829 = vpop.f32.mrb[0].mxu0
      %v830 = vadd.f32 %v585, %v829
      %v831 = vpop.f32.mrb[0].mxu0
      %v832 = vpop.f32.mrb[0].mxu0
      %v833 = vadd.f32 %v585, %v832
      %v834 = vpop.f32.mrb[0].mxu0
      %835 = vmatprep.mubr.bf16.mxu0 %v405
      %836 = vmatmul.mubr.bf16.gmra.mrb[0].mxu0 %v400
      %v837 = vpop.f32.mrb[0].mxu0
      %v838 = vadd.f32 %v585, %v837
      %v839 = vpop.f32.mrb[0].mxu0
      %v840 = vpop.f32.mrb[0].mxu0
      %v841 = vadd.f32 %v585, %v840
      %v842 = vpop.f32.mrb[0].mxu0
      %843 = vmatprep.mubr.bf16.mxu0 %v406
      %844 = vmatmul.mubr.bf16.gmra.mrb[0].mxu0 %v401
      %v845 = vpop.f32.mrb[0].mxu0
      %v846 = vadd.f32 %v585, %v845
      %v847 = vpop.f32.mrb[0].mxu0
      %v848 = vpop.f32.mrb[0].mxu0
      %v849 = vadd.f32 %v585, %v848
      %v850 = vpop.f32.mrb[0].mxu0
      %851 = vmatprep.mubr.bf16.mxu0 %v407
      %852 = vmatmul.mubr.bf16.gmra.mrb[0].mxu0 %v402
      %v853 = vpop.f32.mrb[0].mxu0
      %v854 = vadd.f32 %v585, %v853
      %v855 = vpop.f32.mrb[0].mxu0
      %v856 = vpop.f32.mrb[0].mxu0
      %v857 = vadd.f32 %v585, %v856
      %v858 = vpop.f32.mrb[0].mxu0
      %859 = vmatprep.mubr.bf16.mxu0 %v408
      %860 = vmatmul.mubr.bf16.gmra.mrb[0].mxu0 %v403
      %v861 = vpop.f32.mrb[0].mxu0
      %v862 = vadd.f32 %v585, %v861
      %v863 = vpop.f32.mrb[0].mxu0
      %v864 = vpop.f32.mrb[0].mxu0
      %v865 = vadd.f32 %v585, %v864
      %v866 = vpop.f32.mrb[0].mxu0
      %867 = vmatprep.mubr.bf16.mxu0 %v409
      %868 = vmatmul.mubr.bf16.gmra.mrb[0].mxu0 %v404
      %v869 = vpop.f32.mrb[0].mxu0
      %v870 = vadd.f32 %v585, %v869
      %v871 = vpop.f32.mrb[0].mxu0
      %v872 = vpop.f32.mrb[0].mxu0
      %v873 = vadd.f32 %v585, %v872
      %v874 = vpop.f32.mrb[0].mxu0
      %875 = vmatprep.mubr.bf16.mxu0 %v410
      %876 = vmatmul.mubr.bf16.gmra.mrb[0].mxu0 %v405
      %v877 = vpop.f32.mrb[0].mxu0
      %v878 = vadd.f32 %v585, %v877
      %v879 = vpop.f32.mrb[0].mxu0
      %v880 = vpop.f32.mrb[0].mxu0
      %v881 = vadd.f32 %v585, %v880
      %v882 = vpop.f32.mrb[0].mxu0
      %883 = vmatprep.mubr.bf16.mxu0 %v451
      %884 = vmatmul.mubr.bf16.gmra.mrb[0].mxu0 %v406
      %v885 = vpop.f32.mrb[0].mxu0
      %v886 = vadd.f32 %v585, %v885
      %v887 = vpop.f32.mrb[0].mxu0
      %v888 = vpop.f32.mrb[0].mxu0
      %v889 = vadd.f32 %v585, %v888
      %v890 = vpop.f32.mrb[0].mxu0
      %891 = vmatprep.mubr.bf16.mxu0 %v452
      %892 = vmatmul.mubr.bf16.gmra.mrb[0].mxu0 %v407
      %v893 = vpop.f32.mrb[0].mxu0
      %v894 = vadd.f32 %v585, %v893
      %v895 = vpop.f32.mrb[0].mxu0
      %v896 = vpop.f32.mrb[0].mxu0
      %v897 = vadd.f32 %v585, %v896
      %v898 = vpop.f32.mrb[0].mxu0
      %899 = vmatprep.mubr.bf16.mxu0 %v453
      %900 = vmatmul.mubr.bf16.gmra.mrb[0].mxu0 %v408
      %v901 = vpop.f32.mrb[0].mxu0
      %v902 = vadd.f32 %v585, %v901
      %v903 = vpop.f32.mrb[0].mxu0
      %v904 = vpop.f32.mrb[0].mxu0
      %v905 = vadd.f32 %v585, %v904
      %v906 = vpop.f32.mrb[0].mxu0
      %907 = vmatprep.mubr.bf16.mxu0 %v454
      %908 = vmatmul.mubr.bf16.gmra.mrb[0].mxu0 %v409
      %v909 = vpop.f32.mrb[0].mxu0
      %v910 = vadd.f32 %v585, %v909
      %v911 = vpop.f32.mrb[0].mxu0
      %v912 = vpop.f32.mrb[0].mxu0
      %v913 = vadd.f32 %v585, %v912
      %v914 = vpop.f32.mrb[0].mxu0
      %915 = vmatprep.mubr.bf16.mxu0 %v455
      %916 = vmatmul.mubr.bf16.gmra.mrb[0].mxu0 %v410
      %v917 = vpop.f32.mrb[0].mxu0
      %v918 = vadd.f32 %v585, %v917
      %v919 = vpop.f32.mrb[0].mxu0
      %v920 = vpop.f32.mrb[0].mxu0
      %v921 = vadd.f32 %v585, %v920
      %v922 = vpop.f32.mrb[0].mxu0
      %923 = vdwg.mxu0
      %924 = vmatprep.subr.bf16.mxu0 0
      %925 = vmatpush1.bf16.msra.mxu0 %v699
      %926 = vmatprep.subr.bf16.mxu0 0
      %927 = vmatpush1.bf16.msra.mxu0 %v700
      %928 = vmatprep.subr.bf16.mxu0 0
      %929 = vmatpush1.bf16.msra.mxu0 %v701
      %930 = vmatprep.subr.bf16.mxu0 0
      %931 = vmatpush1.bf16.msra.mxu0 %v702
      %932 = vmatprep.subr.bf16.mxu0 0
      %933 = vmatpush1.bf16.msra.mxu0 %v703
      %934 = vmatprep.subr.bf16.mxu0 0
      %935 = vmatpush1.bf16.msra.mxu0 %v704
      %936 = vmatprep.subr.bf16.mxu0 0
      %937 = vmatpush1.bf16.msra.mxu0 %v705
      %938 = vmatprep.subr.bf16.mxu0 0
      %939 = vmatpush1.bf16.msra.mxu0 %v706
      %940 = vmatprep.subr.bf16.mxu0 0
      %941 = vmatpush1.bf16.msra.mxu0 0
      %942 = vmatprep.subr.bf16.mxu0 0
      %943 = vmatpush1.bf16.msra.mxu0 0
      %944 = vmatprep.subr.bf16.mxu0 0
      %945 = vmatpush1.bf16.msra.mxu0 0
      %946 = vmatprep.subr.bf16.mxu0 0
      %947 = vmatpush1.bf16.msra.mxu0 0
      %948 = vmatprep.subr.bf16.mxu0 0
      %949 = vmatpush1.bf16.msra.mxu0 0
      %950 = vmatprep.subr.bf16.mxu0 0
      %951 = vmatpush1.bf16.msra.mxu0 0
      %952 = vmatprep.subr.bf16.mxu0 0
      %953 = vmatpush1.bf16.msra.mxu0 0
      %954 = vmatprep.subr.bf16.mxu0 0
      %955 = vmatpush1.bf16.msra.mxu0 0
      %956 = vmatprep.mubr.bf16.mxu0 0
      %957 = vmatmul.mubr.bf16.gmra.mrb[0].mxu0 %v541
      %v958 = vpop.f32.mrb[0].mxu0
      %v959 = vadd.f32 %v766, %v958
      %v960 = vpop.f32.mrb[0].mxu0
      %v961 = vpop.f32.mrb[0].mxu0
      %v962 = vadd.f32 %v769, %v961
      %v963 = vpop.f32.mrb[0].mxu0
      %964 = vmatprep.mubr.bf16.mxu0 0
      %965 = vmatmul.mubr.bf16.gmra.mrb[0].mxu0 %v542
      %v966 = vpop.f32.mrb[0].mxu0
      %v967 = vadd.f32 %v774, %v966
      %v968 = vpop.f32.mrb[0].mxu0
      %v969 = vpop.f32.mrb[0].mxu0
      %v970 = vadd.f32 %v777, %v969
      %v971 = vpop.f32.mrb[0].mxu0
      %972 = vmatprep.mubr.bf16.mxu0 0
      %973 = vmatmul.mubr.bf16.gmra.mrb[0].mxu0 %v543
      %v974 = vpop.f32.mrb[0].mxu0
      %v975 = vadd.f32 %v782, %v974
      %v976 = vpop.f32.mrb[0].mxu0
      %v977 = vpop.f32.mrb[0].mxu0
      %v978 = vadd.f32 %v785, %v977
      %v979 = vpop.f32.mrb[0].mxu0
      %980 = vmatprep.mubr.bf16.mxu0 0
      %981 = vmatmul.mubr.bf16.gmra.mrb[0].mxu0 %v544
      %v982 = vpop.f32.mrb[0].mxu0
      %v983 = vadd.f32 %v790, %v982
      %v984 = vpop.f32.mrb[0].mxu0
      %v985 = vpop.f32.mrb[0].mxu0
      %v986 = vadd.f32 %v793, %v985
      %v987 = vpop.f32.mrb[0].mxu0
      %988 = vmatprep.mubr.bf16.mxu0 0
      %989 = vmatmul.mubr.bf16.gmra.mrb[0].mxu0 %v545
      %v990 = vpop.f32.mrb[0].mxu0
      %v991 = vadd.f32 %v798, %v990
      %v992 = vpop.f32.mrb[0].mxu0
      %v993 = vpop.f32.mrb[0].mxu0
      %v994 = vadd.f32 %v801, %v993
      %v995 = vpop.f32.mrb[0].mxu0
      %996 = vmatprep.mubr.bf16.mxu0 0
      %997 = vmatmul.mubr.bf16.gmra.mrb[0].mxu0 %v546
      %v998 = vpop.f32.mrb[0].mxu0
      %v999 = vadd.f32 %v806, %v998
      %v1000 = vpop.f32.mrb[0].mxu0
      %v1001 = vpop.f32.mrb[0].mxu0
      %v1002 = vadd.f32 %v809, %v1001
      %v1003 = vpop.f32.mrb[0].mxu0
      %1004 = vmatprep.mubr.bf16.mxu0 0
      %1005 = vmatmul.mubr.bf16.gmra.mrb[0].mxu0 %v547
      %v1006 = vpop.f32.mrb[0].mxu0
      %v1007 = vadd.f32 %v814, %v1006
      %v1008 = vpop.f32.mrb[0].mxu0
      %v1009 = vpop.f32.mrb[0].mxu0
      %v1010 = vadd.f32 %v817, %v1009
      %v1011 = vpop.f32.mrb[0].mxu0
      %1012 = vmatprep.mubr.bf16.mxu0 0
      %1013 = vmatmul.mubr.bf16.gmra.mrb[0].mxu0 %v548
      %v1014 = vpop.f32.mrb[0].mxu0
      %v1015 = vadd.f32 %v822, %v1014
      %v1016 = vpop.f32.mrb[0].mxu0
      %v1017 = vpop.f32.mrb[0].mxu0
      %v1018 = vadd.f32 %v825, %v1017
      %v1019 = vpop.f32.mrb[0].mxu0
      %1020 = vmatprep.mubr.bf16.mxu0 0
      %1021 = vmatmul.mubr.bf16.gmra.mrb[0].mxu0 %v549
      %v1022 = vpop.f32.mrb[0].mxu0
      %v1023 = vadd.f32 %v830, %v1022
      %v1024 = vpop.f32.mrb[0].mxu0
      %v1025 = vpop.f32.mrb[0].mxu0
      %v1026 = vadd.f32 %v833, %v1025
      %v1027 = vpop.f32.mrb[0].mxu0
      %1028 = vmatprep.mubr.bf16.mxu0 0
      %1029 = vmatmul.mubr.bf16.gmra.mrb[0].mxu0 %v550
      %v1030 = vpop.f32.mrb[0].mxu0
      %v1031 = vadd.f32 %v838, %v1030
      %v1032 = vpop.f32.mrb[0].mxu0
      %v1033 = vpop.f32.mrb[0].mxu0
      %v1034 = vadd.f32 %v841, %v1033
      %v1035 = vpop.f32.mrb[0].mxu0
      %1036 = vmatprep.mubr.bf16.mxu0 0
      %1037 = vmatmul.mubr.bf16.gmra.mrb[0].mxu0 %v551
      %v1038 = vpop.f32.mrb[0].mxu0
      %v1039 = vadd.f32 %v846, %v1038
      %v1040 = vpop.f32.mrb[0].mxu0
      %v1041 = vpop.f32.mrb[0].mxu0
      %v1042 = vadd.f32 %v849, %v1041
      %v1043 = vpop.f32.mrb[0].mxu0
      %1044 = vmatprep.mubr.bf16.mxu0 0
      %1045 = vmatmul.mubr.bf16.gmra.mrb[0].mxu0 %v552
      %v1046 = vpop.f32.mrb[0].mxu0
      %v1047 = vadd.f32 %v854, %v1046
      %v1048 = vpop.f32.mrb[0].mxu0
      %v1049 = vpop.f32.mrb[0].mxu0
      %v1050 = vadd.f32 %v857, %v1049
      %v1051 = vpop.f32.mrb[0].mxu0
      %1052 = vmatprep.mubr.bf16.mxu0 0
      %1053 = vmatmul.mubr.bf16.gmra.mrb[0].mxu0 %v553
      %v1054 = vpop.f32.mrb[0].mxu0
      %v1055 = vadd.f32 %v862, %v1054
      %v1056 = vpop.f32.mrb[0].mxu0
      %v1057 = vpop.f32.mrb[0].mxu0
      %v1058 = vadd.f32 %v865, %v1057
      %v1059 = vpop.f32.mrb[0].mxu0
      %1060 = vmatprep.mubr.bf16.mxu0 0
      %1061 = vmatmul.mubr.bf16.gmra.mrb[0].mxu0 %v554
      %v1062 = vpop.f32.mrb[0].mxu0
      %v1063 = vadd.f32 %v870, %v1062
      %v1064 = vpop.f32.mrb[0].mxu0
      %v1065 = vpop.f32.mrb[0].mxu0
      %v1066 = vadd.f32 %v873, %v1065
      %v1067 = vpop.f32.mrb[0].mxu0
      %1068 = vmatprep.mubr.bf16.mxu0 0
      %1069 = vmatmul.mubr.bf16.gmra.mrb[0].mxu0 %v555
      %v1070 = vpop.f32.mrb[0].mxu0
      %v1071 = vadd.f32 %v878, %v1070
      %v1072 = vpop.f32.mrb[0].mxu0
      %v1073 = vpop.f32.mrb[0].mxu0
      %v1074 = vadd.f32 %v881, %v1073
      %v1075 = vpop.f32.mrb[0].mxu0
      %1076 = vmatprep.mubr.bf16.mxu0 0
      %1077 = vmatmul.mubr.bf16.gmra.mrb[0].mxu0 %v556
      %v1078 = vpop.f32.mrb[0].mxu0
      %v1079 = vadd.f32 %v886, %v1078
      %v1080 = vpop.f32.mrb[0].mxu0
      %v1081 = vpop.f32.mrb[0].mxu0
      %v1082 = vadd.f32 %v889, %v1081
      %v1083 = vpop.f32.mrb[0].mxu0
      %1084 = vmatprep.mubr.bf16.mxu0 0
      %1085 = vmatmul.mubr.bf16.gmra.mrb[0].mxu0 %v557
      %v1086 = vpop.f32.mrb[0].mxu0
      %v1087 = vadd.f32 %v894, %v1086
      %v1088 = vpop.f32.mrb[0].mxu0
      %v1089 = vpop.f32.mrb[0].mxu0
      %v1090 = vadd.f32 %v897, %v1089
      %v1091 = vpop.f32.mrb[0].mxu0
      %1092 = vmatprep.mubr.bf16.mxu0 0
      %1093 = vmatmul.mubr.bf16.gmra.mrb[0].mxu0 %v558
      %v1094 = vpop.f32.mrb[0].mxu0
      %v1095 = vadd.f32 %v902, %v1094
      %v1096 = vpop.f32.mrb[0].mxu0
      %v1097 = vpop.f32.mrb[0].mxu0
      %v1098 = vadd.f32 %v905, %v1097
      %v1099 = vpop.f32.mrb[0].mxu0
      %1100 = vmatprep.mubr.bf16.mxu0 0
      %1101 = vmatmul.mubr.bf16.gmra.mrb[0].mxu0 %v559
      %v1102 = vpop.f32.mrb[0].mxu0
      %v1103 = vadd.f32 %v910, %v1102
      %v1104 = vpop.f32.mrb[0].mxu0
      %v1105 = vpop.f32.mrb[0].mxu0
      %v1106 = vadd.f32 %v913, %v1105
      %v1107 = vpop.f32.mrb[0].mxu0
      %1108 = vmatprep.mubr.bf16.mxu0 0
      %1109 = vmatmul.mubr.bf16.gmra.mrb[0].mxu0 %v560
      %v1110 = vpop.f32.mrb[0].mxu0
      %v1111 = vadd.f32 %v918, %v1110
      %v1112 = vpop.f32.mrb[0].mxu0
      %v1113 = vpop.f32.mrb[0].mxu0
      %v1114 = vadd.f32 %v921, %v1113
      %v1115 = vpop.f32.mrb[0].mxu0
      %1116 = vdwg.mxu0
      %v1117 = vmax.f32 %v959, 0.0
      %v1118 = vmax.f32 %v962, 0.0
      %v1119 = vmax.f32 %v967, 0.0
      %v1120 = vmax.f32 %v970, 0.0
      %v1121 = vmax.f32 %v975, 0.0
      %v1122 = vmax.f32 %v978, 0.0
      %v1123 = vmax.f32 %v983, 0.0
      %v1124 = vmax.f32 %v986, 0.0
      %v1125 = vmax.f32 %v991, 0.0
      %v1126 = vmax.f32 %v994, 0.0
      %v1127 = vmax.f32 %v999, 0.0
      %v1128 = vmax.f32 %v1002, 0.0
      %v1129 = vmax.f32 %v1007, 0.0
      %v1130 = vmax.f32 %v1010, 0.0
      %v1131 = vmax.f32 %v1015, 0.0
      %v1132 = vmax.f32 %v1018, 0.0
      %v1133 = vmax.f32 %v1023, 0.0
      %v1134 = vmax.f32 %v1026, 0.0
      %v1135 = vmax.f32 %v1031, 0.0
      %v1136 = vmax.f32 %v1034, 0.0
      %v1137 = vmax.f32 %v1039, 0.0
      %v1138 = vmax.f32 %v1042, 0.0
      %v1139 = vmax.f32 %v1047, 0.0
      %v1140 = vmax.f32 %v1050, 0.0
      %v1141 = vmax.f32 %v1055, 0.0
      %v1142 = vmax.f32 %v1058, 0.0
      %v1143 = vmax.f32 %v1063, 0.0
      %v1144 = vmax.f32 %v1066, 0.0
      %v1145 = vmax.f32 %v1071, 0.0
      %v1146 = vmax.f32 %v1074, 0.0
      %v1147 = vmax.f32 %v1079, 0.0
      %v1148 = vmax.f32 %v1082, 0.0
      %v1149 = vmax.f32 %v1087, 0.0
      %v1150 = vmax.f32 %v1090, 0.0
      %v1151 = vmax.f32 %v1095, 0.0
      %v1152 = vmax.f32 %v1098, 0.0
      %v1153 = vmax.f32 %v1103, 0.0
      %v1154 = vmax.f32 %v1106, 0.0
      %v1155 = vmax.f32 %v1111, 0.0
      %v1156 = vmax.f32 %v1114, 0.0
      %1157 = vst [vmem:[%s170] sm:$0xff] %v1117
      %1158 = vst [vmem:[%s170 + $0x8] sm:$0xff] %v1118
      %1159 = vst [vmem:[%s170 + $0x10] sm:$0xff] %v1119
      %1160 = vst [vmem:[%s170 + $0x18] sm:$0xff] %v1120
      %1161 = vst [vmem:[%s170 + $0x20] sm:$0xff] %v1121
      %1162 = vst [vmem:[%s170 + $0x28] sm:$0xff] %v1122
      %1163 = vst [vmem:[%s170 + $0x30] sm:$0xff] %v1123
      %1164 = vst [vmem:[%s170 + $0x38] sm:$0xff] %v1124
      %1165 = vst [vmem:[%s170 + $0x40] sm:$0xff] %v1125
      %1166 = vst [vmem:[%s170 + $0x48] sm:$0xff] %v1126
      %1167 = vst [vmem:[%s170 + $0x50] sm:$0xff] %v1127
      %1168 = vst [vmem:[%s170 + $0x58] sm:$0xff] %v1128
      %1169 = vst [vmem:[%s170 + $0x60] sm:$0xff] %v1129
      %1170 = vst [vmem:[%s170 + $0x68] sm:$0xff] %v1130
      %1171 = vst [vmem:[%s170 + $0x70] sm:$0xff] %v1131
      %1172 = vst [vmem:[%s170 + $0x78] sm:$0xff] %v1132
      %1173 = vst [vmem:[%s170 + $0x80] sm:$0xff] %v1133
      %1174 = vst [vmem:[%s170 + $0x88] sm:$0xff] %v1134
      %1175 = vst [vmem:[%s170 + $0x90] sm:$0xff] %v1135
      %1176 = vst [vmem:[%s170 + $0x98] sm:$0xff] %v1136
      %1177 = vst [vmem:[%s170 + $0xa0] sm:$0xff] %v1137
      %1178 = vst [vmem:[%s170 + $0xa8] sm:$0xff] %v1138
      %1179 = vst [vmem:[%s170 + $0xb0] sm:$0xff] %v1139
      %1180 = vst [vmem:[%s170 + $0xb8] sm:$0xff] %v1140
      %1181 = vst [vmem:[%s170 + $0xc0] sm:$0xff] %v1141
      %1182 = vst [vmem:[%s170 + $0xc8] sm:$0xff] %v1142
      %1183 = vst [vmem:[%s170 + $0xd0] sm:$0xff] %v1143
      %1184 = vst [vmem:[%s170 + $0xd8] sm:$0xff] %v1144
      %1185 = vst [vmem:[%s170 + $0xe0] sm:$0xff] %v1145
      %1186 = vst [vmem:[%s170 + $0xe8] sm:$0xff] %v1146
      %1187 = vst [vmem:[%s170 + $0xf0] sm:$0xff] %v1147
      %1188 = vst [vmem:[%s170 + $0xf8] sm:$0xff] %v1148
      %1189 = vst [vmem:[%s170 + $0x100] sm:$0xff] %v1149
      %1190 = vst [vmem:[%s170 + $0x108] sm:$0xff] %v1150
      %1191 = vst [vmem:[%s170 + $0x110] sm:$0xff] %v1151
      %1192 = vst [vmem:[%s170 + $0x118] sm:$0xff] %v1152
      %1193 = vst [vmem:[%s170 + $0x120] sm:$0xff] %v1153
      %1194 = vst [vmem:[%s170 + $0x128] sm:$0xff] %v1154
      %1195 = vst [vmem:[%s170 + $0x130] sm:$0xff] %v1155
      %1196 = vst [vmem:[%s170 + $0x138] sm:$0xff] %v1156
      %p1197 = scmp.lt.s32.totalorder %s14, 1
      %s1198 = scalar_select %p1197, %s14, 1
      %s1199 = smul.addr %s1198, 40
      %s1200 = smul.addr %s1199, 8
      %s1201 = scalar_lea.vmem %s3, %s1200
      // Predicated region
      $region33: #{basic_block_2plus1d.5} parent=31 // pred_check
        %p1202 = pneg %p100
      $region34: #{basic_block_2plus1d.5} parent=31 // pred_check_branch
        %1204 = sbr.rel (%p1202) target = $region36
      $region35: #{basic_block_2plus1d.5} parent=31 // pred_region
        _
      $region36: #{basic_block_2plus1d.5} parent=31 // pred_fallthru
        _
    $region32: #{basic_block_2plus1d.5} parent=5 // pred_fallthru
      _
    %p1205 = scmp.le.s32.totalorder 2, %s9
    // Predicated region
    $region37: #{basic_block_2plus1d.5} parent=5 // pred_check
      %p1206 = pneg %p1205
    $region38: #{basic_block_2plus1d.5} parent=5 // pred_check_branch
      %1208 = sbr.rel (%p1206) target = $region40
    $region39: #{basic_block_2plus1d.5} parent=5 // pred_region
      %s1209 = ssub.s32 %s9, 2
      // Predicated region
      $region41: #{basic_block_2plus1d.5} parent=39 // pred_check
        %p1210 = pneg %p106
      $region42: #{basic_block_2plus1d.5} parent=39 // pred_check_branch
        %1212 = sbr.rel (%p1210) target = $region44
      $region43: #{basic_block_2plus1d.5} parent=39 // pred_region
        %p1213 = scmp.lt.s32.totalorder %s15, 1
        %s1214 = scalar_select %p1213, %s15, 1
        %s1215 = smul.addr %s1214, 40
        %s1216 = smul.addr %s1215, 8
        %s1217 = scalar_lea.vmem %s3, %s1216
      $region44: #{basic_block_2plus1d.5} parent=39 // pred_fallthru
        _
    $region40: #{basic_block_2plus1d.5} parent=5 // pred_fallthru
      _
  $region6: #{basic_block_2plus1d.5} parent=0 // loop_footer
    %s13 = sadd.s32 1, %s9
  $region7: #{basic_block_2plus1d.5} parent=0 // loop_footer_branch
    %8 = sbr.rel target = $region3
  $region8: #{basic_block_2plus1d.5} parent=0 // loop_exit
    _

// kernel: basic_block_2plus1d.4
$region0: #{basic_block_2plus1d.4}
  #allocation0 [shape = 'u32[]', space=smem, size = 0x4, offset = 0x4, fixed_abs, tag = 'smem constant byte address 0x4 - core index']
  #allocation1 [shape = 'u32[144,128]{1,0:T(1,128)}', space=vmem, size = 0x12000, scoped, tag = 'internal scratch']
  %s0 = inlined_call_operand.vmem [shape: f32[8,110,128], index: 0, kind: input, shape index: {}]
  %s1 = inlined_call_operand.vmem [shape: bf16[1152,128], index: 1, kind: input, shape index: {}]
  %s2 = inlined_call_operand.vmem [shape: f32[1,128], index: 2, kind: input, shape index: {}]
  %s3 = inlined_call_operand.vmem [shape: bf16[8,80,128], index: 3, kind: output, shape index: {}]
  %s4 = sld [smem:[#allocation0]]
  $region45: #{basic_block_2plus1d.4} parent=0
    _
  %s6 = ssub.s32 1, %s4
  %s7 = scalar_select 0, %s6, %s4
  loop: start=0, step=1, limit=4
  $region2: #{basic_block_2plus1d.4} parent=0 // loop_pre_header
    _
  $region3: #{basic_block_2plus1d.4} parent=0 // loop_header
    %s9 = sphi 0, %s13
    %p10 = scmp.ge.s32.totalorder %s9, 4
    %s19 = sphi 0, %s21
    %s22 = sphi 0, %s19
    %s23 = sphi 0, %s22
    %s39 = sphi 0, %s23
    %s43 = sphi 0, %s43
    %s45 = sphi 0, %s43
    %s46 = sphi 0, %s45
    %s60 = sphi 0, %s46
    %s64 = sphi 0, %s64
    %s66 = sphi 0, %s64
    %s67 = sphi 0, %s66
    %s81 = sphi 0, %s67
    %s87 = sphi 0, %s89
    %s90 = sphi 0, %s87
    %s91 = sphi 0, %s90
    %s107 = sphi 0, %s91
  $region4: #{basic_block_2plus1d.4} parent=0 // loop_header_branch
    %12 = sbr.rel (%p10) target = $region8
  $region5: #{basic_block_2plus1d.4} parent=0 // loop_body
    %s14 = ssub.s32 %s9, 1
    %s15 = ssub.s32 %s9, 2
    %s16 = sadd.s32 %s9, 1
    %s17 = ssub.s32 %s9, %s16
    %p18 = scmp.eq.s32.totalorder %s17, 0
    %s20 = sadd.s32 %s19, 1
    %s21 = scalar_select %p18, %s19, %s20
    %p24 = pneg %p18
    %p25 = scmp.eq.s32.totalorder %s9, 1
    %p26 = por %p24, %p25
    %p27 = scmp.ne.s32.totalorder %s19, %s22
    %p28 = scmp.eq.s32.totalorder %s9, 0
    %p29 = por %p27, %p28
    %p30 = scmp.ne.s32.totalorder %s19, %s22
    %p31 = scmp.eq.s32.totalorder %s14, 1
    %p32 = por %p30, %p31
    %p33 = scmp.ne.s32.totalorder %s22, %s23
    %p34 = scmp.eq.s32.totalorder %s14, 0
    %p35 = por %p33, %p34
    %p36 = scmp.ne.s32.totalorder %s22, %s23
    %p37 = scmp.eq.s32.totalorder %s15, 1
    %p38 = por %p36, %p37
    %p40 = scmp.ne.s32.totalorder %s23, %s39
    %p41 = scmp.eq.s32.totalorder %s15, 0
    %p42 = por %p40, %p41
    %s44 = sadd.s32 %s43, 1
    %p47 = scmp.eq.s32.totalorder %s9, 1
    %p48 = scmp.ne.s32.totalorder %s43, %s45
    %p49 = scmp.eq.s32.totalorder %s9, 0
    %p50 = por %p48, %p49
    %p51 = scmp.ne.s32.totalorder %s43, %s45
    %p52 = scmp.eq.s32.totalorder %s14, 1
    %p53 = por %p51, %p52
    %p54 = scmp.ne.s32.totalorder %s45, %s46
    %p55 = scmp.eq.s32.totalorder %s14, 0
    %p56 = por %p54, %p55
    %p57 = scmp.ne.s32.totalorder %s45, %s46
    %p58 = scmp.eq.s32.totalorder %s15, 1
    %p59 = por %p57, %p58
    %p61 = scmp.ne.s32.totalorder %s46, %s60
    %p62 = scmp.eq.s32.totalorder %s15, 0
    %p63 = por %p61, %p62
    %s65 = sadd.s32 %s64, 1
    %p68 = scmp.eq.s32.totalorder %s9, 1
    %p69 = scmp.ne.s32.totalorder %s64, %s66
    %p70 = scmp.eq.s32.totalorder %s9, 0
    %p71 = por %p69, %p70
    %p72 = scmp.ne.s32.totalorder %s64, %s66
    %p73 = scmp.eq.s32.totalorder %s14, 1
    %p74 = por %p72, %p73
    %p75 = scmp.ne.s32.totalorder %s66, %s67
    %p76 = scmp.eq.s32.totalorder %s14, 0
    %p77 = por %p75, %p76
    %p78 = scmp.ne.s32.totalorder %s66, %s67
    %p79 = scmp.eq.s32.totalorder %s15, 1
    %p80 = por %p78, %p79
    %p82 = scmp.ne.s32.totalorder %s67, %s81
    %p83 = scmp.eq.s32.totalorder %s15, 0
    %p84 = por %p82, %p83
    %s85 = ssub.s32 %s9, %s16
    %p86 = scmp.eq.s32.totalorder %s85, 0
    %s88 = sadd.s32 %s87, 1
    %s89 = scalar_select %p86, %s87, %s88
    %p92 = pneg %p86
    %p93 = scmp.eq.s32.totalorder %s9, 1
    %p94 = por %p92, %p93
    %p95 = scmp.ne.s32.totalorder %s87, %s90
    %p96 = scmp.eq.s32.totalorder %s9, 0
    %p97 = por %p95, %p96
    %p98 = scmp.ne.s32.totalorder %s87, %s90
    %p99 = scmp.eq.s32.totalorder %s14, 1
    %p100 = por %p98, %p99
    %p101 = scmp.ne.s32.totalorder %s90, %s91
    %p102 = scmp.eq.s32.totalorder %s14, 0
    %p103 = por %p101, %p102
    %p104 = scmp.ne.s32.totalorder %s90, %s91
    %p105 = scmp.eq.s32.totalorder %s15, 1
    %p106 = por %p104, %p105
    %p108 = scmp.ne.s32.totalorder %s91, %s107
    %p109 = scmp.eq.s32.totalorder %s15, 0
    %p110 = por %p108, %p109
    %p111 = scmp.le.s32.totalorder 1, %s9
    %p112 = scmp.lt.s32.totalorder %s9, 3
    %p113 = pnand %p111, %p112
    %p114 = pneg %p113
    // Predicated region
    $region9: #{basic_block_2plus1d.4} parent=5 // pred_check
      _
    $region10: #{basic_block_2plus1d.4} parent=5 // pred_check_branch
      %116 = sbr.rel (%p113) target = $region12
    $region11: #{basic_block_2plus1d.4} parent=5 // pred_region
      %s117 = ssub.s32 %s9, 1
      // Predicated region
      $region13: #{basic_block_2plus1d.4} parent=11 // pred_check
        %p118 = pneg %p56
      $region14: #{basic_block_2plus1d.4} parent=11 // pred_check_branch
        %120 = sbr.rel (%p118) target = $region16
      $region15: #{basic_block_2plus1d.4} parent=11 // pred_region
        _
      $region16: #{basic_block_2plus1d.4} parent=11 // pred_fallthru
        _
      // Predicated region
      $region17: #{basic_block_2plus1d.4} parent=11 // pred_check
        %p121 = pneg %p77
      $region18: #{basic_block_2plus1d.4} parent=11 // pred_check_branch
        %123 = sbr.rel (%p121) target = $region20
      $region19: #{basic_block_2plus1d.4} parent=11 // pred_region
        _
      $region20: #{basic_block_2plus1d.4} parent=11 // pred_fallthru
        _
    $region12: #{basic_block_2plus1d.4} parent=5 // pred_fallthru
      _
    %p124 = scmp.lt.s32.totalorder %s9, 2
    // Predicated region
    $region21: #{basic_block_2plus1d.4} parent=5 // pred_check
      %p125 = pneg %p124
    $region22: #{basic_block_2plus1d.4} parent=5 // pred_check_branch
      %127 = sbr.rel (%p125) target = $region24
    $region23: #{basic_block_2plus1d.4} parent=5 // pred_region
      // Predicated region
      $region25: #{basic_block_2plus1d.4} parent=23 // pred_check
        %p128 = pneg %p29
      $region26: #{basic_block_2plus1d.4} parent=23 // pred_check_branch
        %130 = sbr.rel (%p128) target = $region28
      $region27: #{basic_block_2plus1d.4} parent=23 // pred_region
        %s131 = smul.u32 4, %s9
        %p132 = scmp.lt.s32.totalorder %s131, 7
        %s133 = scalar_select %p132, %s131, 7
        %s134 = smul.addr %s133, 14
        %s135 = smul.addr %s134, 8
        %s136 = scalar_lea.vmem %s0, %s135
        %s137 = smul.u32 4, %s9
      $region28: #{basic_block_2plus1d.4} parent=23 // pred_fallthru
        _
    $region24: #{basic_block_2plus1d.4} parent=5 // pred_fallthru
      _
    %p138 = scmp.le.s32.totalorder 1, %s9
    %p139 = scmp.lt.s32.totalorder %s9, 3
    %p140 = pnand %p138, %p139
    %p141 = pneg %p140
    // Predicated region
    $region29: #{basic_block_2plus1d.4} parent=5 // pred_check
      _
    $region30: #{basic_block_2plus1d.4} parent=5 // pred_check_branch
      %143 = sbr.rel (%p140) target = $region32
    $region31: #{basic_block_2plus1d.4} parent=5 // pred_region
      %s144 = ssub.s32 %s9, 1
      %s145 = smul.u32 4, %s14
      %p146 = scmp.lt.s32.totalorder %s145, 7
      %s147 = scalar_select %p146, %s145, 7
      %s148 = smul.addr %s147, 14
      %s149 = smul.addr %s148, 8
      %s150 = scalar_lea.vmem %s0, %s149
      %p151 = pneg %p35
      %p152 = pneg %p32
      %p153 = pneg %p56
      %p154 = pneg %p53
      %p155 = pneg %p77
      %p156 = pneg %p74
      %p157 = pneg %p103
      %p158 = pneg %p100
      %s159 = smul.u32 4, %s14
      %p160 = scmp.lt.s32.totalorder %s159, 7
      %s161 = scalar_select %p160, %s159, 7
      %s162 = smul.addr %s161, 10
      %s163 = smul.addr %s162, 4
      %s164 = scalar_lea.vmem %s3, %s163
      %s165 = smul.u32 4, %s14
      %p166 = scmp.lt.s32.totalorder %s165, 7
      %s167 = scalar_select %p166, %s165, 7
      %s168 = smul.addr %s167, 14
      %s169 = smul.addr %s168, 8
      %s170 = scalar_lea.vmem %s0, %s169
      %s171 = smul.u32 4, %s14
      %s172 = smul.u32 4, %s14
      %p173 = scmp.lt.s32.totalorder %s172, 7
      %s174 = scalar_select %p173, %s172, 7
      %s175 = smul.addr %s174, 10
      %s176 = smul.addr %s175, 4
      %s177 = scalar_lea.vmem %s3, %s176
      %s178 = smul.u32 4, %s14
      %v180 = vld [vmem:[%s1] sm:$0xf]
      %v181 = vld [vmem:[%s1 + $0x4] sm:$0xf]
      %v182 = vld [vmem:[%s1 + $0x8] sm:$0xf]
      %v183 = vld [vmem:[%s1 + $0xc] sm:$0xf]
      %v184 = vld [vmem:[%s1 + $0x10] sm:$0xf]
      %v185 = vld [vmem:[%s1 + $0x14] sm:$0xf]
      %v186 = vld [vmem:[%s1 + $0x18] sm:$0xf]
      %v187 = vld [vmem:[%s1 + $0x1c] sm:$0xf]
      %v188 = vld [vmem:[%s1 + $0x20] sm:$0xf]
      %v189 = vld [vmem:[%s1 + $0x24] sm:$0xf]
      %v190 = vld [vmem:[%s1 + $0x28] sm:$0xf]
      %v191 = vld [vmem:[%s1 + $0x2c] sm:$0xf]
      %v192 = vld [vmem:[%s1 + $0x30] sm:$0xf]
      %v193 = vld [vmem:[%s1 + $0x34] sm:$0xf]
      %v194 = vld [vmem:[%s1 + $0x38] sm:$0xf]
      %v195 = vld [vmem:[%s1 + $0x3c] sm:$0xf]
      %v196 = vld [vmem:[%s1 + $0x40] sm:$0xf]
      %v197 = vld [vmem:[%s1 + $0x44] sm:$0xf]
      %v198 = vld [vmem:[%s1 + $0x48] sm:$0xf]
      %v199 = vld [vmem:[%s1 + $0x4c] sm:$0xf]
      %v200 = vld [vmem:[%s1 + $0x50] sm:$0xf]
      %v201 = vld [vmem:[%s1 + $0x54] sm:$0xf]
      %v202 = vld [vmem:[%s1 + $0x58] sm:$0xf]
      %v203 = vld [vmem:[%s1 + $0x5c] sm:$0xf]
      %v204 = vld [vmem:[%s1 + $0x60] sm:$0xf]
      %v205 = vld [vmem:[%s1 + $0x64] sm:$0xf]
      %v206 = vld [vmem:[%s1 + $0x68] sm:$0xf]
      %v207 = vld [vmem:[%s1 + $0x6c] sm:$0xf]
      %v208 = vld [vmem:[%s1 + $0x70] sm:$0xf]
      %v209 = vld [vmem:[%s1 + $0x74] sm:$0xf]
      %v210 = vld [vmem:[%s1 + $0x78] sm:$0xf]
      %v211 = vld [vmem:[%s1 + $0x7c] sm:$0xf]
      %v212 = vld [vmem:[%s1 + $0x80] sm:$0xf]
      %v213 = vld [vmem:[%s1 + $0x84] sm:$0xf]
      %v214 = vld [vmem:[%s1 + $0x88] sm:$0xf]
      %v215 = vld [vmem:[%s1 + $0x8c] sm:$0xf]
      %v216 = vld [vmem:[%s1 + $0x90] sm:$0xf]
      %v217 = vld [vmem:[%s1 + $0x94] sm:$0xf]
      %v218 = vld [vmem:[%s1 + $0x98] sm:$0xf]
      %v219 = vld [vmem:[%s1 + $0x9c] sm:$0xf]
      %v220 = vld [vmem:[%s1 + $0xa0] sm:$0xf]
      %v221 = vld [vmem:[%s1 + $0xa4] sm:$0xf]
      %v222 = vld [vmem:[%s1 + $0xa8] sm:$0xf]
      %v223 = vld [vmem:[%s1 + $0xac] sm:$0xf]
      %v224 = vld [vmem:[%s1 + $0xb0] sm:$0xf]
      %v225 = vld [vmem:[%s1 + $0xb4] sm:$0xf]
      %v226 = vld [vmem:[%s1 + $0xb8] sm:$0xf]
      %v227 = vld [vmem:[%s1 + $0xbc] sm:$0xf]
      %v228 = vld [vmem:[%s1 + $0xc0] sm:$0xf]
      %v229 = vld [vmem:[%s1 + $0xc4] sm:$0xf]
      %v230 = vld [vmem:[%s1 + $0xc8] sm:$0xf]
      %v231 = vld [vmem:[%s1 + $0xcc] sm:$0xf]
      %v232 = vld [vmem:[%s1 + $0xd0] sm:$0xf]
      %v233 = vld [vmem:[%s1 + $0xd4] sm:$0xf]
      %v234 = vld [vmem:[%s1 + $0xd8] sm:$0xf]
      %v235 = vld [vmem:[%s1 + $0xdc] sm:$0xf]
      %v236 = vld [vmem:[%s1 + $0xe0] sm:$0xf]
      %v237 = vld [vmem:[%s1 + $0xe4] sm:$0xf]
      %v238 = vld [vmem:[%s1 + $0xe8] sm:$0xf]
      %v239 = vld [vmem:[%s1 + $0xec] sm:$0xf]
      %v240 = vld [vmem:[%s1 + $0xf0] sm:$0xf]
      %v241 = vld [vmem:[%s1 + $0xf4] sm:$0xf]
      %v242 = vld [vmem:[%s1 + $0xf8] sm:$0xf]
      %v243 = vld [vmem:[%s1 + $0xfc] sm:$0xf]
      %v244 = vld [vmem:[%s1 + $0x100] sm:$0xf]
      %v245 = vld [vmem:[%s1 + $0x104] sm:$0xf]
      %v246 = vld [vmem:[%s1 + $0x108] sm:$0xf]
      %v247 = vld [vmem:[%s1 + $0x10c] sm:$0xf]
      %v248 = vld [vmem:[%s1 + $0x110] sm:$0xf]
      %v249 = vld [vmem:[%s1 + $0x114] sm:$0xf]
      %v250 = vld [vmem:[%s1 + $0x118] sm:$0xf]
      %v251 = vld [vmem:[%s1 + $0x11c] sm:$0xf]
      %v252 = vld [vmem:[%s1 + $0x120] sm:$0xf]
      %v253 = vld [vmem:[%s1 + $0x124] sm:$0xf]
      %v254 = vld [vmem:[%s1 + $0x128] sm:$0xf]
      %v255 = vld [vmem:[%s1 + $0x12c] sm:$0xf]
      %v256 = vld [vmem:[%s1 + $0x130] sm:$0xf]
      %v257 = vld [vmem:[%s1 + $0x134] sm:$0xf]
      %v258 = vld [vmem:[%s1 + $0x138] sm:$0xf]
      %v259 = vld [vmem:[%s1 + $0x13c] sm:$0xf]
      %v260 = vld [vmem:[%s1 + $0x140] sm:$0xf]
      %v261 = vld [vmem:[%s1 + $0x144] sm:$0xf]
      %v262 = vld [vmem:[%s1 + $0x148] sm:$0xf]
      %v263 = vld [vmem:[%s1 + $0x14c] sm:$0xf]
      %v264 = vld [vmem:[%s1 + $0x150] sm:$0xf]
      %v265 = vld [vmem:[%s1 + $0x154] sm:$0xf]
      %v266 = vld [vmem:[%s1 + $0x158] sm:$0xf]
      %v267 = vld [vmem:[%s1 + $0x15c] sm:$0xf]
      %v268 = vld [vmem:[%s1 + $0x160] sm:$0xf]
      %v269 = vld [vmem:[%s1 + $0x164] sm:$0xf]
      %v270 = vld [vmem:[%s1 + $0x168] sm:$0xf]
      %v271 = vld [vmem:[%s1 + $0x16c] sm:$0xf]
      %v272 = vld [vmem:[%s1 + $0x170] sm:$0xf]
      %v273 = vld [vmem:[%s1 + $0x174] sm:$0xf]
      %v274 = vld [vmem:[%s1 + $0x178] sm:$0xf]
      %v275 = vld [vmem:[%s1 + $0x17c] sm:$0xf]
      %v276 = vld [vmem:[%s1 + $0x180] sm:$0xf]
      %v277 = vld [vmem:[%s1 + $0x184] sm:$0xf]
      %v278 = vld [vmem:[%s1 + $0x188] sm:$0xf]
      %v279 = vld [vmem:[%s1 + $0x18c] sm:$0xf]
      %v280 = vld [vmem:[%s1 + $0x190] sm:$0xf]
      %v281 = vld [vmem:[%s1 + $0x194] sm:$0xf]
      %v282 = vld [vmem:[%s1 + $0x198] sm:$0xf]
      %v283 = vld [vmem:[%s1 + $0x19c] sm:$0xf]
      %v284 = vld [vmem:[%s1 + $0x1a0] sm:$0xf]
      %v285 = vld [vmem:[%s1 + $0x1a4] sm:$0xf]
      %v286 = vld [vmem:[%s1 + $0x1a8] sm:$0xf]
      %v287 = vld [vmem:[%s1 + $0x1ac] sm:$0xf]
      %v288 = vld [vmem:[%s1 + $0x1b0] sm:$0xf]
      %v289 = vld [vmem:[%s1 + $0x1b4] sm:$0xf]
      %v290 = vld [vmem:[%s1 + $0x1b8] sm:$0xf]
      %v291 = vld [vmem:[%s1 + $0x1bc] sm:$0xf]
      %v292 = vld [vmem:[%s1 + $0x1c0] sm:$0xf]
      %v293 = vld [vmem:[%s1 + $0x1c4] sm:$0xf]
      %v294 = vld [vmem:[%s1 + $0x1c8] sm:$0xf]
      %v295 = vld [vmem:[%s1 + $0x1cc] sm:$0xf]
      %v296 = vld [vmem:[%s1 + $0x1d0] sm:$0xf]
      %v297 = vld [vmem:[%s1 + $0x1d4] sm:$0xf]
      %v298 = vld [vmem:[%s1 + $0x1d8] sm:$0xf]
      %v299 = vld [vmem:[%s1 + $0x1dc] sm:$0xf]
      %v300 = vld [vmem:[%s1 + $0x1e0] sm:$0xf]
      %v301 = vld [vmem:[%s1 + $0x1e4] sm:$0xf]
      %v302 = vld [vmem:[%s1 + $0x1e8] sm:$0xf]
      %v303 = vld [vmem:[%s1 + $0x1ec] sm:$0xf]
      %v304 = vld [vmem:[%s1 + $0x1f0] sm:$0xf]
      %v305 = vld [vmem:[%s1 + $0x1f4] sm:$0xf]
      %v306 = vld [vmem:[%s1 + $0x1f8] sm:$0xf]
      %v307 = vld [vmem:[%s1 + $0x1fc] sm:$0xf]
      %v308 = vld [vmem:[%s1 + $0x200] sm:$0xf]
      %v309 = vld [vmem:[%s1 + $0x204] sm:$0xf]
      %v310 = vld [vmem:[%s1 + $0x208] sm:$0xf]
      %v311 = vld [vmem:[%s1 + $0x20c] sm:$0xf]
      %v312 = vld [vmem:[%s1 + $0x210] sm:$0xf]
      %v313 = vld [vmem:[%s1 + $0x214] sm:$0xf]
      %v314 = vld [vmem:[%s1 + $0x218] sm:$0xf]
      %v315 = vld [vmem:[%s1 + $0x21c] sm:$0xf]
      %v316 = vld [vmem:[%s1 + $0x220] sm:$0xf]
      %v317 = vld [vmem:[%s1 + $0x224] sm:$0xf]
      %v318 = vld [vmem:[%s1 + $0x228] sm:$0xf]
      %v319 = vld [vmem:[%s1 + $0x22c] sm:$0xf]
      %v320 = vld [vmem:[%s1 + $0x230] sm:$0xf]
      %v321 = vld [vmem:[%s1 + $0x234] sm:$0xf]
      %v322 = vld [vmem:[%s1 + $0x238] sm:$0xf]
      %v323 = vld [vmem:[%s1 + $0x23c] sm:$0xf]
      %v324 = vld [vmem:[%s2] sm:$0x1]
      %v325 = vld [vmem:[%s170] sm:$0xff]
      %v326 = vld [vmem:[%s170 + $0x8] sm:$0xff]
      %v327 = vld [vmem:[%s170 + $0x10] sm:$0xff]
      %v328 = vld [vmem:[%s170 + $0x18] sm:$0xff]
      %v329 = vld [vmem:[%s170 + $0x20] sm:$0xff]
      %v330 = vld [vmem:[%s170 + $0x28] sm:$0xff]
      %v331 = vld [vmem:[%s170 + $0x30] sm:$0xff]
      %v332 = vld [vmem:[%s170 + $0x38] sm:$0xff]
      %v333 = vld [vmem:[%s170 + $0x40] sm:$0xff]
      %v334 = vld [vmem:[%s170 + $0x48] sm:$0xff]
      %v335 = vld [vmem:[%s170 + $0x1] sm:$0xff]
      %v336 = vld [vmem:[%s170 + $0x9] sm:$0xff]
      %v337 = vld [vmem:[%s170 + $0x11] sm:$0xff]
      %v338 = vld [vmem:[%s170 + $0x19] sm:$0xff]
      %v339 = vld [vmem:[%s170 + $0x21] sm:$0xff]
      %v340 = vld [vmem:[%s170 + $0x29] sm:$0xff]
      %v341 = vld [vmem:[%s170 + $0x31] sm:$0xff]
      %v342 = vld [vmem:[%s170 + $0x39] sm:$0xff]
      %v343 = vld [vmem:[%s170 + $0x41] sm:$0xff]
      %v344 = vld [vmem:[%s170 + $0x49] sm:$0xff]
      %v345 = vld [vmem:[%s170 + $0x2] sm:$0xff]
      %v346 = vld [vmem:[%s170 + $0xa] sm:$0xff]
      %v347 = vld [vmem:[%s170 + $0x12] sm:$0xff]
      %v348 = vld [vmem:[%s170 + $0x1a] sm:$0xff]
      %v349 = vld [vmem:[%s170 + $0x22] sm:$0xff]
      %v350 = vld [vmem:[%s170 + $0x2a] sm:$0xff]
      %v351 = vld [vmem:[%s170 + $0x32] sm:$0xff]
      %v352 = vld [vmem:[%s170 + $0x3a] sm:$0xff]
      %v353 = vld [vmem:[%s170 + $0x42] sm:$0xff]
      %v354 = vld [vmem:[%s170 + $0x4a] sm:$0xff]
      %v355 = vld [vmem:[%s170 + $0x52] sm:$0xff]
      %v356 = vld [vmem:[%s170 + $0xb] sm:$0xff]
      %v357 = vld [vmem:[%s170 + $0x13] sm:$0xff]
      %v358 = vld [vmem:[%s170 + $0x1b] sm:$0xff]
      %v359 = vld [vmem:[%s170 + $0x23] sm:$0xff]
      %v360 = vld [vmem:[%s170 + $0x2b] sm:$0xff]
      %v361 = vld [vmem:[%s170 + $0x33] sm:$0xff]
      %v362 = vld [vmem:[%s170 + $0x3b] sm:$0xff]
      %v363 = vld [vmem:[%s170 + $0x43] sm:$0xff]
      %v364 = vld [vmem:[%s170 + $0x4b] sm:$0xff]
      %v365 = vld [vmem:[%s170 + $0x53] sm:$0xff]
      %v366 = vld [vmem:[%s170 + $0xc] sm:$0xff]
      %v367 = vld [vmem:[%s170 + $0x14] sm:$0xff]
      %v368 = vld [vmem:[%s170 + $0x1c] sm:$0xff]
      %v369 = vld [vmem:[%s170 + $0x24] sm:$0xff]
      %v370 = vld [vmem:[%s170 + $0x2c] sm:$0xff]
      %v371 = vld [vmem:[%s170 + $0x34] sm:$0xff]
      %v372 = vld [vmem:[%s170 + $0x3c] sm:$0xff]
      %v373 = vld [vmem:[%s170 + $0x44] sm:$0xff]
      %v374 = vld [vmem:[%s170 + $0x4c] sm:$0xff]
      %v375 = vld [vmem:[%s170 + $0x54] sm:$0xff]
      %v376 = vld [vmem:[%s170 + $0x5c] sm:$0xff]
      %v377 = vld [vmem:[%s170 + $0x15] sm:$0xff]
      %v378 = vld [vmem:[%s170 + $0x1d] sm:$0xff]
      %v379 = vld [vmem:[%s170 + $0x25] sm:$0xff]
      %v380 = vld [vmem:[%s170 + $0x2d] sm:$0xff]
      %v381 = vld [vmem:[%s170 + $0x35] sm:$0xff]
      %v382 = vld [vmem:[%s170 + $0x3d] sm:$0xff]
      %v383 = vld [vmem:[%s170 + $0x45] sm:$0xff]
      %v384 = vld [vmem:[%s170 + $0x4d] sm:$0xff]
      %v385 = vld [vmem:[%s170 + $0x55] sm:$0xff]
      %v386 = vld [vmem:[%s170 + $0x5d] sm:$0xff]
      %v387 = vld [vmem:[%s170 + $0x16] sm:$0xff]
      %v388 = vld [vmem:[%s170 + $0x1e] sm:$0xff]
      %v389 = vld [vmem:[%s170 + $0x26] sm:$0xff]
      %v390 = vld [vmem:[%s170 + $0x2e] sm:$0xff]
      %v391 = vld [vmem:[%s170 + $0x36] sm:$0xff]
      %v392 = vld [vmem:[%s170 + $0x3e] sm:$0xff]
      %v393 = vld [vmem:[%s170 + $0x46] sm:$0xff]
      %v394 = vld [vmem:[%s170 + $0x4e] sm:$0xff]
      %v395 = vld [vmem:[%s170 + $0x56] sm:$0xff]
      %v396 = vld [vmem:[%s170 + $0x5e] sm:$0xff]
      %v397 = vpack.c.bf16 %v326, %v325
      %v398 = vpack.c.bf16 %v336, %v335
      %v399 = vpack.c.bf16 %v346, %v345
      %v400 = vpack.c.bf16 %v347, %v346
      %v401 = vpack.c.bf16 %v357, %v356
      %v402 = vpack.c.bf16 %v367, %v366
      %v403 = vpack.c.bf16 %v368, %v367
      %v404 = vpack.c.bf16 %v378, %v377
      %v405 = vpack.c.bf16 %v388, %v387
      %v406 = vpack.c.bf16 %v328, %v327
      %v407 = vpack.c.bf16 %v338, %v337
      %v408 = vpack.c.bf16 %v348, %v347
      %v409 = vpack.c.bf16 %v349, %v348
      %v410 = vpack.c.bf16 %v359, %v358
      %v411 = vpack.c.bf16 %v369, %v368
      %v412 = vpack.c.bf16 %v370, %v369
      %v413 = vpack.c.bf16 %v380, %v379
      %v414 = vpack.c.bf16 %v390, %v389
      %v415 = vpack.c.bf16 %v330, %v329
      %v416 = vpack.c.bf16 %v340, %v339
      %v417 = vpack.c.bf16 %v350, %v349
      %v418 = vpack.c.bf16 %v351, %v350
      %v419 = vpack.c.bf16 %v361, %v360
      %v420 = vpack.c.bf16 %v371, %v370
      %v421 = vpack.c.bf16 %v372, %v371
      %v422 = vpack.c.bf16 %v382, %v381
      %v423 = vpack.c.bf16 %v392, %v391
      %v424 = vpack.c.bf16 %v332, %v331
      %v425 = vpack.c.bf16 %v342, %v341
      %v426 = vpack.c.bf16 %v352, %v351
      %v427 = vpack.c.bf16 %v353, %v352
      %v428 = vpack.c.bf16 %v363, %v362
      %v429 = vpack.c.bf16 %v373, %v372
      %v430 = vpack.c.bf16 %v374, %v373
      %v431 = vpack.c.bf16 %v384, %v383
      %v432 = vpack.c.bf16 %v394, %v393
      %v433 = vpack.c.bf16 %v334, %v333
      %v434 = vpack.c.bf16 %v344, %v343
      %v435 = vpack.c.bf16 %v354, %v353
      %v436 = vpack.c.bf16 %v355, %v354
      %v437 = vpack.c.bf16 %v365, %v364
      %v438 = vpack.c.bf16 %v375, %v374
      %v439 = vpack.c.bf16 %v376, %v375
      %v440 = vpack.c.bf16 %v386, %v385
      %v441 = vpack.c.bf16 %v396, %v395
      %v443 = vlaneseq
      %v444 = vshrl.u32 %v443, 7
      %v445 = vsub.s32 0, %v444
      %v446 = vrot.slane %v324, %v445
      %v592 = vunpack.c.l.b16 %v180
      %v593 = vunpack.c.l.b16 %v181
      %v594 = vunpack.c.l.b16 %v182
      %v595 = vunpack.c.l.b16 %v183
      %v596 = vunpack.c.l.b16 %v184
      %v597 = vunpack.c.l.b16 %v185
      %v598 = vunpack.c.l.b16 %v186
      %v599 = vunpack.c.l.b16 %v187
      %v600 = vunpack.c.l.b16 %v188
      %v601 = vunpack.c.l.b16 %v189
      %v602 = vunpack.c.l.b16 %v190
      %v603 = vunpack.c.l.b16 %v191
      %v604 = vunpack.c.l.b16 %v192
      %v605 = vunpack.c.l.b16 %v193
      %v606 = vunpack.c.l.b16 %v194
      %v607 = vunpack.c.l.b16 %v195
      %v608 = vunpack.c.l.b16 %v196
      %v609 = vunpack.c.l.b16 %v197
      %v610 = vunpack.c.l.b16 %v198
      %v611 = vunpack.c.l.b16 %v199
      %v612 = vunpack.c.l.b16 %v200
      %v613 = vunpack.c.l.b16 %v201
      %v614 = vunpack.c.l.b16 %v202
      %v615 = vunpack.c.l.b16 %v203
      %v616 = vunpack.c.l.b16 %v204
      %v617 = vunpack.c.l.b16 %v205
      %v618 = vunpack.c.l.b16 %v206
      %v619 = vunpack.c.l.b16 %v207
      %v620 = vunpack.c.l.b16 %v208
      %v621 = vunpack.c.l.b16 %v209
      %v622 = vunpack.c.l.b16 %v210
      %v623 = vunpack.c.l.b16 %v211
      %v624 = vunpack.c.l.b16 %v212
      %v625 = vunpack.c.l.b16 %v213
      %v626 = vunpack.c.l.b16 %v214
      %v627 = vunpack.c.l.b16 %v215
      %v628 = vunpack.c.l.b16 %v216
      %v629 = vunpack.c.l.b16 %v217
      %v630 = vunpack.c.l.b16 %v218
      %v631 = vunpack.c.l.b16 %v219
      %v632 = vunpack.c.l.b16 %v220
      %v633 = vunpack.c.l.b16 %v221
      %v634 = vunpack.c.l.b16 %v222
      %v635 = vunpack.c.l.b16 %v223
      %v636 = vunpack.c.l.b16 %v224
      %v637 = vunpack.c.l.b16 %v225
      %v638 = vunpack.c.l.b16 %v226
      %v639 = vunpack.c.l.b16 %v227
      %v640 = vunpack.c.l.b16 %v228
      %v641 = vunpack.c.l.b16 %v229
      %v642 = vunpack.c.l.b16 %v230
      %v643 = vunpack.c.l.b16 %v231
      %v644 = vunpack.c.l.b16 %v232
      %v645 = vunpack.c.l.b16 %v233
      %v646 = vunpack.c.l.b16 %v234
      %v647 = vunpack.c.l.b16 %v235
      %v648 = vunpack.c.l.b16 %v236
      %v649 = vunpack.c.l.b16 %v237
      %v650 = vunpack.c.l.b16 %v238
      %v651 = vunpack.c.l.b16 %v239
      %v652 = vunpack.c.l.b16 %v240
      %v653 = vunpack.c.l.b16 %v241
      %v654 = vunpack.c.l.b16 %v242
      %v655 = vunpack.c.l.b16 %v243
      %v656 = vunpack.c.l.b16 %v244
      %v657 = vunpack.c.l.b16 %v245
      %v658 = vunpack.c.l.b16 %v246
      %v659 = vunpack.c.l.b16 %v247
      %v660 = vunpack.c.l.b16 %v248
      %v661 = vunpack.c.l.b16 %v249
      %v662 = vunpack.c.l.b16 %v250
      %v663 = vunpack.c.l.b16 %v251
      %v664 = vunpack.c.l.b16 %v252
      %v665 = vunpack.c.l.b16 %v253
      %v666 = vunpack.c.l.b16 %v254
      %v667 = vunpack.c.l.b16 %v255
      %v668 = vunpack.c.l.b16 %v256
      %v669 = vunpack.c.l.b16 %v257
      %v670 = vunpack.c.l.b16 %v258
      %v671 = vunpack.c.l.b16 %v259
      %v672 = vunpack.c.l.b16 %v260
      %v673 = vunpack.c.l.b16 %v261
      %v674 = vunpack.c.l.b16 %v262
      %v675 = vunpack.c.l.b16 %v263
      %v676 = vunpack.c.l.b16 %v264
      %v677 = vunpack.c.l.b16 %v265
      %v678 = vunpack.c.l.b16 %v266
      %v679 = vunpack.c.l.b16 %v267
      %v680 = vunpack.c.l.b16 %v268
      %v681 = vunpack.c.l.b16 %v269
      %v682 = vunpack.c.l.b16 %v270
      %v683 = vunpack.c.l.b16 %v271
      %v684 = vunpack.c.l.b16 %v272
      %v685 = vunpack.c.l.b16 %v273
      %v686 = vunpack.c.l.b16 %v274
      %v687 = vunpack.c.l.b16 %v275
      %v688 = vunpack.c.l.b16 %v276
      %v689 = vunpack.c.l.b16 %v277
      %v690 = vunpack.c.l.b16 %v278
      %v691 = vunpack.c.l.b16 %v279
      %v692 = vunpack.c.l.b16 %v280
      %v693 = vunpack.c.l.b16 %v281
      %v694 = vunpack.c.l.b16 %v282
      %v695 = vunpack.c.l.b16 %v283
      %v696 = vunpack.c.l.b16 %v284
      %v697 = vunpack.c.l.b16 %v285
      %v698 = vunpack.c.l.b16 %v286
      %v699 = vunpack.c.l.b16 %v287
      %v700 = vunpack.c.l.b16 %v288
      %v701 = vunpack.c.l.b16 %v289
      %v702 = vunpack.c.l.b16 %v290
      %v703 = vunpack.c.l.b16 %v291
      %v704 = vunpack.c.l.b16 %v292
      %v705 = vunpack.c.l.b16 %v293
      %v706 = vunpack.c.l.b16 %v294
      %v707 = vunpack.c.l.b16 %v295
      %v708 = vunpack.c.l.b16 %v296
      %v709 = vunpack.c.l.b16 %v297
      %v710 = vunpack.c.l.b16 %v298
      %v711 = vunpack.c.l.b16 %v299
      %v712 = vunpack.c.l.b16 %v300
      %v713 = vunpack.c.l.b16 %v301
      %v714 = vunpack.c.l.b16 %v302
      %v715 = vunpack.c.l.b16 %v303
      %v716 = vunpack.c.l.b16 %v304
      %v717 = vunpack.c.l.b16 %v305
      %v718 = vunpack.c.l.b16 %v306
      %v719 = vunpack.c.l.b16 %v307
      %v720 = vunpack.c.l.b16 %v308
      %v721 = vunpack.c.l.b16 %v309
      %v722 = vunpack.c.l.b16 %v310
      %v723 = vunpack.c.l.b16 %v311
      %v724 = vunpack.c.l.b16 %v312
      %v725 = vunpack.c.l.b16 %v313
      %v726 = vunpack.c.l.b16 %v314
      %v727 = vunpack.c.l.b16 %v315
      %v728 = vunpack.c.l.b16 %v316
      %v729 = vunpack.c.l.b16 %v317
      %v730 = vunpack.c.l.b16 %v318
      %v731 = vunpack.c.l.b16 %v319
      %v732 = vunpack.c.l.b16 %v320
      %v733 = vunpack.c.l.b16 %v321
      %v734 = vunpack.c.l.b16 %v322
      %v735 = vunpack.c.l.b16 %v323
      %v736 = vpack.c.b16 %v593, %v592
      %v737 = vpack.c.b16 %v595, %v594
      %v738 = vpack.c.b16 %v597, %v596
      %v739 = vpack.c.b16 %v599, %v598
      %v740 = vpack.c.b16 %v601, %v600
      %v741 = vpack.c.b16 %v603, %v602
      %v742 = vpack.c.b16 %v605, %v604
      %v743 = vpack.c.b16 %v607, %v606
      %v744 = vpack.c.b16 %v609, %v608
      %v745 = vpack.c.b16 %v611, %v610
      %v746 = vpack.c.b16 %v613, %v612
      %v747 = vpack.c.b16 %v615, %v614
      %v748 = vpack.c.b16 %v617, %v616
      %v749 = vpack.c.b16 %v619, %v618
      %v750 = vpack.c.b16 %v621, %v620
      %v751 = vpack.c.b16 %v623, %v622
      %v752 = vpack.c.b16 %v625, %v624
      %v753 = vpack.c.b16 %v627, %v626
      %v754 = vpack.c.b16 %v629, %v628
      %v755 = vpack.c.b16 %v631, %v630
      %v756 = vpack.c.b16 %v633, %v632
      %v757 = vpack.c.b16 %v635, %v634
      %v758 = vpack.c.b16 %v637, %v636
      %v759 = vpack.c.b16 %v639, %v638
      %v760 = vpack.c.b16 %v641, %v640
      %v761 = vpack.c.b16 %v643, %v642
      %v762 = vpack.c.b16 %v645, %v644
      %v763 = vpack.c.b16 %v647, %v646
      %v764 = vpack.c.b16 %v649, %v648
      %v765 = vpack.c.b16 %v651, %v650
      %v766 = vpack.c.b16 %v653, %v652
      %v767 = vpack.c.b16 %v655, %v654
      %v768 = vpack.c.b16 %v657, %v656
      %v769 = vpack.c.b16 %v659, %v658
      %v770 = vpack.c.b16 %v661, %v660
      %v771 = vpack.c.b16 %v663, %v662
      %v772 = vpack.c.b16 %v665, %v664
      %v773 = vpack.c.b16 %v667, %v666
      %v774 = vpack.c.b16 %v669, %v668
      %v775 = vpack.c.b16 %v671, %v670
      %v776 = vpack.c.b16 %v673, %v672
      %v777 = vpack.c.b16 %v675, %v674
      %v778 = vpack.c.b16 %v677, %v676
      %v779 = vpack.c.b16 %v679, %v678
      %v780 = vpack.c.b16 %v681, %v680
      %v781 = vpack.c.b16 %v683, %v682
      %v782 = vpack.c.b16 %v685, %v684
      %v783 = vpack.c.b16 %v687, %v686
      %v784 = vpack.c.b16 %v689, %v688
      %v785 = vpack.c.b16 %v691, %v690
      %v786 = vpack.c.b16 %v693, %v692
      %v787 = vpack.c.b16 %v695, %v694
      %v788 = vpack.c.b16 %v697, %v696
      %v789 = vpack.c.b16 %v699, %v698
      %v790 = vpack.c.b16 %v701, %v700
      %v791 = vpack.c.b16 %v703, %v702
      %v792 = vpack.c.b16 %v705, %v704
      %v793 = vpack.c.b16 %v707, %v706
      %v794 = vpack.c.b16 %v709, %v708
      %v795 = vpack.c.b16 %v711, %v710
      %v796 = vpack.c.b16 %v713, %v712
      %v797 = vpack.c.b16 %v715, %v714
      %v798 = vpack.c.b16 %v717, %v716
      %v799 = vpack.c.b16 %v719, %v718
      %v800 = vpack.c.b16 %v721, %v720
      %v801 = vpack.c.b16 %v723, %v722
      %v802 = vpack.c.b16 %v725, %v724
      %v803 = vpack.c.b16 %v727, %v726
      %v804 = vpack.c.b16 %v729, %v728
      %v805 = vpack.c.b16 %v731, %v730
      %v806 = vpack.c.b16 %v733, %v732
      %v807 = vpack.c.b16 %v735, %v734
      %880 = vmatprep.subr.bf16.mxu0 0
      %881 = vmatpush1.bf16.msra.mxu0 %v736
      %882 = vmatprep.subr.bf16.mxu0 0
      %883 = vmatpush1.bf16.msra.mxu0 %v737
      %884 = vmatprep.subr.bf16.mxu0 0
      %885 = vmatpush1.bf16.msra.mxu0 %v738
      %886 = vmatprep.subr.bf16.mxu0 0
      %887 = vmatpush1.bf16.msra.mxu0 %v739
      %888 = vmatprep.subr.bf16.mxu0 0
      %889 = vmatpush1.bf16.msra.mxu0 %v740
      %890 = vmatprep.subr.bf16.mxu0 0
      %891 = vmatpush1.bf16.msra.mxu0 %v741
      %892 = vmatprep.subr.bf16.mxu0 0
      %893 = vmatpush1.bf16.msra.mxu0 %v742
      %894 = vmatprep.subr.bf16.mxu0 0
      %895 = vmatpush1.bf16.msra.mxu0 %v743
      %896 = vmatprep.subr.bf16.mxu0 0
      %897 = vmatpush1.bf16.msra.mxu0 %v744
      %898 = vmatprep.subr.bf16.mxu0 0
      %899 = vmatpush1.bf16.msra.mxu0 %v745
      %900 = vmatprep.subr.bf16.mxu0 0
      %901 = vmatpush1.bf16.msra.mxu0 %v746
      %902 = vmatprep.subr.bf16.mxu0 0
      %903 = vmatpush1.bf16.msra.mxu0 %v747
      %904 = vmatprep.subr.bf16.mxu0 0
      %905 = vmatpush1.bf16.msra.mxu0 %v748
      %906 = vmatprep.subr.bf16.mxu0 0
      %907 = vmatpush1.bf16.msra.mxu0 %v749
      %908 = vmatprep.subr.bf16.mxu0 0
      %909 = vmatpush1.bf16.msra.mxu0 %v750
      %910 = vmatprep.subr.bf16.mxu0 0
      %911 = vmatpush1.bf16.msra.mxu0 %v751
      %912 = vmatprep.mubr.bf16.mxu0 %v398
      %913 = vmatmul.mubr.bf16.gmra.mrb[0].mxu0 %v397
      %v914 = vpop.f32.mrb[0].mxu0
      %v915 = vadd.f32 %v446, %v914
      %v916 = vpop.f32.mrb[0].mxu0
      %v917 = vpop.f32.mrb[0].mxu0
      %v918 = vadd.f32 %v446, %v917
      %v919 = vpop.f32.mrb[0].mxu0
      %920 = vmatprep.mubr.bf16.mxu0 %v407
      %921 = vmatmul.mubr.bf16.gmra.mrb[0].mxu0 %v406
      %v922 = vpop.f32.mrb[0].mxu0
      %v923 = vadd.f32 %v446, %v922
      %v924 = vpop.f32.mrb[0].mxu0
      %v925 = vpop.f32.mrb[0].mxu0
      %v926 = vadd.f32 %v446, %v925
      %v927 = vpop.f32.mrb[0].mxu0
      %928 = vmatprep.mubr.bf16.mxu0 %v416
      %929 = vmatmul.mubr.bf16.gmra.mrb[0].mxu0 %v415
      %v930 = vpop.f32.mrb[0].mxu0
      %v931 = vadd.f32 %v446, %v930
      %v932 = vpop.f32.mrb[0].mxu0
      %v933 = vpop.f32.mrb[0].mxu0
      %v934 = vadd.f32 %v446, %v933
      %v935 = vpop.f32.mrb[0].mxu0
      %936 = vmatprep.mubr.bf16.mxu0 %v425
      %937 = vmatmul.mubr.bf16.gmra.mrb[0].mxu0 %v424
      %v938 = vpop.f32.mrb[0].mxu0
      %v939 = vadd.f32 %v446, %v938
      %v940 = vpop.f32.mrb[0].mxu0
      %v941 = vpop.f32.mrb[0].mxu0
      %v942 = vadd.f32 %v446, %v941
      %v943 = vpop.f32.mrb[0].mxu0
      %944 = vmatprep.mubr.bf16.mxu0 %v434
      %945 = vmatmul.mubr.bf16.gmra.mrb[0].mxu0 %v433
      %v946 = vpop.f32.mrb[0].mxu0
      %v947 = vadd.f32 %v446, %v946
      %v948 = vpop.f32.mrb[0].mxu0
      %v949 = vpop.f32.mrb[0].mxu0
      %v950 = vadd.f32 %v446, %v949
      %v951 = vpop.f32.mrb[0].mxu0
      %952 = vdwg.mxu0
      %953 = vmatprep.subr.bf16.mxu0 0
      %954 = vmatpush1.bf16.msra.mxu0 %v752
      %955 = vmatprep.subr.bf16.mxu0 0
      %956 = vmatpush1.bf16.msra.mxu0 %v753
      %957 = vmatprep.subr.bf16.mxu0 0
      %958 = vmatpush1.bf16.msra.mxu0 %v754
      %959 = vmatprep.subr.bf16.mxu0 0
      %960 = vmatpush1.bf16.msra.mxu0 %v755
      %961 = vmatprep.subr.bf16.mxu0 0
      %962 = vmatpush1.bf16.msra.mxu0 %v756
      %963 = vmatprep.subr.bf16.mxu0 0
      %964 = vmatpush1.bf16.msra.mxu0 %v757
      %965 = vmatprep.subr.bf16.mxu0 0
      %966 = vmatpush1.bf16.msra.mxu0 %v758
      %967 = vmatprep.subr.bf16.mxu0 0
      %968 = vmatpush1.bf16.msra.mxu0 %v759
      %969 = vmatprep.subr.bf16.mxu0 0
      %970 = vmatpush1.bf16.msra.mxu0 %v760
      %971 = vmatprep.subr.bf16.mxu0 0
      %972 = vmatpush1.bf16.msra.mxu0 %v761
      %973 = vmatprep.subr.bf16.mxu0 0
      %974 = vmatpush1.bf16.msra.mxu0 %v762
      %975 = vmatprep.subr.bf16.mxu0 0
      %976 = vmatpush1.bf16.msra.mxu0 %v763
      %977 = vmatprep.subr.bf16.mxu0 0
      %978 = vmatpush1.bf16.msra.mxu0 %v764
      %979 = vmatprep.subr.bf16.mxu0 0
      %980 = vmatpush1.bf16.msra.mxu0 %v765
      %981 = vmatprep.subr.bf16.mxu0 0
      %982 = vmatpush1.bf16.msra.mxu0 %v766
      %983 = vmatprep.subr.bf16.mxu0 0
      %984 = vmatpush1.bf16.msra.mxu0 %v767
      %985 = vmatprep.mubr.bf16.mxu0 %v400
      %986 = vmatmul.mubr.bf16.gmra.mrb[0].mxu0 %v399
      %v987 = vpop.f32.mrb[0].mxu0
      %v988 = vadd.f32 %v915, %v987
      %v989 = vpop.f32.mrb[0].mxu0
      %v990 = vpop.f32.mrb[0].mxu0
      %v991 = vadd.f32 %v918, %v990
      %v992 = vpop.f32.mrb[0].mxu0
      %993 = vmatprep.mubr.bf16.mxu0 %v409
      %994 = vmatmul.mubr.bf16.gmra.mrb[0].mxu0 %v408
      %v995 = vpop.f32.mrb[0].mxu0
      %v996 = vadd.f32 %v923, %v995
      %v997 = vpop.f32.mrb[0].mxu0
      %v998 = vpop.f32.mrb[0].mxu0
      %v999 = vadd.f32 %v926, %v998
      %v1000 = vpop.f32.mrb[0].mxu0
      %1001 = vmatprep.mubr.bf16.mxu0 %v418
      %1002 = vmatmul.mubr.bf16.gmra.mrb[0].mxu0 %v417
      %v1003 = vpop.f32.mrb[0].mxu0
      %v1004 = vadd.f32 %v931, %v1003
      %v1005 = vpop.f32.mrb[0].mxu0
      %v1006 = vpop.f32.mrb[0].mxu0
      %v1007 = vadd.f32 %v934, %v1006
      %v1008 = vpop.f32.mrb[0].mxu0
      %1009 = vmatprep.mubr.bf16.mxu0 %v427
      %1010 = vmatmul.mubr.bf16.gmra.mrb[0].mxu0 %v426
      %v1011 = vpop.f32.mrb[0].mxu0
      %v1012 = vadd.f32 %v939, %v1011
      %v1013 = vpop.f32.mrb[0].mxu0
      %v1014 = vpop.f32.mrb[0].mxu0
      %v1015 = vadd.f32 %v942, %v1014
      %v1016 = vpop.f32.mrb[0].mxu0
      %1017 = vmatprep.mubr.bf16.mxu0 %v436
      %1018 = vmatmul.mubr.bf16.gmra.mrb[0].mxu0 %v435
      %v1019 = vpop.f32.mrb[0].mxu0
      %v1020 = vadd.f32 %v947, %v1019
      %v1021 = vpop.f32.mrb[0].mxu0
      %v1022 = vpop.f32.mrb[0].mxu0
      %v1023 = vadd.f32 %v950, %v1022
      %v1024 = vpop.f32.mrb[0].mxu0
      %1025 = vdwg.mxu0
      %1026 = vmatprep.subr.bf16.mxu0 0
      %1027 = vmatpush1.bf16.msra.mxu0 %v768
      %1028 = vmatprep.subr.bf16.mxu0 0
      %1029 = vmatpush1.bf16.msra.mxu0 %v769
      %1030 = vmatprep.subr.bf16.mxu0 0
      %1031 = vmatpush1.bf16.msra.mxu0 %v770
      %1032 = vmatprep.subr.bf16.mxu0 0
      %1033 = vmatpush1.bf16.msra.mxu0 %v771
      %1034 = vmatprep.subr.bf16.mxu0 0
      %1035 = vmatpush1.bf16.msra.mxu0 %v772
      %1036 = vmatprep.subr.bf16.mxu0 0
      %1037 = vmatpush1.bf16.msra.mxu0 %v773
      %1038 = vmatprep.subr.bf16.mxu0 0
      %1039 = vmatpush1.bf16.msra.mxu0 %v774
      %1040 = vmatprep.subr.bf16.mxu0 0
      %1041 = vmatpush1.bf16.msra.mxu0 %v775
      %1042 = vmatprep.subr.bf16.mxu0 0
      %1043 = vmatpush1.bf16.msra.mxu0 %v776
      %1044 = vmatprep.subr.bf16.mxu0 0
      %1045 = vmatpush1.bf16.msra.mxu0 %v777
      %1046 = vmatprep.subr.bf16.mxu0 0
      %1047 = vmatpush1.bf16.msra.mxu0 %v778
      %1048 = vmatprep.subr.bf16.mxu0 0
      %1049 = vmatpush1.bf16.msra.mxu0 %v779
      %1050 = vmatprep.subr.bf16.mxu0 0
      %1051 = vmatpush1.bf16.msra.mxu0 %v780
      %1052 = vmatprep.subr.bf16.mxu0 0
      %1053 = vmatpush1.bf16.msra.mxu0 %v781
      %1054 = vmatprep.subr.bf16.mxu0 0
      %1055 = vmatpush1.bf16.msra.mxu0 %v782
      %1056 = vmatprep.subr.bf16.mxu0 0
      %1057 = vmatpush1.bf16.msra.mxu0 %v783
      %1058 = vmatprep.mubr.bf16.mxu0 %v402
      %1059 = vmatmul.mubr.bf16.gmra.mrb[0].mxu0 %v401
      %v1060 = vpop.f32.mrb[0].mxu0
      %v1061 = vadd.f32 %v988, %v1060
      %v1062 = vpop.f32.mrb[0].mxu0
      %v1063 = vpop.f32.mrb[0].mxu0
      %v1064 = vadd.f32 %v991, %v1063
      %v1065 = vpop.f32.mrb[0].mxu0
      %1066 = vmatprep.mubr.bf16.mxu0 %v411
      %1067 = vmatmul.mubr.bf16.gmra.mrb[0].mxu0 %v410
      %v1068 = vpop.f32.mrb[0].mxu0
      %v1069 = vadd.f32 %v996, %v1068
      %v1070 = vpop.f32.mrb[0].mxu0
      %v1071 = vpop.f32.mrb[0].mxu0
      %v1072 = vadd.f32 %v999, %v1071
      %v1073 = vpop.f32.mrb[0].mxu0
      %1074 = vmatprep.mubr.bf16.mxu0 %v420
      %1075 = vmatmul.mubr.bf16.gmra.mrb[0].mxu0 %v419
      %v1076 = vpop.f32.mrb[0].mxu0
      %v1077 = vadd.f32 %v1004, %v1076
      %v1078 = vpop.f32.mrb[0].mxu0
      %v1079 = vpop.f32.mrb[0].mxu0
      %v1080 = vadd.f32 %v1007, %v1079
      %v1081 = vpop.f32.mrb[0].mxu0
      %1082 = vmatprep.mubr.bf16.mxu0 %v429
      %1083 = vmatmul.mubr.bf16.gmra.mrb[0].mxu0 %v428
      %v1084 = vpop.f32.mrb[0].mxu0
      %v1085 = vadd.f32 %v1012, %v1084
      %v1086 = vpop.f32.mrb[0].mxu0
      %v1087 = vpop.f32.mrb[0].mxu0
      %v1088 = vadd.f32 %v1015, %v1087
      %v1089 = vpop.f32.mrb[0].mxu0
      %1090 = vmatprep.mubr.bf16.mxu0 %v438
      %1091 = vmatmul.mubr.bf16.gmra.mrb[0].mxu0 %v437
      %v1092 = vpop.f32.mrb[0].mxu0
      %v1093 = vadd.f32 %v1020, %v1092
      %v1094 = vpop.f32.mrb[0].mxu0
      %v1095 = vpop.f32.mrb[0].mxu0
      %v1096 = vadd.f32 %v1023, %v1095
      %v1097 = vpop.f32.mrb[0].mxu0
      %1098 = vdwg.mxu0
      %1099 = vmatprep.subr.bf16.mxu0 0
      %1100 = vmatpush1.bf16.msra.mxu0 %v784
      %1101 = vmatprep.subr.bf16.mxu0 0
      %1102 = vmatpush1.bf16.msra.mxu0 %v785
      %1103 = vmatprep.subr.bf16.mxu0 0
      %1104 = vmatpush1.bf16.msra.mxu0 %v786
      %1105 = vmatprep.subr.bf16.mxu0 0
      %1106 = vmatpush1.bf16.msra.mxu0 %v787
      %1107 = vmatprep.subr.bf16.mxu0 0
      %1108 = vmatpush1.bf16.msra.mxu0 %v788
      %1109 = vmatprep.subr.bf16.mxu0 0
      %1110 = vmatpush1.bf16.msra.mxu0 %v789
      %1111 = vmatprep.subr.bf16.mxu0 0
      %1112 = vmatpush1.bf16.msra.mxu0 %v790
      %1113 = vmatprep.subr.bf16.mxu0 0
      %1114 = vmatpush1.bf16.msra.mxu0 %v791
      %1115 = vmatprep.subr.bf16.mxu0 0
      %1116 = vmatpush1.bf16.msra.mxu0 %v792
      %1117 = vmatprep.subr.bf16.mxu0 0
      %1118 = vmatpush1.bf16.msra.mxu0 %v793
      %1119 = vmatprep.subr.bf16.mxu0 0
      %1120 = vmatpush1.bf16.msra.mxu0 %v794
      %1121 = vmatprep.subr.bf16.mxu0 0
      %1122 = vmatpush1.bf16.msra.mxu0 %v795
      %1123 = vmatprep.subr.bf16.mxu0 0
      %1124 = vmatpush1.bf16.msra.mxu0 %v796
      %1125 = vmatprep.subr.bf16.mxu0 0
      %1126 = vmatpush1.bf16.msra.mxu0 %v797
      %1127 = vmatprep.subr.bf16.mxu0 0
      %1128 = vmatpush1.bf16.msra.mxu0 %v798
      %1129 = vmatprep.subr.bf16.mxu0 0
      %1130 = vmatpush1.bf16.msra.mxu0 %v799
      %1131 = vmatprep.mubr.bf16.mxu0 %v404
      %1132 = vmatmul.mubr.bf16.gmra.mrb[0].mxu0 %v403
      %v1133 = vpop.f32.mrb[0].mxu0
      %v1134 = vadd.f32 %v1061, %v1133
      %v1135 = vpop.f32.mrb[0].mxu0
      %v1136 = vpop.f32.mrb[0].mxu0
      %v1137 = vadd.f32 %v1064, %v1136
      %v1138 = vpop.f32.mrb[0].mxu0
      %1139 = vmatprep.mubr.bf16.mxu0 %v413
      %1140 = vmatmul.mubr.bf16.gmra.mrb[0].mxu0 %v412
      %v1141 = vpop.f32.mrb[0].mxu0
      %v1142 = vadd.f32 %v1069, %v1141
      %v1143 = vpop.f32.mrb[0].mxu0
      %v1144 = vpop.f32.mrb[0].mxu0
      %v1145 = vadd.f32 %v1072, %v1144
      %v1146 = vpop.f32.mrb[0].mxu0
      %1147 = vmatprep.mubr.bf16.mxu0 %v422
      %1148 = vmatmul.mubr.bf16.gmra.mrb[0].mxu0 %v421
      %v1149 = vpop.f32.mrb[0].mxu0
      %v1150 = vadd.f32 %v1077, %v1149
      %v1151 = vpop.f32.mrb[0].mxu0
      %v1152 = vpop.f32.mrb[0].mxu0
      %v1153 = vadd.f32 %v1080, %v1152
      %v1154 = vpop.f32.mrb[0].mxu0
      %1155 = vmatprep.mubr.bf16.mxu0 %v431
      %1156 = vmatmul.mubr.bf16.gmra.mrb[0].mxu0 %v430
      %v1157 = vpop.f32.mrb[0].mxu0
      %v1158 = vadd.f32 %v1085, %v1157
      %v1159 = vpop.f32.mrb[0].mxu0
      %v1160 = vpop.f32.mrb[0].mxu0
      %v1161 = vadd.f32 %v1088, %v1160
      %v1162 = vpop.f32.mrb[0].mxu0
      %1163 = vmatprep.mubr.bf16.mxu0 %v440
      %1164 = vmatmul.mubr.bf16.gmra.mrb[0].mxu0 %v439
      %v1165 = vpop.f32.mrb[0].mxu0
      %v1166 = vadd.f32 %v1093, %v1165
      %v1167 = vpop.f32.mrb[0].mxu0
      %v1168 = vpop.f32.mrb[0].mxu0
      %v1169 = vadd.f32 %v1096, %v1168
      %v1170 = vpop.f32.mrb[0].mxu0
      %1171 = vdwg.mxu0
      %1172 = vmatprep.subr.bf16.mxu0 0
      %1173 = vmatpush1.bf16.msra.mxu0 %v800
      %1174 = vmatprep.subr.bf16.mxu0 0
      %1175 = vmatpush1.bf16.msra.mxu0 %v801
      %1176 = vmatprep.subr.bf16.mxu0 0
      %1177 = vmatpush1.bf16.msra.mxu0 %v802
      %1178 = vmatprep.subr.bf16.mxu0 0
      %1179 = vmatpush1.bf16.msra.mxu0 %v803
      %1180 = vmatprep.subr.bf16.mxu0 0
      %1181 = vmatpush1.bf16.msra.mxu0 %v804
      %1182 = vmatprep.subr.bf16.mxu0 0
      %1183 = vmatpush1.bf16.msra.mxu0 %v805
      %1184 = vmatprep.subr.bf16.mxu0 0
      %1185 = vmatpush1.bf16.msra.mxu0 %v806
      %1186 = vmatprep.subr.bf16.mxu0 0
      %1187 = vmatpush1.bf16.msra.mxu0 %v807
      %1188 = vmatprep.subr.bf16.mxu0 0
      %1189 = vmatpush1.bf16.msra.mxu0 0
      %1190 = vmatprep.subr.bf16.mxu0 0
      %1191 = vmatpush1.bf16.msra.mxu0 0
      %1192 = vmatprep.subr.bf16.mxu0 0
      %1193 = vmatpush1.bf16.msra.mxu0 0
      %1194 = vmatprep.subr.bf16.mxu0 0
      %1195 = vmatpush1.bf16.msra.mxu0 0
      %1196 = vmatprep.subr.bf16.mxu0 0
      %1197 = vmatpush1.bf16.msra.mxu0 0
      %1198 = vmatprep.subr.bf16.mxu0 0
      %1199 = vmatpush1.bf16.msra.mxu0 0
      %1200 = vmatprep.subr.bf16.mxu0 0
      %1201 = vmatpush1.bf16.msra.mxu0 0
      %1202 = vmatprep.subr.bf16.mxu0 0
      %1203 = vmatpush1.bf16.msra.mxu0 0
      %1204 = vmatprep.mubr.bf16.mxu0 0
      %1205 = vmatmul.mubr.bf16.gmra.mrb[0].mxu0 %v405
      %v1206 = vpop.f32.mrb[0].mxu0
      %v1207 = vadd.f32 %v1134, %v1206
      %v1208 = vpop.f32.mrb[0].mxu0
      %v1209 = vpop.f32.mrb[0].mxu0
      %v1210 = vadd.f32 %v1137, %v1209
      %v1211 = vpop.f32.mrb[0].mxu0
      %1212 = vmatprep.mubr.bf16.mxu0 0
      %1213 = vmatmul.mubr.bf16.gmra.mrb[0].mxu0 %v414
      %v1214 = vpop.f32.mrb[0].mxu0
      %v1215 = vadd.f32 %v1142, %v1214
      %v1216 = vpop.f32.mrb[0].mxu0
      %v1217 = vpop.f32.mrb[0].mxu0
      %v1218 = vadd.f32 %v1145, %v1217
      %v1219 = vpop.f32.mrb[0].mxu0
      %1220 = vmatprep.mubr.bf16.mxu0 0
      %1221 = vmatmul.mubr.bf16.gmra.mrb[0].mxu0 %v423
      %v1222 = vpop.f32.mrb[0].mxu0
      %v1223 = vadd.f32 %v1150, %v1222
      %v1224 = vpop.f32.mrb[0].mxu0
      %v1225 = vpop.f32.mrb[0].mxu0
      %v1226 = vadd.f32 %v1153, %v1225
      %v1227 = vpop.f32.mrb[0].mxu0
      %1228 = vmatprep.mubr.bf16.mxu0 0
      %1229 = vmatmul.mubr.bf16.gmra.mrb[0].mxu0 %v432
      %v1230 = vpop.f32.mrb[0].mxu0
      %v1231 = vadd.f32 %v1158, %v1230
      %v1232 = vpop.f32.mrb[0].mxu0
      %v1233 = vpop.f32.mrb[0].mxu0
      %v1234 = vadd.f32 %v1161, %v1233
      %v1235 = vpop.f32.mrb[0].mxu0
      %1236 = vmatprep.mubr.bf16.mxu0 0
      %1237 = vmatmul.mubr.bf16.gmra.mrb[0].mxu0 %v441
      %v1238 = vpop.f32.mrb[0].mxu0
      %v1239 = vadd.f32 %v1166, %v1238
      %v1240 = vpop.f32.mrb[0].mxu0
      %v1241 = vpop.f32.mrb[0].mxu0
      %v1242 = vadd.f32 %v1169, %v1241
      %v1243 = vpop.f32.mrb[0].mxu0
      %1244 = vdwg.mxu0
      %v1245 = vmax.f32 %v1207, 0.0
      %v1246 = vmax.f32 %v1210, 0.0
      %v1247 = vmax.f32 %v1215, 0.0
      %v1248 = vmax.f32 %v1218, 0.0
      %v1249 = vmax.f32 %v1223, 0.0
      %v1250 = vmax.f32 %v1226, 0.0
      %v1251 = vmax.f32 %v1231, 0.0
      %v1252 = vmax.f32 %v1234, 0.0
      %v1253 = vmax.f32 %v1239, 0.0
      %v1254 = vmax.f32 %v1242, 0.0
      %v1255 = vpack.c.bf16 %v1246, %v1245
      %v1256 = vpack.c.bf16 %v1248, %v1247
      %v1257 = vpack.c.bf16 %v1250, %v1249
      %v1258 = vpack.c.bf16 %v1252, %v1251
      %v1259 = vpack.c.bf16 %v1254, %v1253
      %v1265 = vunpack.c.l.b16 %v1255
      %v1266 = vunpack.c.h.b16 %v1255
      %v1267 = vunpack.c.l.b16 %v1256
      %v1268 = vunpack.c.h.b16 %v1256
      %v1269 = vunpack.c.l.b16 %v1257
      %v1270 = vunpack.c.h.b16 %v1257
      %v1271 = vunpack.c.l.b16 %v1258
      %v1272 = vunpack.c.h.b16 %v1258
      %v1273 = vunpack.c.l.b16 %v1259
      %v1274 = vunpack.c.h.b16 %v1259
      %v1275 = vpack.c.b16 %v1265, %v1265
      %v1276 = vpack.c.b16 %v1266, %v1266
      %v1277 = vpack.c.b16 %v1267, %v1267
      %v1278 = vpack.c.b16 %v1268, %v1268
      %v1279 = vpack.c.b16 %v1269, %v1269
      %v1280 = vpack.c.b16 %v1270, %v1270
      %v1281 = vpack.c.b16 %v1271, %v1271
      %v1282 = vpack.c.b16 %v1272, %v1272
      %v1283 = vpack.c.b16 %v1273, %v1273
      %v1284 = vpack.c.b16 %v1274, %v1274
      %1295 = vst [vmem:[%s177] sm:$0xf] %v1275
      %1296 = vst [vmem:[%s177 + $0x4] sm:$0xf] %v1276
      %1297 = vst [vmem:[%s177 + $0x8] sm:$0xf] %v1277
      %1298 = vst [vmem:[%s177 + $0xc] sm:$0xf] %v1278
      %1299 = vst [vmem:[%s177 + $0x10] sm:$0xf] %v1279
      %1300 = vst [vmem:[%s177 + $0x14] sm:$0xf] %v1280
      %1301 = vst [vmem:[%s177 + $0x18] sm:$0xf] %v1281
      %1302 = vst [vmem:[%s177 + $0x1c] sm:$0xf] %v1282
      %1303 = vst [vmem:[%s177 + $0x20] sm:$0xf] %v1283
      %1304 = vst [vmem:[%s177 + $0x24] sm:$0xf] %v1284
      %s1305 = scalar_lea.vmem %s170, 112
      %v1306 = vld [vmem:[%s1305] sm:$0xff]
      %v1307 = vld [vmem:[%s1305 + $0x8] sm:$0xff]
      %v1308 = vld [vmem:[%s1305 + $0x10] sm:$0xff]
      %v1309 = vld [vmem:[%s1305 + $0x18] sm:$0xff]
      %v1310 = vld [vmem:[%s1305 + $0x20] sm:$0xff]
      %v1311 = vld [vmem:[%s1305 + $0x28] sm:$0xff]
      %v1312 = vld [vmem:[%s1305 + $0x30] sm:$0xff]
      %v1313 = vld [vmem:[%s1305 + $0x38] sm:$0xff]
      %v1314 = vld [vmem:[%s1305 + $0x40] sm:$0xff]
      %v1315 = vld [vmem:[%s1305 + $0x48] sm:$0xff]
      %v1316 = vld [vmem:[%s1305 + $0x1] sm:$0xff]
      %v1317 = vld [vmem:[%s1305 + $0x9] sm:$0xff]
      %v1318 = vld [vmem:[%s1305 + $0x11] sm:$0xff]
      %v1319 = vld [vmem:[%s1305 + $0x19] sm:$0xff]
      %v1320 = vld [vmem:[%s1305 + $0x21] sm:$0xff]
      %v1321 = vld [vmem:[%s1305 + $0x29] sm:$0xff]
      %v1322 = vld [vmem:[%s1305 + $0x31] sm:$0xff]
      %v1323 = vld [vmem:[%s1305 + $0x39] sm:$0xff]
      %v1324 = vld [vmem:[%s1305 + $0x41] sm:$0xff]
      %v1325 = vld [vmem:[%s1305 + $0x49] sm:$0xff]
      %v1326 = vld [vmem:[%s1305 + $0x2] sm:$0xff]
      %v1327 = vld [vmem:[%s1305 + $0xa] sm:$0xff]
      %v1328 = vld [vmem:[%s1305 + $0x12] sm:$0xff]
      %v1329 = vld [vmem:[%s1305 + $0x1a] sm:$0xff]
      %v1330 = vld [vmem:[%s1305 + $0x22] sm:$0xff]
      %v1331 = vld [vmem:[%s1305 + $0x2a] sm:$0xff]
      %v1332 = vld [vmem:[%s1305 + $0x32] sm:$0xff]
      %v1333 = vld [vmem:[%s1305 + $0x3a] sm:$0xff]
      %v1334 = vld [vmem:[%s1305 + $0x42] sm:$0xff]
      %v1335 = vld [vmem:[%s1305 + $0x4a] sm:$0xff]
      %v1336 = vld [vmem:[%s1305 + $0x52] sm:$0xff]
      %v1337 = vld [vmem:[%s1305 + $0xb] sm:$0xff]
      %v1338 = vld [vmem:[%s1305 + $0x13] sm:$0xff]
      %v1339 = vld [vmem:[%s1305 + $0x1b] sm:$0xff]
      %v1340 = vld [vmem:[%s1305 + $0x23] sm:$0xff]
      %v1341 = vld [vmem:[%s1305 + $0x2b] sm:$0xff]
      %v1342 = vld [vmem:[%s1305 + $0x33] sm:$0xff]
      %v1343 = vld [vmem:[%s1305 + $0x3b] sm:$0xff]
      %v1344 = vld [vmem:[%s1305 + $0x43] sm:$0xff]
      %v1345 = vld [vmem:[%s1305 + $0x4b] sm:$0xff]
      %v1346 = vld [vmem:[%s1305 + $0x53] sm:$0xff]
      %v1347 = vld [vmem:[%s1305 + $0xc] sm:$0xff]
      %v1348 = vld [vmem:[%s1305 + $0x14] sm:$0xff]
      %v1349 = vld [vmem:[%s1305 + $0x1c] sm:$0xff]
      %v1350 = vld [vmem:[%s1305 + $0x24] sm:$0xff]
      %v1351 = vld [vmem:[%s1305 + $0x2c] sm:$0xff]
      %v1352 = vld [vmem:[%s1305 + $0x34] sm:$0xff]
      %v1353 = vld [vmem:[%s1305 + $0x3c] sm:$0xff]
      %v1354 = vld [vmem:[%s1305 + $0x44] sm:$0xff]
      %v1355 = vld [vmem:[%s1305 + $0x4c] sm:$0xff]
      %v1356 = vld [vmem:[%s1305 + $0x54] sm:$0xff]
      %v1357 = vld [vmem:[%s1305 + $0x5c] sm:$0xff]
      %v1358 = vld [vmem:[%s1305 + $0x15] sm:$0xff]
      %v1359 = vld [vmem:[%s1305 + $0x1d] sm:$0xff]
      %v1360 = vld [vmem:[%s1305 + $0x25] sm:$0xff]
      %v1361 = vld [vmem:[%s1305 + $0x2d] sm:$0xff]
      %v1362 = vld [vmem:[%s1305 + $0x35] sm:$0xff]
      %v1363 = vld [vmem:[%s1305 + $0x3d] sm:$0xff]
      %v1364 = vld [vmem:[%s1305 + $0x45] sm:$0xff]
      %v1365 = vld [vmem:[%s1305 + $0x4d] sm:$0xff]
      %v1366 = vld [vmem:[%s1305 + $0x55] sm:$0xff]
      %v1367 = vld [vmem:[%s1305 + $0x5d] sm:$0xff]
      %v1368 = vld [vmem:[%s1305 + $0x16] sm:$0xff]
      %v1369 = vld [vmem:[%s1305 + $0x1e] sm:$0xff]
      %v1370 = vld [vmem:[%s1305 + $0x26] sm:$0xff]
      %v1371 = vld [vmem:[%s1305 + $0x2e] sm:$0xff]
      %v1372 = vld [vmem:[%s1305 + $0x36] sm:$0xff]
      %v1373 = vld [vmem:[%s1305 + $0x3e] sm:$0xff]
      %v1374 = vld [vmem:[%s1305 + $0x46] sm:$0xff]
      %v1375 = vld [vmem:[%s1305 + $0x4e] sm:$0xff]
      %v1376 = vld [vmem:[%s1305 + $0x56] sm:$0xff]
      %v1377 = vld [vmem:[%s1305 + $0x5e] sm:$0xff]
      %v1378 = vpack.c.bf16 %v1307, %v1306
      %v1379 = vpack.c.bf16 %v1317, %v1316
      %v1380 = vpack.c.bf16 %v1327, %v1326
      %v1381 = vpack.c.bf16 %v1328, %v1327
      %v1382 = vpack.c.bf16 %v1338, %v1337
      %v1383 = vpack.c.bf16 %v1348, %v1347
      %v1384 = vpack.c.bf16 %v1349, %v1348
      %v1385 = vpack.c.bf16 %v1359, %v1358
      %v1386 = vpack.c.bf16 %v1369, %v1368
      %v1387 = vpack.c.bf16 %v1309, %v1308
      %v1388 = vpack.c.bf16 %v1319, %v1318
      %v1389 = vpack.c.bf16 %v1329, %v1328
      %v1390 = vpack.c.bf16 %v1330, %v1329
      %v1391 = vpack.c.bf16 %v1340, %v1339
      %v1392 = vpack.c.bf16 %v1350, %v1349
      %v1393 = vpack.c.bf16 %v1351, %v1350
      %v1394 = vpack.c.bf16 %v1361, %v1360
      %v1395 = vpack.c.bf16 %v1371, %v1370
      %v1396 = vpack.c.bf16 %v1311, %v1310
      %v1397 = vpack.c.bf16 %v1321, %v1320
      %v1398 = vpack.c.bf16 %v1331, %v1330
      %v1399 = vpack.c.bf16 %v1332, %v1331
      %v1400 = vpack.c.bf16 %v1342, %v1341
      %v1401 = vpack.c.bf16 %v1352, %v1351
      %v1402 = vpack.c.bf16 %v1353, %v1352
      %v1403 = vpack.c.bf16 %v1363, %v1362
      %v1404 = vpack.c.bf16 %v1373, %v1372
      %v1405 = vpack.c.bf16 %v1313, %v1312
      %v1406 = vpack.c.bf16 %v1323, %v1322
      %v1407 = vpack.c.bf16 %v1333, %v1332
      %v1408 = vpack.c.bf16 %v1334, %v1333
      %v1409 = vpack.c.bf16 %v1344, %v1343
      %v1410 = vpack.c.bf16 %v1354, %v1353
      %v1411 = vpack.c.bf16 %v1355, %v1354
      %v1412 = vpack.c.bf16 %v1365, %v1364
      %v1413 = vpack.c.bf16 %v1375, %v1374
      %v1414 = vpack.c.bf16 %v1315, %v1314
      %v1415 = vpack.c.bf16 %v1325, %v1324
      %v1416 = vpack.c.bf16 %v1335, %v1334
      %v1417 = vpack.c.bf16 %v1336, %v1335
      %v1418 = vpack.c.bf16 %v1346, %v1345
      %v1419 = vpack.c.bf16 %v1356, %v1355
      %v1420 = vpack.c.bf16 %v1357, %v1356
      %v1421 = vpack.c.bf16 %v1367, %v1366
      %v1422 = vpack.c.bf16 %v1377, %v1376
      %1423 = vmatprep.subr.bf16.mxu0 0
      %1424 = vmatpush1.bf16.msra.mxu0 %v736
      %1425 = vmatprep.subr.bf16.mxu0 0
      %1426 = vmatpush1.bf16.msra.mxu0 %v737
      %1427 = vmatprep.subr.bf16.mxu0 0
      %1428 = vmatpush1.bf16.msra.mxu0 %v738
      %1429 = vmatprep.subr.bf16.mxu0 0
      %1430 = vmatpush1.bf16.msra.mxu0 %v739
      %1431 = vmatprep.subr.bf16.mxu0 0
      %1432 = vmatpush1.bf16.msra.mxu0 %v740
      %1433 = vmatprep.subr.bf16.mxu0 0
      %1434 = vmatpush1.bf16.msra.mxu0 %v741
      %1435 = vmatprep.subr.bf16.mxu0 0
      %1436 = vmatpush1.bf16.msra.mxu0 %v742
      %1437 = vmatprep.subr.bf16.mxu0 0
      %1438 = vmatpush1.bf16.msra.mxu0 %v743
      %1439 = vmatprep.subr.bf16.mxu0 0
      %1440 = vmatpush1.bf16.msra.mxu0 %v744
      %1441 = vmatprep.subr.bf16.mxu0 0
      %1442 = vmatpush1.bf16.msra.mxu0 %v745
      %1443 = vmatprep.subr.bf16.mxu0 0
      %1444 = vmatpush1.bf16.msra.mxu0 %v746
      %1445 = vmatprep.subr.bf16.mxu0 0
      %1446 = vmatpush1.bf16.msra.mxu0 %v747
      %1447 = vmatprep.subr.bf16.mxu0 0
      %1448 = vmatpush1.bf16.msra.mxu0 %v748
      %1449 = vmatprep.subr.bf16.mxu0 0
      %1450 = vmatpush1.bf16.msra.mxu0 %v749
      %1451 = vmatprep.subr.bf16.mxu0 0
      %1452 = vmatpush1.bf16.msra.mxu0 %v750
      %1453 = vmatprep.subr.bf16.mxu0 0
      %1454 = vmatpush1.bf16.msra.mxu0 %v751
      %1455 = vmatprep.mubr.bf16.mxu0 %v1379
      %1456 = vmatmul.mubr.bf16.gmra.mrb[0].mxu0 %v1378
      %v1457 = vpop.f32.mrb[0].mxu0
      %v1458 = vadd.f32 %v446, %v1457
      %v1459 = vpop.f32.mrb[0].mxu0
      %v1460 = vpop.f32.mrb[0].mxu0
      %v1461 = vadd.f32 %v446, %v1460
      %v1462 = vpop.f32.mrb[0].mxu0
      %1463 = vmatprep.mubr.bf16.mxu0 %v1388
      %1464 = vmatmul.mubr.bf16.gmra.mrb[0].mxu0 %v1387
      %v1465 = vpop.f32.mrb[0].mxu0
      %v1466 = vadd.f32 %v446, %v1465
      %v1467 = vpop.f32.mrb[0].mxu0
      %v1468 = vpop.f32.mrb[0].mxu0
      %v1469 = vadd.f32 %v446, %v1468
      %v1470 = vpop.f32.mrb[0].mxu0
      %1471 = vmatprep.mubr.bf16.mxu0 %v1397
      %1472 = vmatmul.mubr.bf16.gmra.mrb[0].mxu0 %v1396
      %v1473 = vpop.f32.mrb[0].mxu0
      %v1474 = vadd.f32 %v446, %v1473
      %v1475 = vpop.f32.mrb[0].mxu0
      %v1476 = vpop.f32.mrb[0].mxu0
      %v1477 = vadd.f32 %v446, %v1476
      %v1478 = vpop.f32.mrb[0].mxu0
      %1479 = vmatprep.mubr.bf16.mxu0 %v1406
      %1480 = vmatmul.mubr.bf16.gmra.mrb[0].mxu0 %v1405
      %v1481 = vpop.f32.mrb[0].mxu0
      %v1482 = vadd.f32 %v446, %v1481
      %v1483 = vpop.f32.mrb[0].mxu0
      %v1484 = vpop.f32.mrb[0].mxu0
      %v1485 = vadd.f32 %v446, %v1484
      %v1486 = vpop.f32.mrb[0].mxu0
      %1487 = vmatprep.mubr.bf16.mxu0 %v1415
      %1488 = vmatmul.mubr.bf16.gmra.mrb[0].mxu0 %v1414
      %v1489 = vpop.f32.mrb[0].mxu0
      %v1490 = vadd.f32 %v446, %v1489
      %v1491 = vpop.f32.mrb[0].mxu0
      %v1492 = vpop.f32.mrb[0].mxu0
      %v1493 = vadd.f32 %v446, %v1492
      %v1494 = vpop.f32.mrb[0].mxu0
      %1495 = vdwg.mxu0
      %1496 = vmatprep.subr.bf16.mxu0 0
      %1497 = vmatpush1.bf16.msra.mxu0 %v752
      %1498 = vmatprep.subr.bf16.mxu0 0
      %1499 = vmatpush1.bf16.msra.mxu0 %v753
      %1500 = vmatprep.subr.bf16.mxu0 0
      %1501 = vmatpush1.bf16.msra.mxu0 %v754
      %1502 = vmatprep.subr.bf16.mxu0 0
      %1503 = vmatpush1.bf16.msra.mxu0 %v755
      %1504 = vmatprep.subr.bf16.mxu0 0
      %1505 = vmatpush1.bf16.msra.mxu0 %v756
      %1506 = vmatprep.subr.bf16.mxu0 0
      %1507 = vmatpush1.bf16.msra.mxu0 %v757
      %1508 = vmatprep.subr.bf16.mxu0 0
      %1509 = vmatpush1.bf16.msra.mxu0 %v758
      %1510 = vmatprep.subr.bf16.mxu0 0
      %1511 = vmatpush1.bf16.msra.mxu0 %v759
      %1512 = vmatprep.subr.bf16.mxu0 0
      %1513 = vmatpush1.bf16.msra.mxu0 %v760
      %1514 = vmatprep.subr.bf16.mxu0 0
      %1515 = vmatpush1.bf16.msra.mxu0 %v761
      %1516 = vmatprep.subr.bf16.mxu0 0
      %1517 = vmatpush1.bf16.msra.mxu0 %v762
      %1518 = vmatprep.subr.bf16.mxu0 0
      %1519 = vmatpush1.bf16.msra.mxu0 %v763
      %1520 = vmatprep.subr.bf16.mxu0 0
      %1521 = vmatpush1.bf16.msra.mxu0 %v764
      %1522 = vmatprep.subr.bf16.mxu0 0
      %1523 = vmatpush1.bf16.msra.mxu0 %v765
      %1524 = vmatprep.subr.bf16.mxu0 0
      %1525 = vmatpush1.bf16.msra.mxu0 %v766
      %1526 = vmatprep.subr.bf16.mxu0 0
      %1527 = vmatpush1.bf16.msra.mxu0 %v767
      %1528 = vmatprep.mubr.bf16.mxu0 %v1381
      %1529 = vmatmul.mubr.bf16.gmra.mrb[0].mxu0 %v1380
      %v1530 = vpop.f32.mrb[0].mxu0
      %v1531 = vadd.f32 %v1458, %v1530
      %v1532 = vpop.f32.mrb[0].mxu0
      %v1533 = vpop.f32.mrb[0].mxu0
      %v1534 = vadd.f32 %v1461, %v1533
      %v1535 = vpop.f32.mrb[0].mxu0
      %1536 = vmatprep.mubr.bf16.mxu0 %v1390
      %1537 = vmatmul.mubr.bf16.gmra.mrb[0].mxu0 %v1389
      %v1538 = vpop.f32.mrb[0].mxu0
      %v1539 = vadd.f32 %v1466, %v1538
      %v1540 = vpop.f32.mrb[0].mxu0
      %v1541 = vpop.f32.mrb[0].mxu0
      %v1542 = vadd.f32 %v1469, %v1541
      %v1543 = vpop.f32.mrb[0].mxu0
      %1544 = vmatprep.mubr.bf16.mxu0 %v1399
      %1545 = vmatmul.mubr.bf16.gmra.mrb[0].mxu0 %v1398
      %v1546 = vpop.f32.mrb[0].mxu0
      %v1547 = vadd.f32 %v1474, %v1546
      %v1548 = vpop.f32.mrb[0].mxu0
      %v1549 = vpop.f32.mrb[0].mxu0
      %v1550 = vadd.f32 %v1477, %v1549
      %v1551 = vpop.f32.mrb[0].mxu0
      %1552 = vmatprep.mubr.bf16.mxu0 %v1408
      %1553 = vmatmul.mubr.bf16.gmra.mrb[0].mxu0 %v1407
      %v1554 = vpop.f32.mrb[0].mxu0
      %v1555 = vadd.f32 %v1482, %v1554
      %v1556 = vpop.f32.mrb[0].mxu0
      %v1557 = vpop.f32.mrb[0].mxu0
      %v1558 = vadd.f32 %v1485, %v1557
      %v1559 = vpop.f32.mrb[0].mxu0
      %1560 = vmatprep.mubr.bf16.mxu0 %v1417
      %1561 = vmatmul.mubr.bf16.gmra.mrb[0].mxu0 %v1416
      %v1562 = vpop.f32.mrb[0].mxu0
      %v1563 = vadd.f32 %v1490, %v1562
      %v1564 = vpop.f32.mrb[0].mxu0
      %v1565 = vpop.f32.mrb[0].mxu0
      %v1566 = vadd.f32 %v1493, %v1565
      %v1567 = vpop.f32.mrb[0].mxu0
      %1568 = vdwg.mxu0
      %1569 = vmatprep.subr.bf16.mxu0 0
      %1570 = vmatpush1.bf16.msra.mxu0 %v768
      %1571 = vmatprep.subr.bf16.mxu0 0
      %1572 = vmatpush1.bf16.msra.mxu0 %v769
      %1573 = vmatprep.subr.bf16.mxu0 0
      %1574 = vmatpush1.bf16.msra.mxu0 %v770
      %1575 = vmatprep.subr.bf16.mxu0 0
      %1576 = vmatpush1.bf16.msra.mxu0 %v771
      %1577 = vmatprep.subr.bf16.mxu0 0
      %1578 = vmatpush1.bf16.msra.mxu0 %v772
      %1579 = vmatprep.subr.bf16.mxu0 0
      %1580 = vmatpush1.bf16.msra.mxu0 %v773
      %1581 = vmatprep.subr.bf16.mxu0 0
      %1582 = vmatpush1.bf16.msra.mxu0 %v774
      %1583 = vmatprep.subr.bf16.mxu0 0
      %1584 = vmatpush1.bf16.msra.mxu0 %v775
      %1585 = vmatprep.subr.bf16.mxu0 0
      %1586 = vmatpush1.bf16.msra.mxu0 %v776
      %1587 = vmatprep.subr.bf16.mxu0 0
      %1588 = vmatpush1.bf16.msra.mxu0 %v777
      %1589 = vmatprep.subr.bf16.mxu0 0
      %1590 = vmatpush1.bf16.msra.mxu0 %v778
      %1591 = vmatprep.subr.bf16.mxu0 0
      %1592 = vmatpush1.bf16.msra.mxu0 %v779
      %1593 = vmatprep.subr.bf16.mxu0 0
      %1594 = vmatpush1.bf16.msra.mxu0 %v780
      %1595 = vmatprep.subr.bf16.mxu0 0
      %1596 = vmatpush1.bf16.msra.mxu0 %v781
      %1597 = vmatprep.subr.bf16.mxu0 0
      %1598 = vmatpush1.bf16.msra.mxu0 %v782
      %1599 = vmatprep.subr.bf16.mxu0 0
      %1600 = vmatpush1.bf16.msra.mxu0 %v783
      %1601 = vmatprep.mubr.bf16.mxu0 %v1383
      %1602 = vmatmul.mubr.bf16.gmra.mrb[0].mxu0 %v1382
      %v1603 = vpop.f32.mrb[0].mxu0
      %v1604 = vadd.f32 %v1531, %v1603
      %v1605 = vpop.f32.mrb[0].mxu0
      %v1606 = vpop.f32.mrb[0].mxu0
      %v1607 = vadd.f32 %v1534, %v1606
      %v1608 = vpop.f32.mrb[0].mxu0
      %1609 = vmatprep.mubr.bf16.mxu0 %v1392
      %1610 = vmatmul.mubr.bf16.gmra.mrb[0].mxu0 %v1391
      %v1611 = vpop.f32.mrb[0].mxu0
      %v1612 = vadd.f32 %v1539, %v1611
      %v1613 = vpop.f32.mrb[0].mxu0
      %v1614 = vpop.f32.mrb[0].mxu0
      %v1615 = vadd.f32 %v1542, %v1614
      %v1616 = vpop.f32.mrb[0].mxu0
      %1617 = vmatprep.mubr.bf16.mxu0 %v1401
      %1618 = vmatmul.mubr.bf16.gmra.mrb[0].mxu0 %v1400
      %v1619 = vpop.f32.mrb[0].mxu0
      %v1620 = vadd.f32 %v1547, %v1619
      %v1621 = vpop.f32.mrb[0].mxu0
      %v1622 = vpop.f32.mrb[0].mxu0
      %v1623 = vadd.f32 %v1550, %v1622
      %v1624 = vpop.f32.mrb[0].mxu0
      %1625 = vmatprep.mubr.bf16.mxu0 %v1410
      %1626 = vmatmul.mubr.bf16.gmra.mrb[0].mxu0 %v1409
      %v1627 = vpop.f32.mrb[0].mxu0
      %v1628 = vadd.f32 %v1555, %v1627
      %v1629 = vpop.f32.mrb[0].mxu0
      %v1630 = vpop.f32.mrb[0].mxu0
      %v1631 = vadd.f32 %v1558, %v1630
      %v1632 = vpop.f32.mrb[0].mxu0
      %1633 = vmatprep.mubr.bf16.mxu0 %v1419
      %1634 = vmatmul.mubr.bf16.gmra.mrb[0].mxu0 %v1418
      %v1635 = vpop.f32.mrb[0].mxu0
      %v1636 = vadd.f32 %v1563, %v1635
      %v1637 = vpop.f32.mrb[0].mxu0
      %v1638 = vpop.f32.mrb[0].mxu0
      %v1639 = vadd.f32 %v1566, %v1638
      %v1640 = vpop.f32.mrb[0].mxu0
      %1641 = vdwg.mxu0
      %1642 = vmatprep.subr.bf16.mxu0 0
      %1643 = vmatpush1.bf16.msra.mxu0 %v784
      %1644 = vmatprep.subr.bf16.mxu0 0
      %1645 = vmatpush1.bf16.msra.mxu0 %v785
      %1646 = vmatprep.subr.bf16.mxu0 0
      %1647 = vmatpush1.bf16.msra.mxu0 %v786
      %1648 = vmatprep.subr.bf16.mxu0 0
      %1649 = vmatpush1.bf16.msra.mxu0 %v787
      %1650 = vmatprep.subr.bf16.mxu0 0
      %1651 = vmatpush1.bf16.msra.mxu0 %v788
      %1652 = vmatprep.subr.bf16.mxu0 0
      %1653 = vmatpush1.bf16.msra.mxu0 %v789
      %1654 = vmatprep.subr.bf16.mxu0 0
      %1655 = vmatpush1.bf16.msra.mxu0 %v790
      %1656 = vmatprep.subr.bf16.mxu0 0
      %1657 = vmatpush1.bf16.msra.mxu0 %v791
      %1658 = vmatprep.subr.bf16.mxu0 0
      %1659 = vmatpush1.bf16.msra.mxu0 %v792
      %1660 = vmatprep.subr.bf16.mxu0 0
      %1661 = vmatpush1.bf16.msra.mxu0 %v793
      %1662 = vmatprep.subr.bf16.mxu0 0
      %1663 = vmatpush1.bf16.msra.mxu0 %v794
      %1664 = vmatprep.subr.bf16.mxu0 0
      %1665 = vmatpush1.bf16.msra.mxu0 %v795
      %1666 = vmatprep.subr.bf16.mxu0 0
      %1667 = vmatpush1.bf16.msra.mxu0 %v796
      %1668 = vmatprep.subr.bf16.mxu0 0
      %1669 = vmatpush1.bf16.msra.mxu0 %v797
      %1670 = vmatprep.subr.bf16.mxu0 0
      %1671 = vmatpush1.bf16.msra.mxu0 %v798
      %1672 = vmatprep.subr.bf16.mxu0 0
      %1673 = vmatpush1.bf16.msra.mxu0 %v799
      %1674 = vmatprep.mubr.bf16.mxu0 %v1385
      %1675 = vmatmul.mubr.bf16.gmra.mrb[0].mxu0 %v1384
      %v1676 = vpop.f32.mrb[0].mxu0
      %v1677 = vadd.f32 %v1604, %v1676
      %v1678 = vpop.f32.mrb[0].mxu0
      %v1679 = vpop.f32.mrb[0].mxu0
      %v1680 = vadd.f32 %v1607, %v1679
      %v1681 = vpop.f32.mrb[0].mxu0
      %1682 = vmatprep.mubr.bf16.mxu0 %v1394
      %1683 = vmatmul.mubr.bf16.gmra.mrb[0].mxu0 %v1393
      %v1684 = vpop.f32.mrb[0].mxu0
      %v1685 = vadd.f32 %v1612, %v1684
      %v1686 = vpop.f32.mrb[0].mxu0
      %v1687 = vpop.f32.mrb[0].mxu0
      %v1688 = vadd.f32 %v1615, %v1687
      %v1689 = vpop.f32.mrb[0].mxu0
      %1690 = vmatprep.mubr.bf16.mxu0 %v1403
      %1691 = vmatmul.mubr.bf16.gmra.mrb[0].mxu0 %v1402
      %v1692 = vpop.f32.mrb[0].mxu0
      %v1693 = vadd.f32 %v1620, %v1692
      %v1694 = vpop.f32.mrb[0].mxu0
      %v1695 = vpop.f32.mrb[0].mxu0
      %v1696 = vadd.f32 %v1623, %v1695
      %v1697 = vpop.f32.mrb[0].mxu0
      %1698 = vmatprep.mubr.bf16.mxu0 %v1412
      %1699 = vmatmul.mubr.bf16.gmra.mrb[0].mxu0 %v1411
      %v1700 = vpop.f32.mrb[0].mxu0
      %v1701 = vadd.f32 %v1628, %v1700
      %v1702 = vpop.f32.mrb[0].mxu0
      %v1703 = vpop.f32.mrb[0].mxu0
      %v1704 = vadd.f32 %v1631, %v1703
      %v1705 = vpop.f32.mrb[0].mxu0
      %1706 = vmatprep.mubr.bf16.mxu0 %v1421
      %1707 = vmatmul.mubr.bf16.gmra.mrb[0].mxu0 %v1420
      %v1708 = vpop.f32.mrb[0].mxu0
      %v1709 = vadd.f32 %v1636, %v1708
      %v1710 = vpop.f32.mrb[0].mxu0
      %v1711 = vpop.f32.mrb[0].mxu0
      %v1712 = vadd.f32 %v1639, %v1711
      %v1713 = vpop.f32.mrb[0].mxu0
      %1714 = vdwg.mxu0
      %1715 = vmatprep.subr.bf16.mxu0 0
      %1716 = vmatpush1.bf16.msra.mxu0 %v800
      %1717 = vmatprep.subr.bf16.mxu0 0
      %1718 = vmatpush1.bf16.msra.mxu0 %v801
      %1719 = vmatprep.subr.bf16.mxu0 0
      %1720 = vmatpush1.bf16.msra.mxu0 %v802
      %1721 = vmatprep.subr.bf16.mxu0 0
      %1722 = vmatpush1.bf16.msra.mxu0 %v803
      %1723 = vmatprep.subr.bf16.mxu0 0
      %1724 = vmatpush1.bf16.msra.mxu0 %v804
      %1725 = vmatprep.subr.bf16.mxu0 0
      %1726 = vmatpush1.bf16.msra.mxu0 %v805
      %1727 = vmatprep.subr.bf16.mxu0 0
      %1728 = vmatpush1.bf16.msra.mxu0 %v806
      %1729 = vmatprep.subr.bf16.mxu0 0
      %1730 = vmatpush1.bf16.msra.mxu0 %v807
      %1731 = vmatprep.subr.bf16.mxu0 0
      %1732 = vmatpush1.bf16.msra.mxu0 0
      %1733 = vmatprep.subr.bf16.mxu0 0
      %1734 = vmatpush1.bf16.msra.mxu0 0
      %1735 = vmatprep.subr.bf16.mxu0 0
      %1736 = vmatpush1.bf16.msra.mxu0 0
      %1737 = vmatprep.subr.bf16.mxu0 0
      %1738 = vmatpush1.bf16.msra.mxu0 0
      %1739 = vmatprep.subr.bf16.mxu0 0
      %1740 = vmatpush1.bf16.msra.mxu0 0
      %1741 = vmatprep.subr.bf16.mxu0 0
      %1742 = vmatpush1.bf16.msra.mxu0 0
      %1743 = vmatprep.subr.bf16.mxu0 0
      %1744 = vmatpush1.bf16.msra.mxu0 0
      %1745 = vmatprep.subr.bf16.mxu0 0
      %1746 = vmatpush1.bf16.msra.mxu0 0
      %1747 = vmatprep.mubr.bf16.mxu0 0
      %1748 = vmatmul.mubr.bf16.gmra.mrb[0].mxu0 %v1386
      %v1749 = vpop.f32.mrb[0].mxu0
      %v1750 = vadd.f32 %v1677, %v1749
      %v1751 = vpop.f32.mrb[0].mxu0
      %v1752 = vpop.f32.mrb[0].mxu0
      %v1753 = vadd.f32 %v1680, %v1752
      %v1754 = vpop.f32.mrb[0].mxu0
      %1755 = vmatprep.mubr.bf16.mxu0 0
      %1756 = vmatmul.mubr.bf16.gmra.mrb[0].mxu0 %v1395
      %v1757 = vpop.f32.mrb[0].mxu0
      %v1758 = vadd.f32 %v1685, %v1757
      %v1759 = vpop.f32.mrb[0].mxu0
      %v1760 = vpop.f32.mrb[0].mxu0
      %v1761 = vadd.f32 %v1688, %v1760
      %v1762 = vpop.f32.mrb[0].mxu0
      %1763 = vmatprep.mubr.bf16.mxu0 0
      %1764 = vmatmul.mubr.bf16.gmra.mrb[0].mxu0 %v1404
      %v1765 = vpop.f32.mrb[0].mxu0
      %v1766 = vadd.f32 %v1693, %v1765
      %v1767 = vpop.f32.mrb[0].mxu0
      %v1768 = vpop.f32.mrb[0].mxu0
      %v1769 = vadd.f32 %v1696, %v1768
      %v1770 = vpop.f32.mrb[0].mxu0
      %1771 = vmatprep.mubr.bf16.mxu0 0
      %1772 = vmatmul.mubr.bf16.gmra.mrb[0].mxu0 %v1413
      %v1773 = vpop.f32.mrb[0].mxu0
      %v1774 = vadd.f32 %v1701, %v1773
      %v1775 = vpop.f32.mrb[0].mxu0
      %v1776 = vpop.f32.mrb[0].mxu0
      %v1777 = vadd.f32 %v1704, %v1776
      %v1778 = vpop.f32.mrb[0].mxu0
      %1779 = vmatprep.mubr.bf16.mxu0 0
      %1780 = vmatmul.mubr.bf16.gmra.mrb[0].mxu0 %v1422
      %v1781 = vpop.f32.mrb[0].mxu0
      %v1782 = vadd.f32 %v1709, %v1781
      %v1783 = vpop.f32.mrb[0].mxu0
      %v1784 = vpop.f32.mrb[0].mxu0
      %v1785 = vadd.f32 %v1712, %v1784
      %v1786 = vpop.f32.mrb[0].mxu0
      %1787 = vdwg.mxu0
      %v1788 = vmax.f32 %v1750, 0.0
      %v1789 = vmax.f32 %v1753, 0.0
      %v1790 = vmax.f32 %v1758, 0.0
      %v1791 = vmax.f32 %v1761, 0.0
      %v1792 = vmax.f32 %v1766, 0.0
      %v1793 = vmax.f32 %v1769, 0.0
      %v1794 = vmax.f32 %v1774, 0.0
      %v1795 = vmax.f32 %v1777, 0.0
      %v1796 = vmax.f32 %v1782, 0.0
      %v1797 = vmax.f32 %v1785, 0.0
      %v1798 = vpack.c.bf16 %v1789, %v1788
      %v1799 = vpack.c.bf16 %v1791, %v1790
      %v1800 = vpack.c.bf16 %v1793, %v1792
      %v1801 = vpack.c.bf16 %v1795, %v1794
      %v1802 = vpack.c.bf16 %v1797, %v1796
      %v1808 = vunpack.c.l.b16 %v1798
      %v1809 = vunpack.c.h.b16 %v1798
      %v1810 = vunpack.c.l.b16 %v1799
      %v1811 = vunpack.c.h.b16 %v1799
      %v1812 = vunpack.c.l.b16 %v1800
      %v1813 = vunpack.c.h.b16 %v1800
      %v1814 = vunpack.c.l.b16 %v1801
      %v1815 = vunpack.c.h.b16 %v1801
      %v1816 = vunpack.c.l.b16 %v1802
      %v1817 = vunpack.c.h.b16 %v1802
      %v1818 = vpack.c.b16 %v1808, %v1808
      %v1819 = vpack.c.b16 %v1809, %v1809
      %v1820 = vpack.c.b16 %v1810, %v1810
      %v1821 = vpack.c.b16 %v1811, %v1811
      %v1822 = vpack.c.b16 %v1812, %v1812
      %v1823 = vpack.c.b16 %v1813, %v1813
      %v1824 = vpack.c.b16 %v1814, %v1814
      %v1825 = vpack.c.b16 %v1815, %v1815
      %v1826 = vpack.c.b16 %v1816, %v1816
      %v1827 = vpack.c.b16 %v1817, %v1817
      %s1838 = scalar_lea.vmem %s177, 40
      %1839 = vst [vmem:[%s1838] sm:$0xf] %v1818
      %1840 = vst [vmem:[%s1838 + $0x4] sm:$0xf] %v1819
      %1841 = vst [vmem:[%s1838 + $0x8] sm:$0xf] %v1820
      %1842 = vst [vmem:[%s1838 + $0xc] sm:$0xf] %v1821
      %1843 = vst [vmem:[%s1838 + $0x10] sm:$0xf] %v1822
      %1844 = vst [vmem:[%s1838 + $0x14] sm:$0xf] %v1823
      %1845 = vst [vmem:[%s1838 + $0x18] sm:$0xf] %v1824
      %1846 = vst [vmem:[%s1838 + $0x1c] sm:$0xf] %v1825
      %1847 = vst [vmem:[%s1838 + $0x20] sm:$0xf] %v1826
      %1848 = vst [vmem:[%s1838 + $0x24] sm:$0xf] %v1827
      %s1849 = scalar_lea.vmem %s170, 224
      %v1850 = vld [vmem:[%s1849] sm:$0xff]
      %v1851 = vld [vmem:[%s1849 + $0x8] sm:$0xff]
      %v1852 = vld [vmem:[%s1849 + $0x10] sm:$0xff]
      %v1853 = vld [vmem:[%s1849 + $0x18] sm:$0xff]
      %v1854 = vld [vmem:[%s1849 + $0x20] sm:$0xff]
      %v1855 = vld [vmem:[%s1849 + $0x28] sm:$0xff]
      %v1856 = vld [vmem:[%s1849 + $0x30] sm:$0xff]
      %v1857 = vld [vmem:[%s1849 + $0x38] sm:$0xff]
      %v1858 = vld [vmem:[%s1849 + $0x40] sm:$0xff]
      %v1859 = vld [vmem:[%s1849 + $0x48] sm:$0xff]
      %v1860 = vld [vmem:[%s1849 + $0x1] sm:$0xff]
      %v1861 = vld [vmem:[%s1849 + $0x9] sm:$0xff]
      %v1862 = vld [vmem:[%s1849 + $0x11] sm:$0xff]
      %v1863 = vld [vmem:[%s1849 + $0x19] sm:$0xff]
      %v1864 = vld [vmem:[%s1849 + $0x21] sm:$0xff]
      %v1865 = vld [vmem:[%s1849 + $0x29] sm:$0xff]
      %v1866 = vld [vmem:[%s1849 + $0x31] sm:$0xff]
      %v1867 = vld [vmem:[%s1849 + $0x39] sm:$0xff]
      %v1868 = vld [vmem:[%s1849 + $0x41] sm:$0xff]
      %v1869 = vld [vmem:[%s1849 + $0x49] sm:$0xff]
      %v1870 = vld [vmem:[%s1849 + $0x2] sm:$0xff]
      %v1871 = vld [vmem:[%s1849 + $0xa] sm:$0xff]
      %v1872 = vld [vmem:[%s1849 + $0x12] sm:$0xff]
      %v1873 = vld [vmem:[%s1849 + $0x1a] sm:$0xff]
      %v1874 = vld [vmem:[%s1849 + $0x22] sm:$0xff]
      %v1875 = vld [vmem:[%s1849 + $0x2a] sm:$0xff]
      %v1876 = vld [vmem:[%s1849 + $0x32] sm:$0xff]
      %v1877 = vld [vmem:[%s1849 + $0x3a] sm:$0xff]
      %v1878 = vld [vmem:[%s1849 + $0x42] sm:$0xff]
      %v1879 = vld [vmem:[%s1849 + $0x4a] sm:$0xff]
      %v1880 = vld [vmem:[%s1849 + $0x52] sm:$0xff]
      %v1881 = vld [vmem:[%s1849 + $0xb] sm:$0xff]
      %v1882 = vld [vmem:[%s1849 + $0x13] sm:$0xff]
      %v1883 = vld [vmem:[%s1849 + $0x1b] sm:$0xff]
      %v1884 = vld [vmem:[%s1849 + $0x23] sm:$0xff]
      %v1885 = vld [vmem:[%s1849 + $0x2b] sm:$0xff]
      %v1886 = vld [vmem:[%s1849 + $0x33] sm:$0xff]
      %v1887 = vld [vmem:[%s1849 + $0x3b] sm:$0xff]
      %v1888 = vld [vmem:[%s1849 + $0x43] sm:$0xff]
      %v1889 = vld [vmem:[%s1849 + $0x4b] sm:$0xff]
      %v1890 = vld [vmem:[%s1849 + $0x53] sm:$0xff]
      %v1891 = vld [vmem:[%s1849 + $0xc] sm:$0xff]
      %v1892 = vld [vmem:[%s1849 + $0x14] sm:$0xff]
      %v1893 = vld [vmem:[%s1849 + $0x1c] sm:$0xff]
      %v1894 = vld [vmem:[%s1849 + $0x24] sm:$0xff]
      %v1895 = vld [vmem:[%s1849 + $0x2c] sm:$0xff]
      %v1896 = vld [vmem:[%s1849 + $0x34] sm:$0xff]
      %v1897 = vld [vmem:[%s1849 + $0x3c] sm:$0xff]
      %v1898 = vld [vmem:[%s1849 + $0x44] sm:$0xff]
      %v1899 = vld [vmem:[%s1849 + $0x4c] sm:$0xff]
      %v1900 = vld [vmem:[%s1849 + $0x54] sm:$0xff]
      %v1901 = vld [vmem:[%s1849 + $0x5c] sm:$0xff]
      %v1902 = vld [vmem:[%s1849 + $0x15] sm:$0xff]
      %v1903 = vld [vmem:[%s1849 + $0x1d] sm:$0xff]
      %v1904 = vld [vmem:[%s1849 + $0x25] sm:$0xff]
      %v1905 = vld [vmem:[%s1849 + $0x2d] sm:$0xff]
      %v1906 = vld [vmem:[%s1849 + $0x35] sm:$0xff]
      %v1907 = vld [vmem:[%s1849 + $0x3d] sm:$0xff]
      %v1908 = vld [vmem:[%s1849 + $0x45] sm:$0xff]
      %v1909 = vld [vmem:[%s1849 + $0x4d] sm:$0xff]
      %v1910 = vld [vmem:[%s1849 + $0x55] sm:$0xff]
      %v1911 = vld [vmem:[%s1849 + $0x5d] sm:$0xff]
      %v1912 = vld [vmem:[%s1849 + $0x16] sm:$0xff]
      %v1913 = vld [vmem:[%s1849 + $0x1e] sm:$0xff]
      %v1914 = vld [vmem:[%s1849 + $0x26] sm:$0xff]
      %v1915 = vld [vmem:[%s1849 + $0x2e] sm:$0xff]
      %v1916 = vld [vmem:[%s1849 + $0x36] sm:$0xff]
      %v1917 = vld [vmem:[%s1849 + $0x3e] sm:$0xff]
      %v1918 = vld [vmem:[%s1849 + $0x46] sm:$0xff]
      %v1919 = vld [vmem:[%s1849 + $0x4e] sm:$0xff]
      %v1920 = vld [vmem:[%s1849 + $0x56] sm:$0xff]
      %v1921 = vld [vmem:[%s1849 + $0x5e] sm:$0xff]
      %v1922 = vpack.c.bf16 %v1851, %v1850
      %v1923 = vpack.c.bf16 %v1861, %v1860
      %v1924 = vpack.c.bf16 %v1871, %v1870
      %v1925 = vpack.c.bf16 %v1872, %v1871
      %v1926 = vpack.c.bf16 %v1882, %v1881
      %v1927 = vpack.c.bf16 %v1892, %v1891
      %v1928 = vpack.c.bf16 %v1893, %v1892
      %v1929 = vpack.c.bf16 %v1903, %v1902
      %v1930 = vpack.c.bf16 %v1913, %v1912
      %v1931 = vpack.c.bf16 %v1853, %v1852
      %v1932 = vpack.c.bf16 %v1863, %v1862
      %v1933 = vpack.c.bf16 %v1873, %v1872
      %v1934 = vpack.c.bf16 %v1874, %v1873
      %v1935 = vpack.c.bf16 %v1884, %v1883
      %v1936 = vpack.c.bf16 %v1894, %v1893
      %v1937 = vpack.c.bf16 %v1895, %v1894
      %v1938 = vpack.c.bf16 %v1905, %v1904
      %v1939 = vpack.c.bf16 %v1915, %v1914
      %v1940 = vpack.c.bf16 %v1855, %v1854
      %v1941 = vpack.c.bf16 %v1865, %v1864
      %v1942 = vpack.c.bf16 %v1875, %v1874
      %v1943 = vpack.c.bf16 %v1876, %v1875
      %v1944 = vpack.c.bf16 %v1886, %v1885
      %v1945 = vpack.c.bf16 %v1896, %v1895
      %v1946 = vpack.c.bf16 %v1897, %v1896
      %v1947 = vpack.c.bf16 %v1907, %v1906
      %v1948 = vpack.c.bf16 %v1917, %v1916
      %v1949 = vpack.c.bf16 %v1857, %v1856
      %v1950 = vpack.c.bf16 %v1867, %v1866
      %v1951 = vpack.c.bf16 %v1877, %v1876
      %v1952 = vpack.c.bf16 %v1878, %v1877
      %v1953 = vpack.c.bf16 %v1888, %v1887
      %v1954 = vpack.c.bf16 %v1898, %v1897
      %v1955 = vpack.c.bf16 %v1899, %v1898
      %v1956 = vpack.c.bf16 %v1909, %v1908
      %v1957 = vpack.c.bf16 %v1919, %v1918
      %v1958 = vpack.c.bf16 %v1859, %v1858
      %v1959 = vpack.c.bf16 %v1869, %v1868
      %v1960 = vpack.c.bf16 %v1879, %v1878
      %v1961 = vpack.c.bf16 %v1880, %v1879
      %v1962 = vpack.c.bf16 %v1890, %v1889
      %v1963 = vpack.c.bf16 %v1900, %v1899
      %v1964 = vpack.c.bf16 %v1901, %v1900
      %v1965 = vpack.c.bf16 %v1911, %v1910
      %v1966 = vpack.c.bf16 %v1921, %v1920
      %1967 = vmatprep.subr.bf16.mxu0 0
      %1968 = vmatpush1.bf16.msra.mxu0 %v736
      %1969 = vmatprep.subr.bf16.mxu0 0
      %1970 = vmatpush1.bf16.msra.mxu0 %v737
      %1971 = vmatprep.subr.bf16.mxu0 0
      %1972 = vmatpush1.bf16.msra.mxu0 %v738
      %1973 = vmatprep.subr.bf16.mxu0 0
      %1974 = vmatpush1.bf16.msra.mxu0 %v739
      %1975 = vmatprep.subr.bf16.mxu0 0
      %1976 = vmatpush1.bf16.msra.mxu0 %v740
      %1977 = vmatprep.subr.bf16.mxu0 0
      %1978 = vmatpush1.bf16.msra.mxu0 %v741
      %1979 = vmatprep.subr.bf16.mxu0 0
      %1980 = vmatpush1.bf16.msra.mxu0 %v742
      %1981 = vmatprep.subr.bf16.mxu0 0
      %1982 = vmatpush1.bf16.msra.mxu0 %v743
      %1983 = vmatprep.subr.bf16.mxu0 0
      %1984 = vmatpush1.bf16.msra.mxu0 %v744
      %1985 = vmatprep.subr.bf16.mxu0 0
      %1986 = vmatpush1.bf16.msra.mxu0 %v745
      %1987 = vmatprep.subr.bf16.mxu0 0
      %1988 = vmatpush1.bf16.msra.mxu0 %v746
      %1989 = vmatprep.subr.bf16.mxu0 0
      %1990 = vmatpush1.bf16.msra.mxu0 %v747
      %1991 = vmatprep.subr.bf16.mxu0 0
      %1992 = vmatpush1.bf16.msra.mxu0 %v748
      %1993 = vmatprep.subr.bf16.mxu0 0
      %1994 = vmatpush1.bf16.msra.mxu0 %v749
      %1995 = vmatprep.subr.bf16.mxu0 0
      %1996 = vmatpush1.bf16.msra.mxu0 %v750
      %1997 = vmatprep.subr.bf16.mxu0 0
      %1998 = vmatpush1.bf16.msra.mxu0 %v751
      %1999 = vmatprep.mubr.bf16.mxu0 %v1923
      %2000 = vmatmul.mubr.bf16.gmra.mrb[0].mxu0 %v1922
      %v2001 = vpop.f32.mrb[0].mxu0
      %v2002 = vadd.f32 %v446, %v2001
      %v2003 = vpop.f32.mrb[0].mxu0
      %v2004 = vpop.f32.mrb[0].mxu0
      %v2005 = vadd.f32 %v446, %v2004
      %v2006 = vpop.f32.mrb[0].mxu0
      %2007 = vmatprep.mubr.bf16.mxu0 %v1932
      %2008 = vmatmul.mubr.bf16.gmra.mrb[0].mxu0 %v1931
      %v2009 = vpop.f32.mrb[0].mxu0
      %v2010 = vadd.f32 %v446, %v2009
      %v2011 = vpop.f32.mrb[0].mxu0
      %v2012 = vpop.f32.mrb[0].mxu0
      %v2013 = vadd.f32 %v446, %v2012
      %v2014 = vpop.f32.mrb[0].mxu0
      %2015 = vmatprep.mubr.bf16.mxu0 %v1941
      %2016 = vmatmul.mubr.bf16.gmra.mrb[0].mxu0 %v1940
      %v2017 = vpop.f32.mrb[0].mxu0
      %v2018 = vadd.f32 %v446, %v2017
      %v2019 = vpop.f32.mrb[0].mxu0
      %v2020 = vpop.f32.mrb[0].mxu0
      %v2021 = vadd.f32 %v446, %v2020
      %v2022 = vpop.f32.mrb[0].mxu0
      %2023 = vmatprep.mubr.bf16.mxu0 %v1950
      %2024 = vmatmul.mubr.bf16.gmra.mrb[0].mxu0 %v1949
      %v2025 = vpop.f32.mrb[0].mxu0
      %v2026 = vadd.f32 %v446, %v2025
      %v2027 = vpop.f32.mrb[0].mxu0
      %v2028 = vpop.f32.mrb[0].mxu0
      %v2029 = vadd.f32 %v446, %v2028
      %v2030 = vpop.f32.mrb[0].mxu0
      %2031 = vmatprep.mubr.bf16.mxu0 %v1959
      %2032 = vmatmul.mubr.bf16.gmra.mrb[0].mxu0 %v1958
      %v2033 = vpop.f32.mrb[0].mxu0
      %v2034 = vadd.f32 %v446, %v2033
      %v2035 = vpop.f32.mrb[0].mxu0
      %v2036 = vpop.f32.mrb[0].mxu0
      %v2037 = vadd.f32 %v446, %v2036
      %v2038 = vpop.f32.mrb[0].mxu0
      %2039 = vdwg.mxu0
      %2040 = vmatprep.subr.bf16.mxu0 0
      %2041 = vmatpush1.bf16.msra.mxu0 %v752
      %2042 = vmatprep.subr.bf16.mxu0 0
      %2043 = vmatpush1.bf16.msra.mxu0 %v753
      %2044 = vmatprep.subr.bf16.mxu0 0
      %2045 = vmatpush1.bf16.msra.mxu0 %v754
      %2046 = vmatprep.subr.bf16.mxu0 0
      %2047 = vmatpush1.bf16.msra.mxu0 %v755
      %2048 = vmatprep.subr.bf16.mxu0 0
      %2049 = vmatpush1.bf16.msra.mxu0 %v756
      %2050 = vmatprep.subr.bf16.mxu0 0
      %2051 = vmatpush1.bf16.msra.mxu0 %v757
      %2052 = vmatprep.subr.bf16.mxu0 0
      %2053 = vmatpush1.bf16.msra.mxu0 %v758
      %2054 = vmatprep.subr.bf16.mxu0 0
      %2055 = vmatpush1.bf16.msra.mxu0 %v759
      %2056 = vmatprep.subr.bf16.mxu0 0
      %2057 = vmatpush1.bf16.msra.mxu0 %v760
      %2058 = vmatprep.subr.bf16.mxu0 0
      %2059 = vmatpush1.bf16.msra.mxu0 %v761
      %2060 = vmatprep.subr.bf16.mxu0 0
      %2061 = vmatpush1.bf16.msra.mxu0 %v762
      %2062 = vmatprep.subr.bf16.mxu0 0
      %2063 = vmatpush1.bf16.msra.mxu0 %v763
      %2064 = vmatprep.subr.bf16.mxu0 0
      %2065 = vmatpush1.bf16.msra.mxu0 %v764
      %2066 = vmatprep.subr.bf16.mxu0 0
      %2067 = vmatpush1.bf16.msra.mxu0 %v765
      %2068 = vmatprep.subr.bf16.mxu0 0
      %2069 = vmatpush1.bf16.msra.mxu0 %v766
      %2070 = vmatprep.subr.bf16.mxu0 0
      %2071 = vmatpush1.bf16.msra.mxu0 %v767
      %2072 = vmatprep.mubr.bf16.mxu0 %v1925
      %2073 = vmatmul.mubr.bf16.gmra.mrb[0].mxu0 %v1924
      %v2074 = vpop.f32.mrb[0].mxu0
      %v2075 = vadd.f32 %v2002, %v2074
      %v2076 = vpop.f32.mrb[0].mxu0
      %v2077 = vpop.f32.mrb[0].mxu0
      %v2078 = vadd.f32 %v2005, %v2077
      %v2079 = vpop.f32.mrb[0].mxu0
      %2080 = vmatprep.mubr.bf16.mxu0 %v1934
      %2081 = vmatmul.mubr.bf16.gmra.mrb[0].mxu0 %v1933
      %v2082 = vpop.f32.mrb[0].mxu0
      %v2083 = vadd.f32 %v2010, %v2082
      %v2084 = vpop.f32.mrb[0].mxu0
      %v2085 = vpop.f32.mrb[0].mxu0
      %v2086 = vadd.f32 %v2013, %v2085
      %v2087 = vpop.f32.mrb[0].mxu0
      %2088 = vmatprep.mubr.bf16.mxu0 %v1943
      %2089 = vmatmul.mubr.bf16.gmra.mrb[0].mxu0 %v1942
      %v2090 = vpop.f32.mrb[0].mxu0
      %v2091 = vadd.f32 %v2018, %v2090
      %v2092 = vpop.f32.mrb[0].mxu0
      %v2093 = vpop.f32.mrb[0].mxu0
      %v2094 = vadd.f32 %v2021, %v2093
      %v2095 = vpop.f32.mrb[0].mxu0
      %2096 = vmatprep.mubr.bf16.mxu0 %v1952
      %2097 = vmatmul.mubr.bf16.gmra.mrb[0].mxu0 %v1951
      %v2098 = vpop.f32.mrb[0].mxu0
      %v2099 = vadd.f32 %v2026, %v2098
      %v2100 = vpop.f32.mrb[0].mxu0
      %v2101 = vpop.f32.mrb[0].mxu0
      %v2102 = vadd.f32 %v2029, %v2101
      %v2103 = vpop.f32.mrb[0].mxu0
      %2104 = vmatprep.mubr.bf16.mxu0 %v1961
      %2105 = vmatmul.mubr.bf16.gmra.mrb[0].mxu0 %v1960
      %v2106 = vpop.f32.mrb[0].mxu0
      %v2107 = vadd.f32 %v2034, %v2106
      %v2108 = vpop.f32.mrb[0].mxu0
      %v2109 = vpop.f32.mrb[0].mxu0
      %v2110 = vadd.f32 %v2037, %v2109
      %v2111 = vpop.f32.mrb[0].mxu0
      %2112 = vdwg.mxu0
      %2113 = vmatprep.subr.bf16.mxu0 0
      %2114 = vmatpush1.bf16.msra.mxu0 %v768
      %2115 = vmatprep.subr.bf16.mxu0 0
      %2116 = vmatpush1.bf16.msra.mxu0 %v769
      %2117 = vmatprep.subr.bf16.mxu0 0
      %2118 = vmatpush1.bf16.msra.mxu0 %v770
      %2119 = vmatprep.subr.bf16.mxu0 0
      %2120 = vmatpush1.bf16.msra.mxu0 %v771
      %2121 = vmatprep.subr.bf16.mxu0 0
      %2122 = vmatpush1.bf16.msra.mxu0 %v772
      %2123 = vmatprep.subr.bf16.mxu0 0
      %2124 = vmatpush1.bf16.msra.mxu0 %v773
      %2125 = vmatprep.subr.bf16.mxu0 0
      %2126 = vmatpush1.bf16.msra.mxu0 %v774
      %2127 = vmatprep.subr.bf16.mxu0 0
      %2128 = vmatpush1.bf16.msra.mxu0 %v775
      %2129 = vmatprep.subr.bf16.mxu0 0
      %2130 = vmatpush1.bf16.msra.mxu0 %v776
      %2131 = vmatprep.subr.bf16.mxu0 0
      %2132 = vmatpush1.bf16.msra.mxu0 %v777
      %2133 = vmatprep.subr.bf16.mxu0 0
      %2134 = vmatpush1.bf16.msra.mxu0 %v778
      %2135 = vmatprep.subr.bf16.mxu0 0
      %2136 = vmatpush1.bf16.msra.mxu0 %v779
      %2137 = vmatprep.subr.bf16.mxu0 0
      %2138 = vmatpush1.bf16.msra.mxu0 %v780
      %2139 = vmatprep.subr.bf16.mxu0 0
      %2140 = vmatpush1.bf16.msra.mxu0 %v781
      %2141 = vmatprep.subr.bf16.mxu0 0
      %2142 = vmatpush1.bf16.msra.mxu0 %v782
      %2143 = vmatprep.subr.bf16.mxu0 0
      %2144 = vmatpush1.bf16.msra.mxu0 %v783
      %2145 = vmatprep.mubr.bf16.mxu0 %v1927
      %2146 = vmatmul.mubr.bf16.gmra.mrb[0].mxu0 %v1926
      %v2147 = vpop.f32.mrb[0].mxu0
      %v2148 = vadd.f32 %v2075, %v2147
      %v2149 = vpop.f32.mrb[0].mxu0
      %v2150 = vpop.f32.mrb[0].mxu0
      %v2151 = vadd.f32 %v2078, %v2150
      %v2152 = vpop.f32.mrb[0].mxu0
      %2153 = vmatprep.mubr.bf16.mxu0 %v1936
      %2154 = vmatmul.mubr.bf16.gmra.mrb[0].mxu0 %v1935
      %v2155 = vpop.f32.mrb[0].mxu0
      %v2156 = vadd.f32 %v2083, %v2155
      %v2157 = vpop.f32.mrb[0].mxu0
      %v2158 = vpop.f32.mrb[0].mxu0
      %v2159 = vadd.f32 %v2086, %v2158
      %v2160 = vpop.f32.mrb[0].mxu0
      %2161 = vmatprep.mubr.bf16.mxu0 %v1945
      %2162 = vmatmul.mubr.bf16.gmra.mrb[0].mxu0 %v1944
      %v2163 = vpop.f32.mrb[0].mxu0
      %v2164 = vadd.f32 %v2091, %v2163
      %v2165 = vpop.f32.mrb[0].mxu0
      %v2166 = vpop.f32.mrb[0].mxu0
      %v2167 = vadd.f32 %v2094, %v2166
      %v2168 = vpop.f32.mrb[0].mxu0
      %2169 = vmatprep.mubr.bf16.mxu0 %v1954
      %2170 = vmatmul.mubr.bf16.gmra.mrb[0].mxu0 %v1953
      %v2171 = vpop.f32.mrb[0].mxu0
      %v2172 = vadd.f32 %v2099, %v2171
      %v2173 = vpop.f32.mrb[0].mxu0
      %v2174 = vpop.f32.mrb[0].mxu0
      %v2175 = vadd.f32 %v2102, %v2174
      %v2176 = vpop.f32.mrb[0].mxu0
      %2177 = vmatprep.mubr.bf16.mxu0 %v1963
      %2178 = vmatmul.mubr.bf16.gmra.mrb[0].mxu0 %v1962
      %v2179 = vpop.f32.mrb[0].mxu0
      %v2180 = vadd.f32 %v2107, %v2179
      %v2181 = vpop.f32.mrb[0].mxu0
      %v2182 = vpop.f32.mrb[0].mxu0
      %v2183 = vadd.f32 %v2110, %v2182
      %v2184 = vpop.f32.mrb[0].mxu0
      %2185 = vdwg.mxu0
      %2186 = vmatprep.subr.bf16.mxu0 0
      %2187 = vmatpush1.bf16.msra.mxu0 %v784
      %2188 = vmatprep.subr.bf16.mxu0 0
      %2189 = vmatpush1.bf16.msra.mxu0 %v785
      %2190 = vmatprep.subr.bf16.mxu0 0
      %2191 = vmatpush1.bf16.msra.mxu0 %v786
      %2192 = vmatprep.subr.bf16.mxu0 0
      %2193 = vmatpush1.bf16.msra.mxu0 %v787
      %2194 = vmatprep.subr.bf16.mxu0 0
      %2195 = vmatpush1.bf16.msra.mxu0 %v788
      %2196 = vmatprep.subr.bf16.mxu0 0
      %2197 = vmatpush1.bf16.msra.mxu0 %v789
      %2198 = vmatprep.subr.bf16.mxu0 0
      %2199 = vmatpush1.bf16.msra.mxu0 %v790
      %2200 = vmatprep.subr.bf16.mxu0 0
      %2201 = vmatpush1.bf16.msra.mxu0 %v791
      %2202 = vmatprep.subr.bf16.mxu0 0
      %2203 = vmatpush1.bf16.msra.mxu0 %v792
      %2204 = vmatprep.subr.bf16.mxu0 0
      %2205 = vmatpush1.bf16.msra.mxu0 %v793
      %2206 = vmatprep.subr.bf16.mxu0 0
      %2207 = vmatpush1.bf16.msra.mxu0 %v794
      %2208 = vmatprep.subr.bf16.mxu0 0
      %2209 = vmatpush1.bf16.msra.mxu0 %v795
      %2210 = vmatprep.subr.bf16.mxu0 0
      %2211 = vmatpush1.bf16.msra.mxu0 %v796
      %2212 = vmatprep.subr.bf16.mxu0 0
      %2213 = vmatpush1.bf16.msra.mxu0 %v797
      %2214 = vmatprep.subr.bf16.mxu0 0
      %2215 = vmatpush1.bf16.msra.mxu0 %v798
      %2216 = vmatprep.subr.bf16.mxu0 0
      %2217 = vmatpush1.bf16.msra.mxu0 %v799
      %2218 = vmatprep.mubr.bf16.mxu0 %v1929
      %2219 = vmatmul.mubr.bf16.gmra.mrb[0].mxu0 %v1928
      %v2220 = vpop.f32.mrb[0].mxu0
      %v2221 = vadd.f32 %v2148, %v2220
      %v2222 = vpop.f32.mrb[0].mxu0
      %v2223 = vpop.f32.mrb[0].mxu0
      %v2224 = vadd.f32 %v2151, %v2223
      %v2225 = vpop.f32.mrb[0].mxu0
      %2226 = vmatprep.mubr.bf16.mxu0 %v1938
      %2227 = vmatmul.mubr.bf16.gmra.mrb[0].mxu0 %v1937
      %v2228 = vpop.f32.mrb[0].mxu0
      %v2229 = vadd.f32 %v2156, %v2228
      %v2230 = vpop.f32.mrb[0].mxu0
      %v2231 = vpop.f32.mrb[0].mxu0
      %v2232 = vadd.f32 %v2159, %v2231
      %v2233 = vpop.f32.mrb[0].mxu0
      %2234 = vmatprep.mubr.bf16.mxu0 %v1947
      %2235 = vmatmul.mubr.bf16.gmra.mrb[0].mxu0 %v1946
      %v2236 = vpop.f32.mrb[0].mxu0
      %v2237 = vadd.f32 %v2164, %v2236
      %v2238 = vpop.f32.mrb[0].mxu0
      %v2239 = vpop.f32.mrb[0].mxu0
      %v2240 = vadd.f32 %v2167, %v2239
      %v2241 = vpop.f32.mrb[0].mxu0
      %2242 = vmatprep.mubr.bf16.mxu0 %v1956
      %2243 = vmatmul.mubr.bf16.gmra.mrb[0].mxu0 %v1955
      %v2244 = vpop.f32.mrb[0].mxu0
      %v2245 = vadd.f32 %v2172, %v2244
      %v2246 = vpop.f32.mrb[0].mxu0
      %v2247 = vpop.f32.mrb[0].mxu0
      %v2248 = vadd.f32 %v2175, %v2247
      %v2249 = vpop.f32.mrb[0].mxu0
      %2250 = vmatprep.mubr.bf16.mxu0 %v1965
      %2251 = vmatmul.mubr.bf16.gmra.mrb[0].mxu0 %v1964
      %v2252 = vpop.f32.mrb[0].mxu0
      %v2253 = vadd.f32 %v2180, %v2252
      %v2254 = vpop.f32.mrb[0].mxu0
      %v2255 = vpop.f32.mrb[0].mxu0
      %v2256 = vadd.f32 %v2183, %v2255
      %v2257 = vpop.f32.mrb[0].mxu0
      %2258 = vdwg.mxu0
      %2259 = vmatprep.subr.bf16.mxu0 0
      %2260 = vmatpush1.bf16.msra.mxu0 %v800
      %2261 = vmatprep.subr.bf16.mxu0 0
      %2262 = vmatpush1.bf16.msra.mxu0 %v801
      %2263 = vmatprep.subr.bf16.mxu0 0
      %2264 = vmatpush1.bf16.msra.mxu0 %v802
      %2265 = vmatprep.subr.bf16.mxu0 0
      %2266 = vmatpush1.bf16.msra.mxu0 %v803
      %2267 = vmatprep.subr.bf16.mxu0 0
      %2268 = vmatpush1.bf16.msra.mxu0 %v804
      %2269 = vmatprep.subr.bf16.mxu0 0
      %2270 = vmatpush1.bf16.msra.mxu0 %v805
      %2271 = vmatprep.subr.bf16.mxu0 0
      %2272 = vmatpush1.bf16.msra.mxu0 %v806
      %2273 = vmatprep.subr.bf16.mxu0 0
      %2274 = vmatpush1.bf16.msra.mxu0 %v807
      %2275 = vmatprep.subr.bf16.mxu0 0
      %2276 = vmatpush1.bf16.msra.mxu0 0
      %2277 = vmatprep.subr.bf16.mxu0 0
      %2278 = vmatpush1.bf16.msra.mxu0 0
      %2279 = vmatprep.subr.bf16.mxu0 0
      %2280 = vmatpush1.bf16.msra.mxu0 0
      %2281 = vmatprep.subr.bf16.mxu0 0
      %2282 = vmatpush1.bf16.msra.mxu0 0
      %2283 = vmatprep.subr.bf16.mxu0 0
      %2284 = vmatpush1.bf16.msra.mxu0 0
      %2285 = vmatprep.subr.bf16.mxu0 0
      %2286 = vmatpush1.bf16.msra.mxu0 0
      %2287 = vmatprep.subr.bf16.mxu0 0
      %2288 = vmatpush1.bf16.msra.mxu0 0
      %2289 = vmatprep.subr.bf16.mxu0 0
      %2290 = vmatpush1.bf16.msra.mxu0 0
      %2291 = vmatprep.mubr.bf16.mxu0 0
      %2292 = vmatmul.mubr.bf16.gmra.mrb[0].mxu0 %v1930
      %v2293 = vpop.f32.mrb[0].mxu0
      %v2294 = vadd.f32 %v2221, %v2293
      %v2295 = vpop.f32.mrb[0].mxu0
      %v2296 = vpop.f32.mrb[0].mxu0
      %v2297 = vadd.f32 %v2224, %v2296
      %v2298 = vpop.f32.mrb[0].mxu0
      %2299 = vmatprep.mubr.bf16.mxu0 0
      %2300 = vmatmul.mubr.bf16.gmra.mrb[0].mxu0 %v1939
      %v2301 = vpop.f32.mrb[0].mxu0
      %v2302 = vadd.f32 %v2229, %v2301
      %v2303 = vpop.f32.mrb[0].mxu0
      %v2304 = vpop.f32.mrb[0].mxu0
      %v2305 = vadd.f32 %v2232, %v2304
      %v2306 = vpop.f32.mrb[0].mxu0
      %2307 = vmatprep.mubr.bf16.mxu0 0
      %2308 = vmatmul.mubr.bf16.gmra.mrb[0].mxu0 %v1948
      %v2309 = vpop.f32.mrb[0].mxu0
      %v2310 = vadd.f32 %v2237, %v2309
      %v2311 = vpop.f32.mrb[0].mxu0
      %v2312 = vpop.f32.mrb[0].mxu0
      %v2313 = vadd.f32 %v2240, %v2312
      %v2314 = vpop.f32.mrb[0].mxu0
      %2315 = vmatprep.mubr.bf16.mxu0 0
      %2316 = vmatmul.mubr.bf16.gmra.mrb[0].mxu0 %v1957
      %v2317 = vpop.f32.mrb[0].mxu0
      %v2318 = vadd.f32 %v2245, %v2317
      %v2319 = vpop.f32.mrb[0].mxu0
      %v2320 = vpop.f32.mrb[0].mxu0
      %v2321 = vadd.f32 %v2248, %v2320
      %v2322 = vpop.f32.mrb[0].mxu0
      %2323 = vmatprep.mubr.bf16.mxu0 0
      %2324 = vmatmul.mubr.bf16.gmra.mrb[0].mxu0 %v1966
      %v2325 = vpop.f32.mrb[0].mxu0
      %v2326 = vadd.f32 %v2253, %v2325
      %v2327 = vpop.f32.mrb[0].mxu0
      %v2328 = vpop.f32.mrb[0].mxu0
      %v2329 = vadd.f32 %v2256, %v2328
      %v2330 = vpop.f32.mrb[0].mxu0
      %2331 = vdwg.mxu0
      %v2332 = vmax.f32 %v2294, 0.0
      %v2333 = vmax.f32 %v2297, 0.0
      %v2334 = vmax.f32 %v2302, 0.0
      %v2335 = vmax.f32 %v2305, 0.0
      %v2336 = vmax.f32 %v2310, 0.0
      %v2337 = vmax.f32 %v2313, 0.0
      %v2338 = vmax.f32 %v2318, 0.0
      %v2339 = vmax.f32 %v2321, 0.0
      %v2340 = vmax.f32 %v2326, 0.0
      %v2341 = vmax.f32 %v2329, 0.0
      %v2342 = vpack.c.bf16 %v2333, %v2332
      %v2343 = vpack.c.bf16 %v2335, %v2334
      %v2344 = vpack.c.bf16 %v2337, %v2336
      %v2345 = vpack.c.bf16 %v2339, %v2338
      %v2346 = vpack.c.bf16 %v2341, %v2340
      %v2352 = vunpack.c.l.b16 %v2342
      %v2353 = vunpack.c.h.b16 %v2342
      %v2354 = vunpack.c.l.b16 %v2343
      %v2355 = vunpack.c.h.b16 %v2343
      %v2356 = vunpack.c.l.b16 %v2344
      %v2357 = vunpack.c.h.b16 %v2344
      %v2358 = vunpack.c.l.b16 %v2345
      %v2359 = vunpack.c.h.b16 %v2345
      %v2360 = vunpack.c.l.b16 %v2346
      %v2361 = vunpack.c.h.b16 %v2346
      %v2362 = vpack.c.b16 %v2352, %v2352
      %v2363 = vpack.c.b16 %v2353, %v2353
      %v2364 = vpack.c.b16 %v2354, %v2354
      %v2365 = vpack.c.b16 %v2355, %v2355
      %v2366 = vpack.c.b16 %v2356, %v2356
      %v2367 = vpack.c.b16 %v2357, %v2357
      %v2368 = vpack.c.b16 %v2358, %v2358
      %v2369 = vpack.c.b16 %v2359, %v2359
      %v2370 = vpack.c.b16 %v2360, %v2360
      %v2371 = vpack.c.b16 %v2361, %v2361
      %s2382 = scalar_lea.vmem %s177, 80
      %2383 = vst [vmem:[%s2382] sm:$0xf] %v2362
      %2384 = vst [vmem:[%s2382 + $0x4] sm:$0xf] %v2363
      %2385 = vst [vmem:[%s2382 + $0x8] sm:$0xf] %v2364
      %2386 = vst [vmem:[%s2382 + $0xc] sm:$0xf] %v2365
      %2387 = vst [vmem:[%s2382 + $0x10] sm:$0xf] %v2366
      %2388 = vst [vmem:[%s2382 + $0x14] sm:$0xf] %v2367
      %2389 = vst [vmem:[%s2382 + $0x18] sm:$0xf] %v2368
      %2390 = vst [vmem:[%s2382 + $0x1c] sm:$0xf] %v2369
      %2391 = vst [vmem:[%s2382 + $0x20] sm:$0xf] %v2370
      %2392 = vst [vmem:[%s2382 + $0x24] sm:$0xf] %v2371
      %s2393 = scalar_lea.vmem %s170, 336
      %v2394 = vld [vmem:[%s2393] sm:$0xff]
      %v2395 = vld [vmem:[%s2393 + $0x8] sm:$0xff]
      %v2396 = vld [vmem:[%s2393 + $0x10] sm:$0xff]
      %v2397 = vld [vmem:[%s2393 + $0x18] sm:$0xff]
      %v2398 = vld [vmem:[%s2393 + $0x20] sm:$0xff]
      %v2399 = vld [vmem:[%s2393 + $0x28] sm:$0xff]
      %v2400 = vld [vmem:[%s2393 + $0x30] sm:$0xff]
      %v2401 = vld [vmem:[%s2393 + $0x38] sm:$0xff]
      %v2402 = vld [vmem:[%s2393 + $0x40] sm:$0xff]
      %v2403 = vld [vmem:[%s2393 + $0x48] sm:$0xff]
      %v2404 = vld [vmem:[%s2393 + $0x1] sm:$0xff]
      %v2405 = vld [vmem:[%s2393 + $0x9] sm:$0xff]
      %v2406 = vld [vmem:[%s2393 + $0x11] sm:$0xff]
      %v2407 = vld [vmem:[%s2393 + $0x19] sm:$0xff]
      %v2408 = vld [vmem:[%s2393 + $0x21] sm:$0xff]
      %v2409 = vld [vmem:[%s2393 + $0x29] sm:$0xff]
      %v2410 = vld [vmem:[%s2393 + $0x31] sm:$0xff]
      %v2411 = vld [vmem:[%s2393 + $0x39] sm:$0xff]
      %v2412 = vld [vmem:[%s2393 + $0x41] sm:$0xff]
      %v2413 = vld [vmem:[%s2393 + $0x49] sm:$0xff]
      %v2414 = vld [vmem:[%s2393 + $0x2] sm:$0xff]
      %v2415 = vld [vmem:[%s2393 + $0xa] sm:$0xff]
      %v2416 = vld [vmem:[%s2393 + $0x12] sm:$0xff]
      %v2417 = vld [vmem:[%s2393 + $0x1a] sm:$0xff]
      %v2418 = vld [vmem:[%s2393 + $0x22] sm:$0xff]
      %v2419 = vld [vmem:[%s2393 + $0x2a] sm:$0xff]
      %v2420 = vld [vmem:[%s2393 + $0x32] sm:$0xff]
      %v2421 = vld [vmem:[%s2393 + $0x3a] sm:$0xff]
      %v2422 = vld [vmem:[%s2393 + $0x42] sm:$0xff]
      %v2423 = vld [vmem:[%s2393 + $0x4a] sm:$0xff]
      %v2424 = vld [vmem:[%s2393 + $0x52] sm:$0xff]
      %v2425 = vld [vmem:[%s2393 + $0xb] sm:$0xff]
      %v2426 = vld [vmem:[%s2393 + $0x13] sm:$0xff]
      %v2427 = vld [vmem:[%s2393 + $0x1b] sm:$0xff]
      %v2428 = vld [vmem:[%s2393 + $0x23] sm:$0xff]
      %v2429 = vld [vmem:[%s2393 + $0x2b] sm:$0xff]
      %v2430 = vld [vmem:[%s2393 + $0x33] sm:$0xff]
      %v2431 = vld [vmem:[%s2393 + $0x3b] sm:$0xff]
      %v2432 = vld [vmem:[%s2393 + $0x43] sm:$0xff]
      %v2433 = vld [vmem:[%s2393 + $0x4b] sm:$0xff]
      %v2434 = vld [vmem:[%s2393 + $0x53] sm:$0xff]
      %v2435 = vld [vmem:[%s2393 + $0xc] sm:$0xff]
      %v2436 = vld [vmem:[%s2393 + $0x14] sm:$0xff]
      %v2437 = vld [vmem:[%s2393 + $0x1c] sm:$0xff]
      %v2438 = vld [vmem:[%s2393 + $0x24] sm:$0xff]
      %v2439 = vld [vmem:[%s2393 + $0x2c] sm:$0xff]
      %v2440 = vld [vmem:[%s2393 + $0x34] sm:$0xff]
      %v2441 = vld [vmem:[%s2393 + $0x3c] sm:$0xff]
      %v2442 = vld [vmem:[%s2393 + $0x44] sm:$0xff]
      %v2443 = vld [vmem:[%s2393 + $0x4c] sm:$0xff]
      %v2444 = vld [vmem:[%s2393 + $0x54] sm:$0xff]
      %v2445 = vld [vmem:[%s2393 + $0x5c] sm:$0xff]
      %v2446 = vld [vmem:[%s2393 + $0x15] sm:$0xff]
      %v2447 = vld [vmem:[%s2393 + $0x1d] sm:$0xff]
      %v2448 = vld [vmem:[%s2393 + $0x25] sm:$0xff]
      %v2449 = vld [vmem:[%s2393 + $0x2d] sm:$0xff]
      %v2450 = vld [vmem:[%s2393 + $0x35] sm:$0xff]
      %v2451 = vld [vmem:[%s2393 + $0x3d] sm:$0xff]
      %v2452 = vld [vmem:[%s2393 + $0x45] sm:$0xff]
      %v2453 = vld [vmem:[%s2393 + $0x4d] sm:$0xff]
      %v2454 = vld [vmem:[%s2393 + $0x55] sm:$0xff]
      %v2455 = vld [vmem:[%s2393 + $0x5d] sm:$0xff]
      %v2456 = vld [vmem:[%s2393 + $0x16] sm:$0xff]
      %v2457 = vld [vmem:[%s2393 + $0x1e] sm:$0xff]
      %v2458 = vld [vmem:[%s2393 + $0x26] sm:$0xff]
      %v2459 = vld [vmem:[%s2393 + $0x2e] sm:$0xff]
      %v2460 = vld [vmem:[%s2393 + $0x36] sm:$0xff]
      %v2461 = vld [vmem:[%s2393 + $0x3e] sm:$0xff]
      %v2462 = vld [vmem:[%s2393 + $0x46] sm:$0xff]
      %v2463 = vld [vmem:[%s2393 + $0x4e] sm:$0xff]
      %v2464 = vld [vmem:[%s2393 + $0x56] sm:$0xff]
      %v2465 = vld [vmem:[%s2393 + $0x5e] sm:$0xff]
      %v2466 = vpack.c.bf16 %v2395, %v2394
      %v2467 = vpack.c.bf16 %v2405, %v2404
      %v2468 = vpack.c.bf16 %v2415, %v2414
      %v2469 = vpack.c.bf16 %v2416, %v2415
      %v2470 = vpack.c.bf16 %v2426, %v2425
      %v2471 = vpack.c.bf16 %v2436, %v2435
      %v2472 = vpack.c.bf16 %v2437, %v2436
      %v2473 = vpack.c.bf16 %v2447, %v2446
      %v2474 = vpack.c.bf16 %v2457, %v2456
      %v2475 = vpack.c.bf16 %v2397, %v2396
      %v2476 = vpack.c.bf16 %v2407, %v2406
      %v2477 = vpack.c.bf16 %v2417, %v2416
      %v2478 = vpack.c.bf16 %v2418, %v2417
      %v2479 = vpack.c.bf16 %v2428, %v2427
      %v2480 = vpack.c.bf16 %v2438, %v2437
      %v2481 = vpack.c.bf16 %v2439, %v2438
      %v2482 = vpack.c.bf16 %v2449, %v2448
      %v2483 = vpack.c.bf16 %v2459, %v2458
      %v2484 = vpack.c.bf16 %v2399, %v2398
      %v2485 = vpack.c.bf16 %v2409, %v2408
      %v2486 = vpack.c.bf16 %v2419, %v2418
      %v2487 = vpack.c.bf16 %v2420, %v2419
      %v2488 = vpack.c.bf16 %v2430, %v2429
      %v2489 = vpack.c.bf16 %v2440, %v2439
      %v2490 = vpack.c.bf16 %v2441, %v2440
      %v2491 = vpack.c.bf16 %v2451, %v2450
      %v2492 = vpack.c.bf16 %v2461, %v2460
      %v2493 = vpack.c.bf16 %v2401, %v2400
      %v2494 = vpack.c.bf16 %v2411, %v2410
      %v2495 = vpack.c.bf16 %v2421, %v2420
      %v2496 = vpack.c.bf16 %v2422, %v2421
      %v2497 = vpack.c.bf16 %v2432, %v2431
      %v2498 = vpack.c.bf16 %v2442, %v2441
      %v2499 = vpack.c.bf16 %v2443, %v2442
      %v2500 = vpack.c.bf16 %v2453, %v2452
      %v2501 = vpack.c.bf16 %v2463, %v2462
      %v2502 = vpack.c.bf16 %v2403, %v2402
      %v2503 = vpack.c.bf16 %v2413, %v2412
      %v2504 = vpack.c.bf16 %v2423, %v2422
      %v2505 = vpack.c.bf16 %v2424, %v2423
      %v2506 = vpack.c.bf16 %v2434, %v2433
      %v2507 = vpack.c.bf16 %v2444, %v2443
      %v2508 = vpack.c.bf16 %v2445, %v2444
      %v2509 = vpack.c.bf16 %v2455, %v2454
      %v2510 = vpack.c.bf16 %v2465, %v2464
      %2511 = vmatprep.subr.bf16.mxu0 0
      %2512 = vmatpush1.bf16.msra.mxu0 %v736
      %2513 = vmatprep.subr.bf16.mxu0 0
      %2514 = vmatpush1.bf16.msra.mxu0 %v737
      %2515 = vmatprep.subr.bf16.mxu0 0
      %2516 = vmatpush1.bf16.msra.mxu0 %v738
      %2517 = vmatprep.subr.bf16.mxu0 0
      %2518 = vmatpush1.bf16.msra.mxu0 %v739
      %2519 = vmatprep.subr.bf16.mxu0 0
      %2520 = vmatpush1.bf16.msra.mxu0 %v740
      %2521 = vmatprep.subr.bf16.mxu0 0
      %2522 = vmatpush1.bf16.msra.mxu0 %v741
      %2523 = vmatprep.subr.bf16.mxu0 0
      %2524 = vmatpush1.bf16.msra.mxu0 %v742
      %2525 = vmatprep.subr.bf16.mxu0 0
      %2526 = vmatpush1.bf16.msra.mxu0 %v743
      %2527 = vmatprep.subr.bf16.mxu0 0
      %2528 = vmatpush1.bf16.msra.mxu0 %v744
      %2529 = vmatprep.subr.bf16.mxu0 0
      %2530 = vmatpush1.bf16.msra.mxu0 %v745
      %2531 = vmatprep.subr.bf16.mxu0 0
      %2532 = vmatpush1.bf16.msra.mxu0 %v746
      %2533 = vmatprep.subr.bf16.mxu0 0
      %2534 = vmatpush1.bf16.msra.mxu0 %v747
      %2535 = vmatprep.subr.bf16.mxu0 0
      %2536 = vmatpush1.bf16.msra.mxu0 %v748
      %2537 = vmatprep.subr.bf16.mxu0 0
      %2538 = vmatpush1.bf16.msra.mxu0 %v749
      %2539 = vmatprep.subr.bf16.mxu0 0
      %2540 = vmatpush1.bf16.msra.mxu0 %v750
      %2541 = vmatprep.subr.bf16.mxu0 0
      %2542 = vmatpush1.bf16.msra.mxu0 %v751
      %2543 = vmatprep.mubr.bf16.mxu0 %v2467
      %2544 = vmatmul.mubr.bf16.gmra.mrb[0].mxu0 %v2466
      %v2545 = vpop.f32.mrb[0].mxu0
      %v2546 = vadd.f32 %v446, %v2545
      %v2547 = vpop.f32.mrb[0].mxu0
      %v2548 = vpop.f32.mrb[0].mxu0
      %v2549 = vadd.f32 %v446, %v2548
      %v2550 = vpop.f32.mrb[0].mxu0
      %2551 = vmatprep.mubr.bf16.mxu0 %v2476
      %2552 = vmatmul.mubr.bf16.gmra.mrb[0].mxu0 %v2475
      %v2553 = vpop.f32.mrb[0].mxu0
      %v2554 = vadd.f32 %v446, %v2553
      %v2555 = vpop.f32.mrb[0].mxu0
      %v2556 = vpop.f32.mrb[0].mxu0
      %v2557 = vadd.f32 %v446, %v2556
      %v2558 = vpop.f32.mrb[0].mxu0
      %2559 = vmatprep.mubr.bf16.mxu0 %v2485
      %2560 = vmatmul.mubr.bf16.gmra.mrb[0].mxu0 %v2484
      %v2561 = vpop.f32.mrb[0].mxu0
      %v2562 = vadd.f32 %v446, %v2561
      %v2563 = vpop.f32.mrb[0].mxu0
      %v2564 = vpop.f32.mrb[0].mxu0
      %v2565 = vadd.f32 %v446, %v2564
      %v2566 = vpop.f32.mrb[0].mxu0
      %2567 = vmatprep.mubr.bf16.mxu0 %v2494
      %2568 = vmatmul.mubr.bf16.gmra.mrb[0].mxu0 %v2493
      %v2569 = vpop.f32.mrb[0].mxu0
      %v2570 = vadd.f32 %v446, %v2569
      %v2571 = vpop.f32.mrb[0].mxu0
      %v2572 = vpop.f32.mrb[0].mxu0
      %v2573 = vadd.f32 %v446, %v2572
      %v2574 = vpop.f32.mrb[0].mxu0
      %2575 = vmatprep.mubr.bf16.mxu0 %v2503
      %2576 = vmatmul.mubr.bf16.gmra.mrb[0].mxu0 %v2502
      %v2577 = vpop.f32.mrb[0].mxu0
      %v2578 = vadd.f32 %v446, %v2577
      %v2579 = vpop.f32.mrb[0].mxu0
      %v2580 = vpop.f32.mrb[0].mxu0
      %v2581 = vadd.f32 %v446, %v2580
      %v2582 = vpop.f32.mrb[0].mxu0
      %2583 = vdwg.mxu0
      %2584 = vmatprep.subr.bf16.mxu0 0
      %2585 = vmatpush1.bf16.msra.mxu0 %v752
      %2586 = vmatprep.subr.bf16.mxu0 0
      %2587 = vmatpush1.bf16.msra.mxu0 %v753
      %2588 = vmatprep.subr.bf16.mxu0 0
      %2589 = vmatpush1.bf16.msra.mxu0 %v754
      %2590 = vmatprep.subr.bf16.mxu0 0
      %2591 = vmatpush1.bf16.msra.mxu0 %v755
      %2592 = vmatprep.subr.bf16.mxu0 0
      %2593 = vmatpush1.bf16.msra.mxu0 %v756
      %2594 = vmatprep.subr.bf16.mxu0 0
      %2595 = vmatpush1.bf16.msra.mxu0 %v757
      %2596 = vmatprep.subr.bf16.mxu0 0
      %2597 = vmatpush1.bf16.msra.mxu0 %v758
      %2598 = vmatprep.subr.bf16.mxu0 0
      %2599 = vmatpush1.bf16.msra.mxu0 %v759
      %2600 = vmatprep.subr.bf16.mxu0 0
      %2601 = vmatpush1.bf16.msra.mxu0 %v760
      %2602 = vmatprep.subr.bf16.mxu0 0
      %2603 = vmatpush1.bf16.msra.mxu0 %v761
      %2604 = vmatprep.subr.bf16.mxu0 0
      %2605 = vmatpush1.bf16.msra.mxu0 %v762
      %2606 = vmatprep.subr.bf16.mxu0 0
      %2607 = vmatpush1.bf16.msra.mxu0 %v763
      %2608 = vmatprep.subr.bf16.mxu0 0
      %2609 = vmatpush1.bf16.msra.mxu0 %v764
      %2610 = vmatprep.subr.bf16.mxu0 0
      %2611 = vmatpush1.bf16.msra.mxu0 %v765
      %2612 = vmatprep.subr.bf16.mxu0 0
      %2613 = vmatpush1.bf16.msra.mxu0 %v766
      %2614 = vmatprep.subr.bf16.mxu0 0
      %2615 = vmatpush1.bf16.msra.mxu0 %v767
      %2616 = vmatprep.mubr.bf16.mxu0 %v2469
      %2617 = vmatmul.mubr.bf16.gmra.mrb[0].mxu0 %v2468
      %v2618 = vpop.f32.mrb[0].mxu0
      %v2619 = vadd.f32 %v2546, %v2618
      %v2620 = vpop.f32.mrb[0].mxu0
      %v2621 = vpop.f32.mrb[0].mxu0
      %v2622 = vadd.f32 %v2549, %v2621
      %v2623 = vpop.f32.mrb[0].mxu0
      %2624 = vmatprep.mubr.bf16.mxu0 %v2478
      %2625 = vmatmul.mubr.bf16.gmra.mrb[0].mxu0 %v2477
      %v2626 = vpop.f32.mrb[0].mxu0
      %v2627 = vadd.f32 %v2554, %v2626
      %v2628 = vpop.f32.mrb[0].mxu0
      %v2629 = vpop.f32.mrb[0].mxu0
      %v2630 = vadd.f32 %v2557, %v2629
      %v2631 = vpop.f32.mrb[0].mxu0
      %2632 = vmatprep.mubr.bf16.mxu0 %v2487
      %2633 = vmatmul.mubr.bf16.gmra.mrb[0].mxu0 %v2486
      %v2634 = vpop.f32.mrb[0].mxu0
      %v2635 = vadd.f32 %v2562, %v2634
      %v2636 = vpop.f32.mrb[0].mxu0
      %v2637 = vpop.f32.mrb[0].mxu0
      %v2638 = vadd.f32 %v2565, %v2637
      %v2639 = vpop.f32.mrb[0].mxu0
      %2640 = vmatprep.mubr.bf16.mxu0 %v2496
      %2641 = vmatmul.mubr.bf16.gmra.mrb[0].mxu0 %v2495
      %v2642 = vpop.f32.mrb[0].mxu0
      %v2643 = vadd.f32 %v2570, %v2642
      %v2644 = vpop.f32.mrb[0].mxu0
      %v2645 = vpop.f32.mrb[0].mxu0
      %v2646 = vadd.f32 %v2573, %v2645
      %v2647 = vpop.f32.mrb[0].mxu0
      %2648 = vmatprep.mubr.bf16.mxu0 %v2505
      %2649 = vmatmul.mubr.bf16.gmra.mrb[0].mxu0 %v2504
      %v2650 = vpop.f32.mrb[0].mxu0
      %v2651 = vadd.f32 %v2578, %v2650
      %v2652 = vpop.f32.mrb[0].mxu0
      %v2653 = vpop.f32.mrb[0].mxu0
      %v2654 = vadd.f32 %v2581, %v2653
      %v2655 = vpop.f32.mrb[0].mxu0
      %2656 = vdwg.mxu0
      %2657 = vmatprep.subr.bf16.mxu0 0
      %2658 = vmatpush1.bf16.msra.mxu0 %v768
      %2659 = vmatprep.subr.bf16.mxu0 0
      %2660 = vmatpush1.bf16.msra.mxu0 %v769
      %2661 = vmatprep.subr.bf16.mxu0 0
      %2662 = vmatpush1.bf16.msra.mxu0 %v770
      %2663 = vmatprep.subr.bf16.mxu0 0
      %2664 = vmatpush1.bf16.msra.mxu0 %v771
      %2665 = vmatprep.subr.bf16.mxu0 0
      %2666 = vmatpush1.bf16.msra.mxu0 %v772
      %2667 = vmatprep.subr.bf16.mxu0 0
      %2668 = vmatpush1.bf16.msra.mxu0 %v773
      %2669 = vmatprep.subr.bf16.mxu0 0
      %2670 = vmatpush1.bf16.msra.mxu0 %v774
      %2671 = vmatprep.subr.bf16.mxu0 0
      %2672 = vmatpush1.bf16.msra.mxu0 %v775
      %2673 = vmatprep.subr.bf16.mxu0 0
      %2674 = vmatpush1.bf16.msra.mxu0 %v776
      %2675 = vmatprep.subr.bf16.mxu0 0
      %2676 = vmatpush1.bf16.msra.mxu0 %v777
      %2677 = vmatprep.subr.bf16.mxu0 0
      %2678 = vmatpush1.bf16.msra.mxu0 %v778
      %2679 = vmatprep.subr.bf16.mxu0 0
      %2680 = vmatpush1.bf16.msra.mxu0 %v779
      %2681 = vmatprep.subr.bf16.mxu0 0
      %2682 = vmatpush1.bf16.msra.mxu0 %v780
      %2683 = vmatprep.subr.bf16.mxu0 0
      %2684 = vmatpush1.bf16.msra.mxu0 %v781
      %2685 = vmatprep.subr.bf16.mxu0 0
      %2686 = vmatpush1.bf16.msra.mxu0 %v782
      %2687 = vmatprep.subr.bf16.mxu0 0
      %2688 = vmatpush1.bf16.msra.mxu0 %v783
      %2689 = vmatprep.mubr.bf16.mxu0 %v2471
      %2690 = vmatmul.mubr.bf16.gmra.mrb[0].mxu0 %v2470
      %v2691 = vpop.f32.mrb[0].mxu0
      %v2692 = vadd.f32 %v2619, %v2691
      %v2693 = vpop.f32.mrb[0].mxu0
      %v2694 = vpop.f32.mrb[0].mxu0
      %v2695 = vadd.f32 %v2622, %v2694
      %v2696 = vpop.f32.mrb[0].mxu0
      %2697 = vmatprep.mubr.bf16.mxu0 %v2480
      %2698 = vmatmul.mubr.bf16.gmra.mrb[0].mxu0 %v2479
      %v2699 = vpop.f32.mrb[0].mxu0
      %v2700 = vadd.f32 %v2627, %v2699
      %v2701 = vpop.f32.mrb[0].mxu0
      %v2702 = vpop.f32.mrb[0].mxu0
      %v2703 = vadd.f32 %v2630, %v2702
      %v2704 = vpop.f32.mrb[0].mxu0
      %2705 = vmatprep.mubr.bf16.mxu0 %v2489
      %2706 = vmatmul.mubr.bf16.gmra.mrb[0].mxu0 %v2488
      %v2707 = vpop.f32.mrb[0].mxu0
      %v2708 = vadd.f32 %v2635, %v2707
      %v2709 = vpop.f32.mrb[0].mxu0
      %v2710 = vpop.f32.mrb[0].mxu0
      %v2711 = vadd.f32 %v2638, %v2710
      %v2712 = vpop.f32.mrb[0].mxu0
      %2713 = vmatprep.mubr.bf16.mxu0 %v2498
      %2714 = vmatmul.mubr.bf16.gmra.mrb[0].mxu0 %v2497
      %v2715 = vpop.f32.mrb[0].mxu0
      %v2716 = vadd.f32 %v2643, %v2715
      %v2717 = vpop.f32.mrb[0].mxu0
      %v2718 = vpop.f32.mrb[0].mxu0
      %v2719 = vadd.f32 %v2646, %v2718
      %v2720 = vpop.f32.mrb[0].mxu0
      %2721 = vmatprep.mubr.bf16.mxu0 %v2507
      %2722 = vmatmul.mubr.bf16.gmra.mrb[0].mxu0 %v2506
      %v2723 = vpop.f32.mrb[0].mxu0
      %v2724 = vadd.f32 %v2651, %v2723
      %v2725 = vpop.f32.mrb[0].mxu0
      %v2726 = vpop.f32.mrb[0].mxu0
      %v2727 = vadd.f32 %v2654, %v2726
      %v2728 = vpop.f32.mrb[0].mxu0
      %2729 = vdwg.mxu0
      %2730 = vmatprep.subr.bf16.mxu0 0
      %2731 = vmatpush1.bf16.msra.mxu0 %v784
      %2732 = vmatprep.subr.bf16.mxu0 0
      %2733 = vmatpush1.bf16.msra.mxu0 %v785
      %2734 = vmatprep.subr.bf16.mxu0 0
      %2735 = vmatpush1.bf16.msra.mxu0 %v786
      %2736 = vmatprep.subr.bf16.mxu0 0
      %2737 = vmatpush1.bf16.msra.mxu0 %v787
      %2738 = vmatprep.subr.bf16.mxu0 0
      %2739 = vmatpush1.bf16.msra.mxu0 %v788
      %2740 = vmatprep.subr.bf16.mxu0 0
      %2741 = vmatpush1.bf16.msra.mxu0 %v789
      %2742 = vmatprep.subr.bf16.mxu0 0
      %2743 = vmatpush1.bf16.msra.mxu0 %v790
      %2744 = vmatprep.subr.bf16.mxu0 0
      %2745 = vmatpush1.bf16.msra.mxu0 %v791
      %2746 = vmatprep.subr.bf16.mxu0 0
      %2747 = vmatpush1.bf16.msra.mxu0 %v792
      %2748 = vmatprep.subr.bf16.mxu0 0
      %2749 = vmatpush1.bf16.msra.mxu0 %v793
      %2750 = vmatprep.subr.bf16.mxu0 0
      %2751 = vmatpush1.bf16.msra.mxu0 %v794
      %2752 = vmatprep.subr.bf16.mxu0 0
      %2753 = vmatpush1.bf16.msra.mxu0 %v795
      %2754 = vmatprep.subr.bf16.mxu0 0
      %2755 = vmatpush1.bf16.msra.mxu0 %v796
      %2756 = vmatprep.subr.bf16.mxu0 0
      %2757 = vmatpush1.bf16.msra.mxu0 %v797
      %2758 = vmatprep.subr.bf16.mxu0 0
      %2759 = vmatpush1.bf16.msra.mxu0 %v798
      %2760 = vmatprep.subr.bf16.mxu0 0
      %2761 = vmatpush1.bf16.msra.mxu0 %v799
      %2762 = vmatprep.mubr.bf16.mxu0 %v2473
      %2763 = vmatmul.mubr.bf16.gmra.mrb[0].mxu0 %v2472
      %v2764 = vpop.f32.mrb[0].mxu0
      %v2765 = vadd.f32 %v2692, %v2764
      %v2766 = vpop.f32.mrb[0].mxu0
      %v2767 = vpop.f32.mrb[0].mxu0
      %v2768 = vadd.f32 %v2695, %v2767
      %v2769 = vpop.f32.mrb[0].mxu0
      %2770 = vmatprep.mubr.bf16.mxu0 %v2482
      %2771 = vmatmul.mubr.bf16.gmra.mrb[0].mxu0 %v2481
      %v2772 = vpop.f32.mrb[0].mxu0
      %v2773 = vadd.f32 %v2700, %v2772
      %v2774 = vpop.f32.mrb[0].mxu0
      %v2775 = vpop.f32.mrb[0].mxu0
      %v2776 = vadd.f32 %v2703, %v2775
      %v2777 = vpop.f32.mrb[0].mxu0
      %2778 = vmatprep.mubr.bf16.mxu0 %v2491
      %2779 = vmatmul.mubr.bf16.gmra.mrb[0].mxu0 %v2490
      %v2780 = vpop.f32.mrb[0].mxu0
      %v2781 = vadd.f32 %v2708, %v2780
      %v2782 = vpop.f32.mrb[0].mxu0
      %v2783 = vpop.f32.mrb[0].mxu0
      %v2784 = vadd.f32 %v2711, %v2783
      %v2785 = vpop.f32.mrb[0].mxu0
      %2786 = vmatprep.mubr.bf16.mxu0 %v2500
      %2787 = vmatmul.mubr.bf16.gmra.mrb[0].mxu0 %v2499
      %v2788 = vpop.f32.mrb[0].mxu0
      %v2789 = vadd.f32 %v2716, %v2788
      %v2790 = vpop.f32.mrb[0].mxu0
      %v2791 = vpop.f32.mrb[0].mxu0
      %v2792 = vadd.f32 %v2719, %v2791
      %v2793 = vpop.f32.mrb[0].mxu0
      %2794 = vmatprep.mubr.bf16.mxu0 %v2509
      %2795 = vmatmul.mubr.bf16.gmra.mrb[0].mxu0 %v2508
      %v2796 = vpop.f32.mrb[0].mxu0
      %v2797 = vadd.f32 %v2724, %v2796
      %v2798 = vpop.f32.mrb[0].mxu0
      %v2799 = vpop.f32.mrb[0].mxu0
      %v2800 = vadd.f32 %v2727, %v2799
      %v2801 = vpop.f32.mrb[0].mxu0
      %2802 = vdwg.mxu0
      %2803 = vmatprep.subr.bf16.mxu0 0
      %2804 = vmatpush1.bf16.msra.mxu0 %v800
      %2805 = vmatprep.subr.bf16.mxu0 0
      %2806 = vmatpush1.bf16.msra.mxu0 %v801
      %2807 = vmatprep.subr.bf16.mxu0 0
      %2808 = vmatpush1.bf16.msra.mxu0 %v802
      %2809 = vmatprep.subr.bf16.mxu0 0
      %2810 = vmatpush1.bf16.msra.mxu0 %v803
      %2811 = vmatprep.subr.bf16.mxu0 0
      %2812 = vmatpush1.bf16.msra.mxu0 %v804
      %2813 = vmatprep.subr.bf16.mxu0 0
      %2814 = vmatpush1.bf16.msra.mxu0 %v805
      %2815 = vmatprep.subr.bf16.mxu0 0
      %2816 = vmatpush1.bf16.msra.mxu0 %v806
      %2817 = vmatprep.subr.bf16.mxu0 0
      %2818 = vmatpush1.bf16.msra.mxu0 %v807
      %2819 = vmatprep.subr.bf16.mxu0 0
      %2820 = vmatpush1.bf16.msra.mxu0 0
      %2821 = vmatprep.subr.bf16.mxu0 0
      %2822 = vmatpush1.bf16.msra.mxu0 0
      %2823 = vmatprep.subr.bf16.mxu0 0
      %2824 = vmatpush1.bf16.msra.mxu0 0
      %2825 = vmatprep.subr.bf16.mxu0 0
      %2826 = vmatpush1.bf16.msra.mxu0 0
      %2827 = vmatprep.subr.bf16.mxu0 0
      %2828 = vmatpush1.bf16.msra.mxu0 0
      %2829 = vmatprep.subr.bf16.mxu0 0
      %2830 = vmatpush1.bf16.msra.mxu0 0
      %2831 = vmatprep.subr.bf16.mxu0 0
      %2832 = vmatpush1.bf16.msra.mxu0 0
      %2833 = vmatprep.subr.bf16.mxu0 0
      %2834 = vmatpush1.bf16.msra.mxu0 0
      %2835 = vmatprep.mubr.bf16.mxu0 0
      %2836 = vmatmul.mubr.bf16.gmra.mrb[0].mxu0 %v2474
      %v2837 = vpop.f32.mrb[0].mxu0
      %v2838 = vadd.f32 %v2765, %v2837
      %v2839 = vpop.f32.mrb[0].mxu0
      %v2840 = vpop.f32.mrb[0].mxu0
      %v2841 = vadd.f32 %v2768, %v2840
      %v2842 = vpop.f32.mrb[0].mxu0
      %2843 = vmatprep.mubr.bf16.mxu0 0
      %2844 = vmatmul.mubr.bf16.gmra.mrb[0].mxu0 %v2483
      %v2845 = vpop.f32.mrb[0].mxu0
      %v2846 = vadd.f32 %v2773, %v2845
      %v2847 = vpop.f32.mrb[0].mxu0
      %v2848 = vpop.f32.mrb[0].mxu0
      %v2849 = vadd.f32 %v2776, %v2848
      %v2850 = vpop.f32.mrb[0].mxu0
      %2851 = vmatprep.mubr.bf16.mxu0 0
      %2852 = vmatmul.mubr.bf16.gmra.mrb[0].mxu0 %v2492
      %v2853 = vpop.f32.mrb[0].mxu0
      %v2854 = vadd.f32 %v2781, %v2853
      %v2855 = vpop.f32.mrb[0].mxu0
      %v2856 = vpop.f32.mrb[0].mxu0
      %v2857 = vadd.f32 %v2784, %v2856
      %v2858 = vpop.f32.mrb[0].mxu0
      %2859 = vmatprep.mubr.bf16.mxu0 0
      %2860 = vmatmul.mubr.bf16.gmra.mrb[0].mxu0 %v2501
      %v2861 = vpop.f32.mrb[0].mxu0
      %v2862 = vadd.f32 %v2789, %v2861
      %v2863 = vpop.f32.mrb[0].mxu0
      %v2864 = vpop.f32.mrb[0].mxu0
      %v2865 = vadd.f32 %v2792, %v2864
      %v2866 = vpop.f32.mrb[0].mxu0
      %2867 = vmatprep.mubr.bf16.mxu0 0
      %2868 = vmatmul.mubr.bf16.gmra.mrb[0].mxu0 %v2510
      %v2869 = vpop.f32.mrb[0].mxu0
      %v2870 = vadd.f32 %v2797, %v2869
      %v2871 = vpop.f32.mrb[0].mxu0
      %v2872 = vpop.f32.mrb[0].mxu0
      %v2873 = vadd.f32 %v2800, %v2872
      %v2874 = vpop.f32.mrb[0].mxu0
      %2875 = vdwg.mxu0
      %v2876 = vmax.f32 %v2838, 0.0
      %v2877 = vmax.f32 %v2841, 0.0
      %v2878 = vmax.f32 %v2846, 0.0
      %v2879 = vmax.f32 %v2849, 0.0
      %v2880 = vmax.f32 %v2854, 0.0
      %v2881 = vmax.f32 %v2857, 0.0
      %v2882 = vmax.f32 %v2862, 0.0
      %v2883 = vmax.f32 %v2865, 0.0
      %v2884 = vmax.f32 %v2870, 0.0
      %v2885 = vmax.f32 %v2873, 0.0
      %v2886 = vpack.c.bf16 %v2877, %v2876
      %v2887 = vpack.c.bf16 %v2879, %v2878
      %v2888 = vpack.c.bf16 %v2881, %v2880
      %v2889 = vpack.c.bf16 %v2883, %v2882
      %v2890 = vpack.c.bf16 %v2885, %v2884
      %v2896 = vunpack.c.l.b16 %v2886
      %v2897 = vunpack.c.h.b16 %v2886
      %v2898 = vunpack.c.l.b16 %v2887
      %v2899 = vunpack.c.h.b16 %v2887
      %v2900 = vunpack.c.l.b16 %v2888
      %v2901 = vunpack.c.h.b16 %v2888
      %v2902 = vunpack.c.l.b16 %v2889
      %v2903 = vunpack.c.h.b16 %v2889
      %v2904 = vunpack.c.l.b16 %v2890
      %v2905 = vunpack.c.h.b16 %v2890
      %v2906 = vpack.c.b16 %v2896, %v2896
      %v2907 = vpack.c.b16 %v2897, %v2897
      %v2908 = vpack.c.b16 %v2898, %v2898
      %v2909 = vpack.c.b16 %v2899, %v2899
      %v2910 = vpack.c.b16 %v2900, %v2900
      %v2911 = vpack.c.b16 %v2901, %v2901
      %v2912 = vpack.c.b16 %v2902, %v2902
      %v2913 = vpack.c.b16 %v2903, %v2903
      %v2914 = vpack.c.b16 %v2904, %v2904
      %v2915 = vpack.c.b16 %v2905, %v2905
      %s2926 = scalar_lea.vmem %s177, 120
      %2927 = vst [vmem:[%s2926] sm:$0xf] %v2906
      %2928 = vst [vmem:[%s2926 + $0x4] sm:$0xf] %v2907
      %2929 = vst [vmem:[%s2926 + $0x8] sm:$0xf] %v2908
      %2930 = vst [vmem:[%s2926 + $0xc] sm:$0xf] %v2909
      %2931 = vst [vmem:[%s2926 + $0x10] sm:$0xf] %v2910
      %2932 = vst [vmem:[%s2926 + $0x14] sm:$0xf] %v2911
      %2933 = vst [vmem:[%s2926 + $0x18] sm:$0xf] %v2912
      %2934 = vst [vmem:[%s2926 + $0x1c] sm:$0xf] %v2913
      %2935 = vst [vmem:[%s2926 + $0x20] sm:$0xf] %v2914
      %2936 = vst [vmem:[%s2926 + $0x24] sm:$0xf] %v2915
      %s2937 = smul.u32 4, %s14
      %p2938 = scmp.lt.s32.totalorder %s2937, 7
      %s2939 = scalar_select %p2938, %s2937, 7
      %s2940 = smul.addr %s2939, 10
      %s2941 = smul.addr %s2940, 4
      %s2942 = scalar_lea.vmem %s3, %s2941
      // Predicated region
      $region33: #{basic_block_2plus1d.4} parent=31 // pred_check
        %p2943 = pneg %p100
      $region34: #{basic_block_2plus1d.4} parent=31 // pred_check_branch
        %2945 = sbr.rel (%p2943) target = $region36
      $region35: #{basic_block_2plus1d.4} parent=31 // pred_region
        %s2946 = smul.u32 4, %s14
      $region36: #{basic_block_2plus1d.4} parent=31 // pred_fallthru
        _
    $region32: #{basic_block_2plus1d.4} parent=5 // pred_fallthru
      _
    %p2947 = scmp.le.s32.totalorder 2, %s9
    // Predicated region
    $region37: #{basic_block_2plus1d.4} parent=5 // pred_check
      %p2948 = pneg %p2947
    $region38: #{basic_block_2plus1d.4} parent=5 // pred_check_branch
      %2950 = sbr.rel (%p2948) target = $region40
    $region39: #{basic_block_2plus1d.4} parent=5 // pred_region
      %s2951 = ssub.s32 %s9, 2
      // Predicated region
      $region41: #{basic_block_2plus1d.4} parent=39 // pred_check
        %p2952 = pneg %p106
      $region42: #{basic_block_2plus1d.4} parent=39 // pred_check_branch
        %2954 = sbr.rel (%p2952) target = $region44
      $region43: #{basic_block_2plus1d.4} parent=39 // pred_region
        %s2955 = smul.u32 4, %s15
        %p2956 = scmp.lt.s32.totalorder %s2955, 7
        %s2957 = scalar_select %p2956, %s2955, 7
        %s2958 = smul.addr %s2957, 10
        %s2959 = smul.addr %s2958, 4
        %s2960 = scalar_lea.vmem %s3, %s2959
      $region44: #{basic_block_2plus1d.4} parent=39 // pred_fallthru
        _
    $region40: #{basic_block_2plus1d.4} parent=5 // pred_fallthru
      _
  $region6: #{basic_block_2plus1d.4} parent=0 // loop_footer
    %s13 = sadd.s32 1, %s9
  $region7: #{basic_block_2plus1d.4} parent=0 // loop_footer_branch
    %8 = sbr.rel target = $region3
  $region8: #{basic_block_2plus1d.4} parent=0 // loop_exit
    _

// kernel: basic_block_2plus1d.7
$region0: #{basic_block_2plus1d.7}
  #allocation0 [shape = 'u32[]', space=smem, size = 0x4, offset = 0x4, fixed_abs, tag = 'smem constant byte address 0x4 - core index']
  #allocation1 [shape = 'u32[144,128]{1,0:T(1,128)}', space=vmem, size = 0x12000, scoped, tag = 'internal scratch']
  %s0 = inlined_call_operand.vmem [shape: bf16[2,480,128], index: 0, kind: input, shape index: {}]
  %s1 = inlined_call_operand.vmem [shape: bf16[384,128], index: 1, kind: input, shape index: {}]
  %s2 = inlined_call_operand.vmem [shape: f32[1,128], index: 2, kind: input, shape index: {}]
  %s3 = inlined_call_operand.vmem [shape: f32[2,320,128], index: 3, kind: input, shape index: {}]
  %s4 = inlined_call_operand.vmem [shape: f32[2,320,128], index: 4, kind: output, shape index: {}]
  %s5 = sld [smem:[#allocation0]]
  $region49: #{basic_block_2plus1d.7} parent=0
    _
  %s7 = ssub.s32 1, %s5
  %s8 = scalar_select 0, %s7, %s5
  loop: start=0, step=1, limit=4
  $region2: #{basic_block_2plus1d.7} parent=0 // loop_pre_header
    _
  $region3: #{basic_block_2plus1d.7} parent=0 // loop_header
    %s10 = sphi 0, %s14
    %p11 = scmp.ge.s32.totalorder %s10, 4
    %s20 = sphi 0, %s22
    %s23 = sphi 0, %s20
    %s24 = sphi 0, %s23
    %s40 = sphi 0, %s24
    %s44 = sphi 0, %s44
    %s46 = sphi 0, %s44
    %s47 = sphi 0, %s46
    %s61 = sphi 0, %s47
    %s65 = sphi 0, %s65
    %s67 = sphi 0, %s65
    %s68 = sphi 0, %s67
    %s82 = sphi 0, %s68
    %s88 = sphi 0, %s90
    %s91 = sphi 0, %s88
    %s92 = sphi 0, %s91
    %s108 = sphi 0, %s92
    %s114 = sphi 0, %s116
    %s117 = sphi 0, %s114
    %s118 = sphi 0, %s117
    %s134 = sphi 0, %s118
  $region4: #{basic_block_2plus1d.7} parent=0 // loop_header_branch
    %13 = sbr.rel (%p11) target = $region8
  $region5: #{basic_block_2plus1d.7} parent=0 // loop_body
    %s15 = ssub.s32 %s10, 1
    %s16 = ssub.s32 %s10, 2
    %s17 = sadd.s32 %s10, 1
    %s18 = ssub.s32 %s10, %s17
    %p19 = scmp.eq.s32.totalorder %s18, 0
    %s21 = sadd.s32 %s20, 1
    %s22 = scalar_select %p19, %s20, %s21
    %p25 = pneg %p19
    %p26 = scmp.eq.s32.totalorder %s10, 1
    %p27 = por %p25, %p26
    %p28 = scmp.ne.s32.totalorder %s20, %s23
    %p29 = scmp.eq.s32.totalorder %s10, 0
    %p30 = por %p28, %p29
    %p31 = scmp.ne.s32.totalorder %s20, %s23
    %p32 = scmp.eq.s32.totalorder %s15, 1
    %p33 = por %p31, %p32
    %p34 = scmp.ne.s32.totalorder %s23, %s24
    %p35 = scmp.eq.s32.totalorder %s15, 0
    %p36 = por %p34, %p35
    %p37 = scmp.ne.s32.totalorder %s23, %s24
    %p38 = scmp.eq.s32.totalorder %s16, 1
    %p39 = por %p37, %p38
    %p41 = scmp.ne.s32.totalorder %s24, %s40
    %p42 = scmp.eq.s32.totalorder %s16, 0
    %p43 = por %p41, %p42
    %s45 = sadd.s32 %s44, 1
    %p48 = scmp.eq.s32.totalorder %s10, 1
    %p49 = scmp.ne.s32.totalorder %s44, %s46
    %p50 = scmp.eq.s32.totalorder %s10, 0
    %p51 = por %p49, %p50
    %p52 = scmp.ne.s32.totalorder %s44, %s46
    %p53 = scmp.eq.s32.totalorder %s15, 1
    %p54 = por %p52, %p53
    %p55 = scmp.ne.s32.totalorder %s46, %s47
    %p56 = scmp.eq.s32.totalorder %s15, 0
    %p57 = por %p55, %p56
    %p58 = scmp.ne.s32.totalorder %s46, %s47
    %p59 = scmp.eq.s32.totalorder %s16, 1
    %p60 = por %p58, %p59
    %p62 = scmp.ne.s32.totalorder %s47, %s61
    %p63 = scmp.eq.s32.totalorder %s16, 0
    %p64 = por %p62, %p63
    %s66 = sadd.s32 %s65, 1
    %p69 = scmp.eq.s32.totalorder %s10, 1
    %p70 = scmp.ne.s32.totalorder %s65, %s67
    %p71 = scmp.eq.s32.totalorder %s10, 0
    %p72 = por %p70, %p71
    %p73 = scmp.ne.s32.totalorder %s65, %s67
    %p74 = scmp.eq.s32.totalorder %s15, 1
    %p75 = por %p73, %p74
    %p76 = scmp.ne.s32.totalorder %s67, %s68
    %p77 = scmp.eq.s32.totalorder %s15, 0
    %p78 = por %p76, %p77
    %p79 = scmp.ne.s32.totalorder %s67, %s68
    %p80 = scmp.eq.s32.totalorder %s16, 1
    %p81 = por %p79, %p80
    %p83 = scmp.ne.s32.totalorder %s68, %s82
    %p84 = scmp.eq.s32.totalorder %s16, 0
    %p85 = por %p83, %p84
    %s86 = ssub.s32 %s10, %s17
    %p87 = scmp.eq.s32.totalorder %s86, 0
    %s89 = sadd.s32 %s88, 1
    %s90 = scalar_select %p87, %s88, %s89
    %p93 = pneg %p87
    %p94 = scmp.eq.s32.totalorder %s10, 1
    %p95 = por %p93, %p94
    %p96 = scmp.ne.s32.totalorder %s88, %s91
    %p97 = scmp.eq.s32.totalorder %s10, 0
    %p98 = por %p96, %p97
    %p99 = scmp.ne.s32.totalorder %s88, %s91
    %p100 = scmp.eq.s32.totalorder %s15, 1
    %p101 = por %p99, %p100
    %p102 = scmp.ne.s32.totalorder %s91, %s92
    %p103 = scmp.eq.s32.totalorder %s15, 0
    %p104 = por %p102, %p103
    %p105 = scmp.ne.s32.totalorder %s91, %s92
    %p106 = scmp.eq.s32.totalorder %s16, 1
    %p107 = por %p105, %p106
    %p109 = scmp.ne.s32.totalorder %s92, %s108
    %p110 = scmp.eq.s32.totalorder %s16, 0
    %p111 = por %p109, %p110
    %s112 = ssub.s32 %s10, %s17
    %p113 = scmp.eq.s32.totalorder %s112, 0
    %s115 = sadd.s32 %s114, 1
    %s116 = scalar_select %p113, %s114, %s115
    %p119 = pneg %p113
    %p120 = scmp.eq.s32.totalorder %s10, 1
    %p121 = por %p119, %p120
    %p122 = scmp.ne.s32.totalorder %s114, %s117
    %p123 = scmp.eq.s32.totalorder %s10, 0
    %p124 = por %p122, %p123
    %p125 = scmp.ne.s32.totalorder %s114, %s117
    %p126 = scmp.eq.s32.totalorder %s15, 1
    %p127 = por %p125, %p126
    %p128 = scmp.ne.s32.totalorder %s117, %s118
    %p129 = scmp.eq.s32.totalorder %s15, 0
    %p130 = por %p128, %p129
    %p131 = scmp.ne.s32.totalorder %s117, %s118
    %p132 = scmp.eq.s32.totalorder %s16, 1
    %p133 = por %p131, %p132
    %p135 = scmp.ne.s32.totalorder %s118, %s134
    %p136 = scmp.eq.s32.totalorder %s16, 0
    %p137 = por %p135, %p136
    %p138 = scmp.le.s32.totalorder 1, %s10
    %p139 = scmp.lt.s32.totalorder %s10, 3
    %p140 = pnand %p138, %p139
    %p141 = pneg %p140
    // Predicated region
    $region9: #{basic_block_2plus1d.7} parent=5 // pred_check
      _
    $region10: #{basic_block_2plus1d.7} parent=5 // pred_check_branch
      %143 = sbr.rel (%p140) target = $region12
    $region11: #{basic_block_2plus1d.7} parent=5 // pred_region
      %s144 = ssub.s32 %s10, 1
      // Predicated region
      $region13: #{basic_block_2plus1d.7} parent=11 // pred_check
        %p145 = pneg %p57
      $region14: #{basic_block_2plus1d.7} parent=11 // pred_check_branch
        %147 = sbr.rel (%p145) target = $region16
      $region15: #{basic_block_2plus1d.7} parent=11 // pred_region
        _
      $region16: #{basic_block_2plus1d.7} parent=11 // pred_fallthru
        _
      // Predicated region
      $region17: #{basic_block_2plus1d.7} parent=11 // pred_check
        %p148 = pneg %p78
      $region18: #{basic_block_2plus1d.7} parent=11 // pred_check_branch
        %150 = sbr.rel (%p148) target = $region20
      $region19: #{basic_block_2plus1d.7} parent=11 // pred_region
        _
      $region20: #{basic_block_2plus1d.7} parent=11 // pred_fallthru
        _
    $region12: #{basic_block_2plus1d.7} parent=5 // pred_fallthru
      _
    %p151 = scmp.lt.s32.totalorder %s10, 2
    // Predicated region
    $region21: #{basic_block_2plus1d.7} parent=5 // pred_check
      %p152 = pneg %p151
    $region22: #{basic_block_2plus1d.7} parent=5 // pred_check_branch
      %154 = sbr.rel (%p152) target = $region24
    $region23: #{basic_block_2plus1d.7} parent=5 // pred_region
      // Predicated region
      $region25: #{basic_block_2plus1d.7} parent=23 // pred_check
        %p155 = pneg %p30
      $region26: #{basic_block_2plus1d.7} parent=23 // pred_check_branch
        %157 = sbr.rel (%p155) target = $region28
      $region27: #{basic_block_2plus1d.7} parent=23 // pred_region
        %p158 = scmp.lt.s32.totalorder %s10, 1
        %s159 = scalar_select %p158, %s10, 1
        %s160 = smul.addr %s159, 60
        %s161 = smul.addr %s160, 4
        %s162 = scalar_lea.vmem %s0, %s161
      $region28: #{basic_block_2plus1d.7} parent=23 // pred_fallthru
        _
      // Predicated region
      $region29: #{basic_block_2plus1d.7} parent=23 // pred_check
        %p163 = pneg %p98
      $region30: #{basic_block_2plus1d.7} parent=23 // pred_check_branch
        %165 = sbr.rel (%p163) target = $region32
      $region31: #{basic_block_2plus1d.7} parent=23 // pred_region
        %p166 = scmp.lt.s32.totalorder %s10, 1
        %s167 = scalar_select %p166, %s10, 1
        %s168 = smul.addr %s167, 40
        %s169 = smul.addr %s168, 8
        %s170 = scalar_lea.vmem %s3, %s169
      $region32: #{basic_block_2plus1d.7} parent=23 // pred_fallthru
        _
    $region24: #{basic_block_2plus1d.7} parent=5 // pred_fallthru
      _
    %p171 = scmp.le.s32.totalorder 1, %s10
    %p172 = scmp.lt.s32.totalorder %s10, 3
    %p173 = pnand %p171, %p172
    %p174 = pneg %p173
    // Predicated region
    $region33: #{basic_block_2plus1d.7} parent=5 // pred_check
      _
    $region34: #{basic_block_2plus1d.7} parent=5 // pred_check_branch
      %176 = sbr.rel (%p173) target = $region36
    $region35: #{basic_block_2plus1d.7} parent=5 // pred_region
      %s177 = ssub.s32 %s10, 1
      %p178 = scmp.lt.s32.totalorder %s15, 1
      %s179 = scalar_select %p178, %s15, 1
      %s180 = smul.addr %s179, 60
      %s181 = smul.addr %s180, 4
      %s182 = scalar_lea.vmem %s0, %s181
      %p183 = pneg %p36
      %p184 = pneg %p33
      %p185 = pneg %p57
      %p186 = pneg %p54
      %p187 = pneg %p78
      %p188 = pneg %p75
      %p189 = scmp.lt.s32.totalorder %s15, 1
      %s190 = scalar_select %p189, %s15, 1
      %s191 = smul.addr %s190, 40
      %s192 = smul.addr %s191, 8
      %s193 = scalar_lea.vmem %s3, %s192
      %p194 = pneg %p104
      %p195 = pneg %p101
      %p196 = pneg %p130
      %p197 = pneg %p127
      %p198 = scmp.lt.s32.totalorder %s15, 1
      %s199 = scalar_select %p198, %s15, 1
      %s200 = smul.addr %s199, 40
      %s201 = smul.addr %s200, 8
      %s202 = scalar_lea.vmem %s4, %s201
      %p203 = scmp.lt.s32.totalorder %s15, 1
      %s204 = scalar_select %p203, %s15, 1
      %s205 = smul.addr %s204, 60
      %s206 = smul.addr %s205, 4
      %s207 = scalar_lea.vmem %s0, %s206
      %p208 = scmp.lt.s32.totalorder %s15, 1
      %s209 = scalar_select %p208, %s15, 1
      %s210 = smul.addr %s209, 40
      %s211 = smul.addr %s210, 8
      %s212 = scalar_lea.vmem %s3, %s211
      %p213 = scmp.lt.s32.totalorder %s15, 1
      %s214 = scalar_select %p213, %s15, 1
      %s215 = smul.addr %s214, 40
      %s216 = smul.addr %s215, 8
      %s217 = scalar_lea.vmem %s4, %s216
      %v219 = vld [vmem:[%s1] sm:$0xf]
      %v220 = vld [vmem:[%s1 + $0x4] sm:$0xf]
      %v221 = vld [vmem:[%s1 + $0x8] sm:$0xf]
      %v222 = vld [vmem:[%s1 + $0xc] sm:$0xf]
      %v223 = vld [vmem:[%s1 + $0x10] sm:$0xf]
      %v224 = vld [vmem:[%s1 + $0x14] sm:$0xf]
      %v225 = vld [vmem:[%s1 + $0x18] sm:$0xf]
      %v226 = vld [vmem:[%s1 + $0x1c] sm:$0xf]
      %v227 = vld [vmem:[%s1 + $0x20] sm:$0xf]
      %v228 = vld [vmem:[%s1 + $0x24] sm:$0xf]
      %v229 = vld [vmem:[%s1 + $0x28] sm:$0xf]
      %v230 = vld [vmem:[%s1 + $0x2c] sm:$0xf]
      %v231 = vld [vmem:[%s1 + $0x30] sm:$0xf]
      %v232 = vld [vmem:[%s1 + $0x34] sm:$0xf]
      %v233 = vld [vmem:[%s1 + $0x38] sm:$0xf]
      %v234 = vld [vmem:[%s1 + $0x3c] sm:$0xf]
      %v235 = vld [vmem:[%s1 + $0x40] sm:$0xf]
      %v236 = vld [vmem:[%s1 + $0x44] sm:$0xf]
      %v237 = vld [vmem:[%s1 + $0x48] sm:$0xf]
      %v238 = vld [vmem:[%s1 + $0x4c] sm:$0xf]
      %v239 = vld [vmem:[%s1 + $0x50] sm:$0xf]
      %v240 = vld [vmem:[%s1 + $0x54] sm:$0xf]
      %v241 = vld [vmem:[%s1 + $0x58] sm:$0xf]
      %v242 = vld [vmem:[%s1 + $0x5c] sm:$0xf]
      %v243 = vld [vmem:[%s1 + $0x60] sm:$0xf]
      %v244 = vld [vmem:[%s1 + $0x64] sm:$0xf]
      %v245 = vld [vmem:[%s1 + $0x68] sm:$0xf]
      %v246 = vld [vmem:[%s1 + $0x6c] sm:$0xf]
      %v247 = vld [vmem:[%s1 + $0x70] sm:$0xf]
      %v248 = vld [vmem:[%s1 + $0x74] sm:$0xf]
      %v249 = vld [vmem:[%s1 + $0x78] sm:$0xf]
      %v250 = vld [vmem:[%s1 + $0x7c] sm:$0xf]
      %v251 = vld [vmem:[%s1 + $0x80] sm:$0xf]
      %v252 = vld [vmem:[%s1 + $0x84] sm:$0xf]
      %v253 = vld [vmem:[%s1 + $0x88] sm:$0xf]
      %v254 = vld [vmem:[%s1 + $0x8c] sm:$0xf]
      %v255 = vld [vmem:[%s1 + $0x90] sm:$0xf]
      %v256 = vld [vmem:[%s1 + $0x94] sm:$0xf]
      %v257 = vld [vmem:[%s1 + $0x98] sm:$0xf]
      %v258 = vld [vmem:[%s1 + $0x9c] sm:$0xf]
      %v259 = vld [vmem:[%s1 + $0xa0] sm:$0xf]
      %v260 = vld [vmem:[%s1 + $0xa4] sm:$0xf]
      %v261 = vld [vmem:[%s1 + $0xa8] sm:$0xf]
      %v262 = vld [vmem:[%s1 + $0xac] sm:$0xf]
      %v263 = vld [vmem:[%s1 + $0xb0] sm:$0xf]
      %v264 = vld [vmem:[%s1 + $0xb4] sm:$0xf]
      %v265 = vld [vmem:[%s1 + $0xb8] sm:$0xf]
      %v266 = vld [vmem:[%s1 + $0xbc] sm:$0xf]
      %v267 = vld [vmem:[%s2] sm:$0x1]
      %v268 = vld [vmem:[%s207] sm:$0xf]
      %v269 = vld [vmem:[%s207 + $0x4] sm:$0xf]
      %v270 = vld [vmem:[%s207 + $0x8] sm:$0xf]
      %v271 = vld [vmem:[%s207 + $0xc] sm:$0xf]
      %v272 = vld [vmem:[%s207 + $0x10] sm:$0xf]
      %v273 = vld [vmem:[%s207 + $0x14] sm:$0xf]
      %v274 = vld [vmem:[%s207 + $0x18] sm:$0xf]
      %v275 = vld [vmem:[%s207 + $0x1c] sm:$0xf]
      %v276 = vld [vmem:[%s207 + $0x20] sm:$0xf]
      %v277 = vld [vmem:[%s207 + $0x24] sm:$0xf]
      %v278 = vld [vmem:[%s207 + $0x28] sm:$0xf]
      %v279 = vld [vmem:[%s207 + $0x2c] sm:$0xf]
      %v280 = vld [vmem:[%s207 + $0x30] sm:$0xf]
      %v281 = vld [vmem:[%s207 + $0x34] sm:$0xf]
      %v282 = vld [vmem:[%s207 + $0x38] sm:$0xf]
      %v283 = vld [vmem:[%s207 + $0x3c] sm:$0xf]
      %v284 = vld [vmem:[%s207 + $0x40] sm:$0xf]
      %v285 = vld [vmem:[%s207 + $0x44] sm:$0xf]
      %v286 = vld [vmem:[%s207 + $0x48] sm:$0xf]
      %v287 = vld [vmem:[%s207 + $0x4c] sm:$0xf]
      %v288 = vld [vmem:[%s207 + $0x50] sm:$0xf]
      %v289 = vld [vmem:[%s207 + $0x54] sm:$0xf]
      %v290 = vld [vmem:[%s207 + $0x58] sm:$0xf]
      %v291 = vld [vmem:[%s207 + $0x5c] sm:$0xf]
      %v292 = vld [vmem:[%s207 + $0x60] sm:$0xf]
      %v293 = vld [vmem:[%s207 + $0x64] sm:$0xf]
      %v294 = vld [vmem:[%s207 + $0x68] sm:$0xf]
      %v295 = vld [vmem:[%s207 + $0x6c] sm:$0xf]
      %v296 = vld [vmem:[%s207 + $0x70] sm:$0xf]
      %v297 = vld [vmem:[%s207 + $0x74] sm:$0xf]
      %v298 = vld [vmem:[%s207 + $0x78] sm:$0xf]
      %v299 = vld [vmem:[%s207 + $0x7c] sm:$0xf]
      %v300 = vld [vmem:[%s207 + $0x80] sm:$0xf]
      %v301 = vld [vmem:[%s207 + $0x84] sm:$0xf]
      %v302 = vld [vmem:[%s207 + $0x88] sm:$0xf]
      %v303 = vld [vmem:[%s207 + $0x8c] sm:$0xf]
      %v304 = vld [vmem:[%s207 + $0x90] sm:$0xf]
      %v305 = vld [vmem:[%s207 + $0x94] sm:$0xf]
      %v306 = vld [vmem:[%s207 + $0x98] sm:$0xf]
      %v307 = vld [vmem:[%s207 + $0x9c] sm:$0xf]
      %v308 = vld [vmem:[%s207 + $0xa0] sm:$0xf]
      %v309 = vld [vmem:[%s207 + $0xa4] sm:$0xf]
      %v310 = vld [vmem:[%s207 + $0xa8] sm:$0xf]
      %v311 = vld [vmem:[%s207 + $0xac] sm:$0xf]
      %v312 = vld [vmem:[%s207 + $0xb0] sm:$0xf]
      %v313 = vld [vmem:[%s207 + $0xb4] sm:$0xf]
      %v314 = vld [vmem:[%s207 + $0xb8] sm:$0xf]
      %v315 = vld [vmem:[%s207 + $0xbc] sm:$0xf]
      %v316 = vld [vmem:[%s207 + $0xc0] sm:$0xf]
      %v317 = vld [vmem:[%s207 + $0xc4] sm:$0xf]
      %v318 = vld [vmem:[%s207 + $0x50] sm:$0xf]
      %v319 = vld [vmem:[%s207 + $0x54] sm:$0xf]
      %v320 = vld [vmem:[%s207 + $0x58] sm:$0xf]
      %v321 = vld [vmem:[%s207 + $0x5c] sm:$0xf]
      %v322 = vld [vmem:[%s207 + $0x60] sm:$0xf]
      %v323 = vld [vmem:[%s207 + $0x64] sm:$0xf]
      %v324 = vld [vmem:[%s207 + $0x68] sm:$0xf]
      %v325 = vld [vmem:[%s207 + $0x6c] sm:$0xf]
      %v326 = vld [vmem:[%s207 + $0x70] sm:$0xf]
      %v327 = vld [vmem:[%s207 + $0x74] sm:$0xf]
      %v328 = vld [vmem:[%s207 + $0x78] sm:$0xf]
      %v329 = vld [vmem:[%s207 + $0x7c] sm:$0xf]
      %v330 = vld [vmem:[%s207 + $0x80] sm:$0xf]
      %v331 = vld [vmem:[%s207 + $0x84] sm:$0xf]
      %v332 = vld [vmem:[%s207 + $0x88] sm:$0xf]
      %v333 = vld [vmem:[%s207 + $0x8c] sm:$0xf]
      %v334 = vld [vmem:[%s207 + $0x90] sm:$0xf]
      %v335 = vld [vmem:[%s207 + $0x94] sm:$0xf]
      %v336 = vld [vmem:[%s207 + $0x98] sm:$0xf]
      %v337 = vld [vmem:[%s207 + $0x9c] sm:$0xf]
      %v338 = vld [vmem:[%s207 + $0xa0] sm:$0xf]
      %v339 = vld [vmem:[%s207 + $0xa4] sm:$0xf]
      %v340 = vld [vmem:[%s207 + $0xa8] sm:$0xf]
      %v341 = vld [vmem:[%s207 + $0xac] sm:$0xf]
      %v342 = vld [vmem:[%s207 + $0xb0] sm:$0xf]
      %v343 = vld [vmem:[%s207 + $0xb4] sm:$0xf]
      %v344 = vld [vmem:[%s207 + $0xb8] sm:$0xf]
      %v345 = vld [vmem:[%s207 + $0xbc] sm:$0xf]
      %v346 = vld [vmem:[%s207 + $0xc0] sm:$0xf]
      %v347 = vld [vmem:[%s207 + $0xc4] sm:$0xf]
      %v348 = vld [vmem:[%s207 + $0xc8] sm:$0xf]
      %v349 = vld [vmem:[%s207 + $0xcc] sm:$0xf]
      %v350 = vld [vmem:[%s207 + $0xd0] sm:$0xf]
      %v351 = vld [vmem:[%s207 + $0xd4] sm:$0xf]
      %v352 = vld [vmem:[%s207 + $0xd8] sm:$0xf]
      %v353 = vld [vmem:[%s207 + $0xdc] sm:$0xf]
      %v354 = vld [vmem:[%s207 + $0xe0] sm:$0xf]
      %v355 = vld [vmem:[%s207 + $0xe4] sm:$0xf]
      %v356 = vld [vmem:[%s207 + $0xe8] sm:$0xf]
      %v357 = vld [vmem:[%s207 + $0xec] sm:$0xf]
      %v398 = vunpack.c.l.b16 %v268
      %v399 = vunpack.c.l.b16 %v269
      %v400 = vunpack.c.l.b16 %v270
      %v401 = vunpack.c.l.b16 %v271
      %v402 = vunpack.c.l.b16 %v272
      %v403 = vunpack.c.l.b16 %v273
      %v404 = vunpack.c.l.b16 %v274
      %v405 = vunpack.c.l.b16 %v275
      %v406 = vunpack.c.l.b16 %v276
      %v407 = vunpack.c.l.b16 %v277
      %v408 = vunpack.c.l.b16 %v278
      %v409 = vunpack.c.l.b16 %v279
      %v410 = vunpack.c.l.b16 %v280
      %v411 = vunpack.c.l.b16 %v281
      %v412 = vunpack.c.l.b16 %v282
      %v413 = vunpack.c.l.b16 %v283
      %v414 = vunpack.c.l.b16 %v284
      %v415 = vunpack.c.l.b16 %v285
      %v416 = vunpack.c.l.b16 %v286
      %v417 = vunpack.c.l.b16 %v287
      %v418 = vunpack.c.l.b16 %v288
      %v419 = vunpack.c.l.b16 %v289
      %v420 = vunpack.c.l.b16 %v290
      %v421 = vunpack.c.l.b16 %v291
      %v422 = vunpack.c.l.b16 %v292
      %v423 = vunpack.c.l.b16 %v293
      %v424 = vunpack.c.l.b16 %v294
      %v425 = vunpack.c.l.b16 %v295
      %v426 = vunpack.c.l.b16 %v296
      %v427 = vunpack.c.l.b16 %v297
      %v428 = vunpack.c.l.b16 %v298
      %v429 = vunpack.c.l.b16 %v299
      %v430 = vunpack.c.l.b16 %v300
      %v431 = vunpack.c.l.b16 %v301
      %v432 = vunpack.c.l.b16 %v302
      %v433 = vunpack.c.l.b16 %v303
      %v434 = vunpack.c.l.b16 %v304
      %v435 = vunpack.c.l.b16 %v305
      %v436 = vunpack.c.l.b16 %v306
      %v437 = vunpack.c.l.b16 %v307
      %v438 = vpack.c.b16 %v399, %v398
      %v439 = vpack.c.b16 %v401, %v400
      %v440 = vpack.c.b16 %v403, %v402
      %v441 = vpack.c.b16 %v405, %v404
      %v442 = vpack.c.b16 %v407, %v406
      %v443 = vpack.c.b16 %v409, %v408
      %v444 = vpack.c.b16 %v411, %v410
      %v445 = vpack.c.b16 %v413, %v412
      %v446 = vpack.c.b16 %v415, %v414
      %v447 = vpack.c.b16 %v417, %v416
      %v448 = vpack.c.b16 %v419, %v418
      %v449 = vpack.c.b16 %v421, %v420
      %v450 = vpack.c.b16 %v423, %v422
      %v451 = vpack.c.b16 %v425, %v424
      %v452 = vpack.c.b16 %v427, %v426
      %v453 = vpack.c.b16 %v429, %v428
      %v454 = vpack.c.b16 %v431, %v430
      %v455 = vpack.c.b16 %v433, %v432
      %v456 = vpack.c.b16 %v435, %v434
      %v457 = vpack.c.b16 %v437, %v436
      %v488 = vunpack.c.l.b16 %v308
      %v489 = vunpack.c.l.b16 %v309
      %v490 = vunpack.c.l.b16 %v310
      %v491 = vunpack.c.l.b16 %v311
      %v492 = vunpack.c.l.b16 %v312
      %v493 = vunpack.c.l.b16 %v313
      %v494 = vunpack.c.l.b16 %v314
      %v495 = vunpack.c.l.b16 %v315
      %v496 = vunpack.c.l.b16 %v316
      %v497 = vunpack.c.l.b16 %v317
      %v498 = vpack.c.b16 %v489, %v488
      %v499 = vpack.c.b16 %v491, %v490
      %v500 = vpack.c.b16 %v493, %v492
      %v501 = vpack.c.b16 %v495, %v494
      %v502 = vpack.c.b16 %v497, %v496
      %v548 = vunpack.c.l.b16 %v318
      %v549 = vunpack.c.l.b16 %v319
      %v550 = vunpack.c.l.b16 %v320
      %v551 = vunpack.c.l.b16 %v321
      %v552 = vunpack.c.l.b16 %v322
      %v553 = vunpack.c.l.b16 %v323
      %v554 = vunpack.c.l.b16 %v324
      %v555 = vunpack.c.l.b16 %v325
      %v556 = vunpack.c.l.b16 %v326
      %v557 = vunpack.c.l.b16 %v327
      %v558 = vunpack.c.l.b16 %v328
      %v559 = vunpack.c.l.b16 %v329
      %v560 = vunpack.c.l.b16 %v330
      %v561 = vunpack.c.l.b16 %v331
      %v562 = vunpack.c.l.b16 %v332
      %v563 = vunpack.c.l.b16 %v333
      %v564 = vunpack.c.l.b16 %v334
      %v565 = vunpack.c.l.b16 %v335
      %v566 = vunpack.c.l.b16 %v336
      %v567 = vunpack.c.l.b16 %v337
      %v568 = vunpack.c.l.b16 %v338
      %v569 = vunpack.c.l.b16 %v339
      %v570 = vunpack.c.l.b16 %v340
      %v571 = vunpack.c.l.b16 %v341
      %v572 = vunpack.c.l.b16 %v342
      %v573 = vunpack.c.l.b16 %v343
      %v574 = vunpack.c.l.b16 %v344
      %v575 = vunpack.c.l.b16 %v345
      %v576 = vunpack.c.l.b16 %v346
      %v577 = vunpack.c.l.b16 %v347
      %v578 = vunpack.c.l.b16 %v348
      %v579 = vunpack.c.l.b16 %v349
      %v580 = vunpack.c.l.b16 %v350
      %v581 = vunpack.c.l.b16 %v351
      %v582 = vunpack.c.l.b16 %v352
      %v583 = vunpack.c.l.b16 %v353
      %v584 = vunpack.c.l.b16 %v354
      %v585 = vunpack.c.l.b16 %v355
      %v586 = vunpack.c.l.b16 %v356
      %v587 = vunpack.c.l.b16 %v357
      %v588 = vpack.c.b16 %v549, %v548
      %v589 = vpack.c.b16 %v551, %v550
      %v590 = vpack.c.b16 %v553, %v552
      %v591 = vpack.c.b16 %v555, %v554
      %v592 = vpack.c.b16 %v557, %v556
      %v593 = vpack.c.b16 %v559, %v558
      %v594 = vpack.c.b16 %v561, %v560
      %v595 = vpack.c.b16 %v563, %v562
      %v596 = vpack.c.b16 %v565, %v564
      %v597 = vpack.c.b16 %v567, %v566
      %v598 = vpack.c.b16 %v569, %v568
      %v599 = vpack.c.b16 %v571, %v570
      %v600 = vpack.c.b16 %v573, %v572
      %v601 = vpack.c.b16 %v575, %v574
      %v602 = vpack.c.b16 %v577, %v576
      %v603 = vpack.c.b16 %v579, %v578
      %v604 = vpack.c.b16 %v581, %v580
      %v605 = vpack.c.b16 %v583, %v582
      %v606 = vpack.c.b16 %v585, %v584
      %v607 = vpack.c.b16 %v587, %v586
      %v629 = vlaneseq
      %v630 = vshrl.u32 %v629, 7
      %v631 = vsub.s32 0, %v630
      %v632 = vrot.slane %v267, %v631
      %v682 = vunpack.c.l.b16 %v219
      %v683 = vunpack.c.l.b16 %v220
      %v684 = vunpack.c.l.b16 %v221
      %v685 = vunpack.c.l.b16 %v222
      %v686 = vunpack.c.l.b16 %v223
      %v687 = vunpack.c.l.b16 %v224
      %v688 = vunpack.c.l.b16 %v225
      %v689 = vunpack.c.l.b16 %v226
      %v690 = vunpack.c.l.b16 %v227
      %v691 = vunpack.c.l.b16 %v228
      %v692 = vunpack.c.l.b16 %v229
      %v693 = vunpack.c.l.b16 %v230
      %v694 = vunpack.c.l.b16 %v231
      %v695 = vunpack.c.l.b16 %v232
      %v696 = vunpack.c.l.b16 %v233
      %v697 = vunpack.c.l.b16 %v234
      %v698 = vunpack.c.l.b16 %v235
      %v699 = vunpack.c.l.b16 %v236
      %v700 = vunpack.c.l.b16 %v237
      %v701 = vunpack.c.l.b16 %v238
      %v702 = vunpack.c.l.b16 %v239
      %v703 = vunpack.c.l.b16 %v240
      %v704 = vunpack.c.l.b16 %v241
      %v705 = vunpack.c.l.b16 %v242
      %v706 = vunpack.c.l.b16 %v243
      %v707 = vunpack.c.l.b16 %v244
      %v708 = vunpack.c.l.b16 %v245
      %v709 = vunpack.c.l.b16 %v246
      %v710 = vunpack.c.l.b16 %v247
      %v711 = vunpack.c.l.b16 %v248
      %v712 = vunpack.c.l.b16 %v249
      %v713 = vunpack.c.l.b16 %v250
      %v714 = vunpack.c.l.b16 %v251
      %v715 = vunpack.c.l.b16 %v252
      %v716 = vunpack.c.l.b16 %v253
      %v717 = vunpack.c.l.b16 %v254
      %v718 = vunpack.c.l.b16 %v255
      %v719 = vunpack.c.l.b16 %v256
      %v720 = vunpack.c.l.b16 %v257
      %v721 = vunpack.c.l.b16 %v258
      %v722 = vunpack.c.l.b16 %v259
      %v723 = vunpack.c.l.b16 %v260
      %v724 = vunpack.c.l.b16 %v261
      %v725 = vunpack.c.l.b16 %v262
      %v726 = vunpack.c.l.b16 %v263
      %v727 = vunpack.c.l.b16 %v264
      %v728 = vunpack.c.l.b16 %v265
      %v729 = vunpack.c.l.b16 %v266
      %v730 = vpack.c.b16 %v683, %v682
      %v731 = vpack.c.b16 %v685, %v684
      %v732 = vpack.c.b16 %v687, %v686
      %v733 = vpack.c.b16 %v689, %v688
      %v734 = vpack.c.b16 %v691, %v690
      %v735 = vpack.c.b16 %v693, %v692
      %v736 = vpack.c.b16 %v695, %v694
      %v737 = vpack.c.b16 %v697, %v696
      %v738 = vpack.c.b16 %v699, %v698
      %v739 = vpack.c.b16 %v701, %v700
      %v740 = vpack.c.b16 %v703, %v702
      %v741 = vpack.c.b16 %v705, %v704
      %v742 = vpack.c.b16 %v707, %v706
      %v743 = vpack.c.b16 %v709, %v708
      %v744 = vpack.c.b16 %v711, %v710
      %v745 = vpack.c.b16 %v713, %v712
      %v746 = vpack.c.b16 %v715, %v714
      %v747 = vpack.c.b16 %v717, %v716
      %v748 = vpack.c.b16 %v719, %v718
      %v749 = vpack.c.b16 %v721, %v720
      %v750 = vpack.c.b16 %v723, %v722
      %v751 = vpack.c.b16 %v725, %v724
      %v752 = vpack.c.b16 %v727, %v726
      %v753 = vpack.c.b16 %v729, %v728
      %778 = vmatprep.subr.bf16.mxu0 0
      %779 = vmatpush1.bf16.msra.mxu0 %v730
      %780 = vmatprep.subr.bf16.mxu0 0
      %781 = vmatpush1.bf16.msra.mxu0 %v731
      %782 = vmatprep.subr.bf16.mxu0 0
      %783 = vmatpush1.bf16.msra.mxu0 %v732
      %784 = vmatprep.subr.bf16.mxu0 0
      %785 = vmatpush1.bf16.msra.mxu0 %v733
      %786 = vmatprep.subr.bf16.mxu0 0
      %787 = vmatpush1.bf16.msra.mxu0 %v734
      %788 = vmatprep.subr.bf16.mxu0 0
      %789 = vmatpush1.bf16.msra.mxu0 %v735
      %790 = vmatprep.subr.bf16.mxu0 0
      %791 = vmatpush1.bf16.msra.mxu0 %v736
      %792 = vmatprep.subr.bf16.mxu0 0
      %793 = vmatpush1.bf16.msra.mxu0 %v737
      %794 = vmatprep.subr.bf16.mxu0 0
      %795 = vmatpush1.bf16.msra.mxu0 %v738
      %796 = vmatprep.subr.bf16.mxu0 0
      %797 = vmatpush1.bf16.msra.mxu0 %v739
      %798 = vmatprep.subr.bf16.mxu0 0
      %799 = vmatpush1.bf16.msra.mxu0 %v740
      %800 = vmatprep.subr.bf16.mxu0 0
      %801 = vmatpush1.bf16.msra.mxu0 %v741
      %802 = vmatprep.subr.bf16.mxu0 0
      %803 = vmatpush1.bf16.msra.mxu0 %v742
      %804 = vmatprep.subr.bf16.mxu0 0
      %805 = vmatpush1.bf16.msra.mxu0 %v743
      %806 = vmatprep.subr.bf16.mxu0 0
      %807 = vmatpush1.bf16.msra.mxu0 %v744
      %808 = vmatprep.subr.bf16.mxu0 0
      %809 = vmatpush1.bf16.msra.mxu0 %v745
      %810 = vmatprep.mubr.bf16.mxu0 %v443
      %811 = vmatmul.mubr.bf16.gmra.mrb[0].mxu0 %v438
      %v812 = vpop.f32.mrb[0].mxu0
      %v813 = vadd.f32 %v632, %v812
      %v814 = vpop.f32.mrb[0].mxu0
      %v815 = vpop.f32.mrb[0].mxu0
      %v816 = vadd.f32 %v632, %v815
      %v817 = vpop.f32.mrb[0].mxu0
      %818 = vmatprep.mubr.bf16.mxu0 %v444
      %819 = vmatmul.mubr.bf16.gmra.mrb[0].mxu0 %v439
      %v820 = vpop.f32.mrb[0].mxu0
      %v821 = vadd.f32 %v632, %v820
      %v822 = vpop.f32.mrb[0].mxu0
      %v823 = vpop.f32.mrb[0].mxu0
      %v824 = vadd.f32 %v632, %v823
      %v825 = vpop.f32.mrb[0].mxu0
      %826 = vmatprep.mubr.bf16.mxu0 %v445
      %827 = vmatmul.mubr.bf16.gmra.mrb[0].mxu0 %v440
      %v828 = vpop.f32.mrb[0].mxu0
      %v829 = vadd.f32 %v632, %v828
      %v830 = vpop.f32.mrb[0].mxu0
      %v831 = vpop.f32.mrb[0].mxu0
      %v832 = vadd.f32 %v632, %v831
      %v833 = vpop.f32.mrb[0].mxu0
      %834 = vmatprep.mubr.bf16.mxu0 %v446
      %835 = vmatmul.mubr.bf16.gmra.mrb[0].mxu0 %v441
      %v836 = vpop.f32.mrb[0].mxu0
      %v837 = vadd.f32 %v632, %v836
      %v838 = vpop.f32.mrb[0].mxu0
      %v839 = vpop.f32.mrb[0].mxu0
      %v840 = vadd.f32 %v632, %v839
      %v841 = vpop.f32.mrb[0].mxu0
      %842 = vmatprep.mubr.bf16.mxu0 %v447
      %843 = vmatmul.mubr.bf16.gmra.mrb[0].mxu0 %v442
      %v844 = vpop.f32.mrb[0].mxu0
      %v845 = vadd.f32 %v632, %v844
      %v846 = vpop.f32.mrb[0].mxu0
      %v847 = vpop.f32.mrb[0].mxu0
      %v848 = vadd.f32 %v632, %v847
      %v849 = vpop.f32.mrb[0].mxu0
      %850 = vmatprep.mubr.bf16.mxu0 %v448
      %851 = vmatmul.mubr.bf16.gmra.mrb[0].mxu0 %v443
      %v852 = vpop.f32.mrb[0].mxu0
      %v853 = vadd.f32 %v632, %v852
      %v854 = vpop.f32.mrb[0].mxu0
      %v855 = vpop.f32.mrb[0].mxu0
      %v856 = vadd.f32 %v632, %v855
      %v857 = vpop.f32.mrb[0].mxu0
      %858 = vmatprep.mubr.bf16.mxu0 %v449
      %859 = vmatmul.mubr.bf16.gmra.mrb[0].mxu0 %v444
      %v860 = vpop.f32.mrb[0].mxu0
      %v861 = vadd.f32 %v632, %v860
      %v862 = vpop.f32.mrb[0].mxu0
      %v863 = vpop.f32.mrb[0].mxu0
      %v864 = vadd.f32 %v632, %v863
      %v865 = vpop.f32.mrb[0].mxu0
      %866 = vmatprep.mubr.bf16.mxu0 %v450
      %867 = vmatmul.mubr.bf16.gmra.mrb[0].mxu0 %v445
      %v868 = vpop.f32.mrb[0].mxu0
      %v869 = vadd.f32 %v632, %v868
      %v870 = vpop.f32.mrb[0].mxu0
      %v871 = vpop.f32.mrb[0].mxu0
      %v872 = vadd.f32 %v632, %v871
      %v873 = vpop.f32.mrb[0].mxu0
      %874 = vmatprep.mubr.bf16.mxu0 %v451
      %875 = vmatmul.mubr.bf16.gmra.mrb[0].mxu0 %v446
      %v876 = vpop.f32.mrb[0].mxu0
      %v877 = vadd.f32 %v632, %v876
      %v878 = vpop.f32.mrb[0].mxu0
      %v879 = vpop.f32.mrb[0].mxu0
      %v880 = vadd.f32 %v632, %v879
      %v881 = vpop.f32.mrb[0].mxu0
      %882 = vmatprep.mubr.bf16.mxu0 %v452
      %883 = vmatmul.mubr.bf16.gmra.mrb[0].mxu0 %v447
      %v884 = vpop.f32.mrb[0].mxu0
      %v885 = vadd.f32 %v632, %v884
      %v886 = vpop.f32.mrb[0].mxu0
      %v887 = vpop.f32.mrb[0].mxu0
      %v888 = vadd.f32 %v632, %v887
      %v889 = vpop.f32.mrb[0].mxu0
      %890 = vmatprep.mubr.bf16.mxu0 %v453
      %891 = vmatmul.mubr.bf16.gmra.mrb[0].mxu0 %v448
      %v892 = vpop.f32.mrb[0].mxu0
      %v893 = vadd.f32 %v632, %v892
      %v894 = vpop.f32.mrb[0].mxu0
      %v895 = vpop.f32.mrb[0].mxu0
      %v896 = vadd.f32 %v632, %v895
      %v897 = vpop.f32.mrb[0].mxu0
      %898 = vmatprep.mubr.bf16.mxu0 %v454
      %899 = vmatmul.mubr.bf16.gmra.mrb[0].mxu0 %v449
      %v900 = vpop.f32.mrb[0].mxu0
      %v901 = vadd.f32 %v632, %v900
      %v902 = vpop.f32.mrb[0].mxu0
      %v903 = vpop.f32.mrb[0].mxu0
      %v904 = vadd.f32 %v632, %v903
      %v905 = vpop.f32.mrb[0].mxu0
      %906 = vmatprep.mubr.bf16.mxu0 %v455
      %907 = vmatmul.mubr.bf16.gmra.mrb[0].mxu0 %v450
      %v908 = vpop.f32.mrb[0].mxu0
      %v909 = vadd.f32 %v632, %v908
      %v910 = vpop.f32.mrb[0].mxu0
      %v911 = vpop.f32.mrb[0].mxu0
      %v912 = vadd.f32 %v632, %v911
      %v913 = vpop.f32.mrb[0].mxu0
      %914 = vmatprep.mubr.bf16.mxu0 %v456
      %915 = vmatmul.mubr.bf16.gmra.mrb[0].mxu0 %v451
      %v916 = vpop.f32.mrb[0].mxu0
      %v917 = vadd.f32 %v632, %v916
      %v918 = vpop.f32.mrb[0].mxu0
      %v919 = vpop.f32.mrb[0].mxu0
      %v920 = vadd.f32 %v632, %v919
      %v921 = vpop.f32.mrb[0].mxu0
      %922 = vmatprep.mubr.bf16.mxu0 %v457
      %923 = vmatmul.mubr.bf16.gmra.mrb[0].mxu0 %v452
      %v924 = vpop.f32.mrb[0].mxu0
      %v925 = vadd.f32 %v632, %v924
      %v926 = vpop.f32.mrb[0].mxu0
      %v927 = vpop.f32.mrb[0].mxu0
      %v928 = vadd.f32 %v632, %v927
      %v929 = vpop.f32.mrb[0].mxu0
      %930 = vmatprep.mubr.bf16.mxu0 %v498
      %931 = vmatmul.mubr.bf16.gmra.mrb[0].mxu0 %v453
      %v932 = vpop.f32.mrb[0].mxu0
      %v933 = vadd.f32 %v632, %v932
      %v934 = vpop.f32.mrb[0].mxu0
      %v935 = vpop.f32.mrb[0].mxu0
      %v936 = vadd.f32 %v632, %v935
      %v937 = vpop.f32.mrb[0].mxu0
      %938 = vmatprep.mubr.bf16.mxu0 %v499
      %939 = vmatmul.mubr.bf16.gmra.mrb[0].mxu0 %v454
      %v940 = vpop.f32.mrb[0].mxu0
      %v941 = vadd.f32 %v632, %v940
      %v942 = vpop.f32.mrb[0].mxu0
      %v943 = vpop.f32.mrb[0].mxu0
      %v944 = vadd.f32 %v632, %v943
      %v945 = vpop.f32.mrb[0].mxu0
      %946 = vmatprep.mubr.bf16.mxu0 %v500
      %947 = vmatmul.mubr.bf16.gmra.mrb[0].mxu0 %v455
      %v948 = vpop.f32.mrb[0].mxu0
      %v949 = vadd.f32 %v632, %v948
      %v950 = vpop.f32.mrb[0].mxu0
      %v951 = vpop.f32.mrb[0].mxu0
      %v952 = vadd.f32 %v632, %v951
      %v953 = vpop.f32.mrb[0].mxu0
      %954 = vmatprep.mubr.bf16.mxu0 %v501
      %955 = vmatmul.mubr.bf16.gmra.mrb[0].mxu0 %v456
      %v956 = vpop.f32.mrb[0].mxu0
      %v957 = vadd.f32 %v632, %v956
      %v958 = vpop.f32.mrb[0].mxu0
      %v959 = vpop.f32.mrb[0].mxu0
      %v960 = vadd.f32 %v632, %v959
      %v961 = vpop.f32.mrb[0].mxu0
      %962 = vmatprep.mubr.bf16.mxu0 %v502
      %963 = vmatmul.mubr.bf16.gmra.mrb[0].mxu0 %v457
      %v964 = vpop.f32.mrb[0].mxu0
      %v965 = vadd.f32 %v632, %v964
      %v966 = vpop.f32.mrb[0].mxu0
      %v967 = vpop.f32.mrb[0].mxu0
      %v968 = vadd.f32 %v632, %v967
      %v969 = vpop.f32.mrb[0].mxu0
      %970 = vdwg.mxu0
      %971 = vmatprep.subr.bf16.mxu0 0
      %972 = vmatpush1.bf16.msra.mxu0 %v746
      %973 = vmatprep.subr.bf16.mxu0 0
      %974 = vmatpush1.bf16.msra.mxu0 %v747
      %975 = vmatprep.subr.bf16.mxu0 0
      %976 = vmatpush1.bf16.msra.mxu0 %v748
      %977 = vmatprep.subr.bf16.mxu0 0
      %978 = vmatpush1.bf16.msra.mxu0 %v749
      %979 = vmatprep.subr.bf16.mxu0 0
      %980 = vmatpush1.bf16.msra.mxu0 %v750
      %981 = vmatprep.subr.bf16.mxu0 0
      %982 = vmatpush1.bf16.msra.mxu0 %v751
      %983 = vmatprep.subr.bf16.mxu0 0
      %984 = vmatpush1.bf16.msra.mxu0 %v752
      %985 = vmatprep.subr.bf16.mxu0 0
      %986 = vmatpush1.bf16.msra.mxu0 %v753
      %987 = vmatprep.subr.bf16.mxu0 0
      %988 = vmatpush1.bf16.msra.mxu0 0
      %989 = vmatprep.subr.bf16.mxu0 0
      %990 = vmatpush1.bf16.msra.mxu0 0
      %991 = vmatprep.subr.bf16.mxu0 0
      %992 = vmatpush1.bf16.msra.mxu0 0
      %993 = vmatprep.subr.bf16.mxu0 0
      %994 = vmatpush1.bf16.msra.mxu0 0
      %995 = vmatprep.subr.bf16.mxu0 0
      %996 = vmatpush1.bf16.msra.mxu0 0
      %997 = vmatprep.subr.bf16.mxu0 0
      %998 = vmatpush1.bf16.msra.mxu0 0
      %999 = vmatprep.subr.bf16.mxu0 0
      %1000 = vmatpush1.bf16.msra.mxu0 0
      %1001 = vmatprep.subr.bf16.mxu0 0
      %1002 = vmatpush1.bf16.msra.mxu0 0
      %1003 = vmatprep.mubr.bf16.mxu0 0
      %1004 = vmatmul.mubr.bf16.gmra.mrb[0].mxu0 %v588
      %v1005 = vpop.f32.mrb[0].mxu0
      %v1006 = vadd.f32 %v813, %v1005
      %v1007 = vpop.f32.mrb[0].mxu0
      %v1008 = vpop.f32.mrb[0].mxu0
      %v1009 = vadd.f32 %v816, %v1008
      %v1010 = vpop.f32.mrb[0].mxu0
      %1011 = vmatprep.mubr.bf16.mxu0 0
      %1012 = vmatmul.mubr.bf16.gmra.mrb[0].mxu0 %v589
      %v1013 = vpop.f32.mrb[0].mxu0
      %v1014 = vadd.f32 %v821, %v1013
      %v1015 = vpop.f32.mrb[0].mxu0
      %v1016 = vpop.f32.mrb[0].mxu0
      %v1017 = vadd.f32 %v824, %v1016
      %v1018 = vpop.f32.mrb[0].mxu0
      %1019 = vmatprep.mubr.bf16.mxu0 0
      %1020 = vmatmul.mubr.bf16.gmra.mrb[0].mxu0 %v590
      %v1021 = vpop.f32.mrb[0].mxu0
      %v1022 = vadd.f32 %v829, %v1021
      %v1023 = vpop.f32.mrb[0].mxu0
      %v1024 = vpop.f32.mrb[0].mxu0
      %v1025 = vadd.f32 %v832, %v1024
      %v1026 = vpop.f32.mrb[0].mxu0
      %1027 = vmatprep.mubr.bf16.mxu0 0
      %1028 = vmatmul.mubr.bf16.gmra.mrb[0].mxu0 %v591
      %v1029 = vpop.f32.mrb[0].mxu0
      %v1030 = vadd.f32 %v837, %v1029
      %v1031 = vpop.f32.mrb[0].mxu0
      %v1032 = vpop.f32.mrb[0].mxu0
      %v1033 = vadd.f32 %v840, %v1032
      %v1034 = vpop.f32.mrb[0].mxu0
      %1035 = vmatprep.mubr.bf16.mxu0 0
      %1036 = vmatmul.mubr.bf16.gmra.mrb[0].mxu0 %v592
      %v1037 = vpop.f32.mrb[0].mxu0
      %v1038 = vadd.f32 %v845, %v1037
      %v1039 = vpop.f32.mrb[0].mxu0
      %v1040 = vpop.f32.mrb[0].mxu0
      %v1041 = vadd.f32 %v848, %v1040
      %v1042 = vpop.f32.mrb[0].mxu0
      %1043 = vmatprep.mubr.bf16.mxu0 0
      %1044 = vmatmul.mubr.bf16.gmra.mrb[0].mxu0 %v593
      %v1045 = vpop.f32.mrb[0].mxu0
      %v1046 = vadd.f32 %v853, %v1045
      %v1047 = vpop.f32.mrb[0].mxu0
      %v1048 = vpop.f32.mrb[0].mxu0
      %v1049 = vadd.f32 %v856, %v1048
      %v1050 = vpop.f32.mrb[0].mxu0
      %1051 = vmatprep.mubr.bf16.mxu0 0
      %1052 = vmatmul.mubr.bf16.gmra.mrb[0].mxu0 %v594
      %v1053 = vpop.f32.mrb[0].mxu0
      %v1054 = vadd.f32 %v861, %v1053
      %v1055 = vpop.f32.mrb[0].mxu0
      %v1056 = vpop.f32.mrb[0].mxu0
      %v1057 = vadd.f32 %v864, %v1056
      %v1058 = vpop.f32.mrb[0].mxu0
      %1059 = vmatprep.mubr.bf16.mxu0 0
      %1060 = vmatmul.mubr.bf16.gmra.mrb[0].mxu0 %v595
      %v1061 = vpop.f32.mrb[0].mxu0
      %v1062 = vadd.f32 %v869, %v1061
      %v1063 = vpop.f32.mrb[0].mxu0
      %v1064 = vpop.f32.mrb[0].mxu0
      %v1065 = vadd.f32 %v872, %v1064
      %v1066 = vpop.f32.mrb[0].mxu0
      %1067 = vmatprep.mubr.bf16.mxu0 0
      %1068 = vmatmul.mubr.bf16.gmra.mrb[0].mxu0 %v596
      %v1069 = vpop.f32.mrb[0].mxu0
      %v1070 = vadd.f32 %v877, %v1069
      %v1071 = vpop.f32.mrb[0].mxu0
      %v1072 = vpop.f32.mrb[0].mxu0
      %v1073 = vadd.f32 %v880, %v1072
      %v1074 = vpop.f32.mrb[0].mxu0
      %1075 = vmatprep.mubr.bf16.mxu0 0
      %1076 = vmatmul.mubr.bf16.gmra.mrb[0].mxu0 %v597
      %v1077 = vpop.f32.mrb[0].mxu0
      %v1078 = vadd.f32 %v885, %v1077
      %v1079 = vpop.f32.mrb[0].mxu0
      %v1080 = vpop.f32.mrb[0].mxu0
      %v1081 = vadd.f32 %v888, %v1080
      %v1082 = vpop.f32.mrb[0].mxu0
      %1083 = vmatprep.mubr.bf16.mxu0 0
      %1084 = vmatmul.mubr.bf16.gmra.mrb[0].mxu0 %v598
      %v1085 = vpop.f32.mrb[0].mxu0
      %v1086 = vadd.f32 %v893, %v1085
      %v1087 = vpop.f32.mrb[0].mxu0
      %v1088 = vpop.f32.mrb[0].mxu0
      %v1089 = vadd.f32 %v896, %v1088
      %v1090 = vpop.f32.mrb[0].mxu0
      %1091 = vmatprep.mubr.bf16.mxu0 0
      %1092 = vmatmul.mubr.bf16.gmra.mrb[0].mxu0 %v599
      %v1093 = vpop.f32.mrb[0].mxu0
      %v1094 = vadd.f32 %v901, %v1093
      %v1095 = vpop.f32.mrb[0].mxu0
      %v1096 = vpop.f32.mrb[0].mxu0
      %v1097 = vadd.f32 %v904, %v1096
      %v1098 = vpop.f32.mrb[0].mxu0
      %1099 = vmatprep.mubr.bf16.mxu0 0
      %1100 = vmatmul.mubr.bf16.gmra.mrb[0].mxu0 %v600
      %v1101 = vpop.f32.mrb[0].mxu0
      %v1102 = vadd.f32 %v909, %v1101
      %v1103 = vpop.f32.mrb[0].mxu0
      %v1104 = vpop.f32.mrb[0].mxu0
      %v1105 = vadd.f32 %v912, %v1104
      %v1106 = vpop.f32.mrb[0].mxu0
      %1107 = vmatprep.mubr.bf16.mxu0 0
      %1108 = vmatmul.mubr.bf16.gmra.mrb[0].mxu0 %v601
      %v1109 = vpop.f32.mrb[0].mxu0
      %v1110 = vadd.f32 %v917, %v1109
      %v1111 = vpop.f32.mrb[0].mxu0
      %v1112 = vpop.f32.mrb[0].mxu0
      %v1113 = vadd.f32 %v920, %v1112
      %v1114 = vpop.f32.mrb[0].mxu0
      %1115 = vmatprep.mubr.bf16.mxu0 0
      %1116 = vmatmul.mubr.bf16.gmra.mrb[0].mxu0 %v602
      %v1117 = vpop.f32.mrb[0].mxu0
      %v1118 = vadd.f32 %v925, %v1117
      %v1119 = vpop.f32.mrb[0].mxu0
      %v1120 = vpop.f32.mrb[0].mxu0
      %v1121 = vadd.f32 %v928, %v1120
      %v1122 = vpop.f32.mrb[0].mxu0
      %1123 = vmatprep.mubr.bf16.mxu0 0
      %1124 = vmatmul.mubr.bf16.gmra.mrb[0].mxu0 %v603
      %v1125 = vpop.f32.mrb[0].mxu0
      %v1126 = vadd.f32 %v933, %v1125
      %v1127 = vpop.f32.mrb[0].mxu0
      %v1128 = vpop.f32.mrb[0].mxu0
      %v1129 = vadd.f32 %v936, %v1128
      %v1130 = vpop.f32.mrb[0].mxu0
      %1131 = vmatprep.mubr.bf16.mxu0 0
      %1132 = vmatmul.mubr.bf16.gmra.mrb[0].mxu0 %v604
      %v1133 = vpop.f32.mrb[0].mxu0
      %v1134 = vadd.f32 %v941, %v1133
      %v1135 = vpop.f32.mrb[0].mxu0
      %v1136 = vpop.f32.mrb[0].mxu0
      %v1137 = vadd.f32 %v944, %v1136
      %v1138 = vpop.f32.mrb[0].mxu0
      %1139 = vmatprep.mubr.bf16.mxu0 0
      %1140 = vmatmul.mubr.bf16.gmra.mrb[0].mxu0 %v605
      %v1141 = vpop.f32.mrb[0].mxu0
      %v1142 = vadd.f32 %v949, %v1141
      %v1143 = vpop.f32.mrb[0].mxu0
      %v1144 = vpop.f32.mrb[0].mxu0
      %v1145 = vadd.f32 %v952, %v1144
      %v1146 = vpop.f32.mrb[0].mxu0
      %1147 = vmatprep.mubr.bf16.mxu0 0
      %1148 = vmatmul.mubr.bf16.gmra.mrb[0].mxu0 %v606
      %v1149 = vpop.f32.mrb[0].mxu0
      %v1150 = vadd.f32 %v957, %v1149
      %v1151 = vpop.f32.mrb[0].mxu0
      %v1152 = vpop.f32.mrb[0].mxu0
      %v1153 = vadd.f32 %v960, %v1152
      %v1154 = vpop.f32.mrb[0].mxu0
      %1155 = vmatprep.mubr.bf16.mxu0 0
      %1156 = vmatmul.mubr.bf16.gmra.mrb[0].mxu0 %v607
      %v1157 = vpop.f32.mrb[0].mxu0
      %v1158 = vadd.f32 %v965, %v1157
      %v1159 = vpop.f32.mrb[0].mxu0
      %v1160 = vpop.f32.mrb[0].mxu0
      %v1161 = vadd.f32 %v968, %v1160
      %v1162 = vpop.f32.mrb[0].mxu0
      %1163 = vdwg.mxu0
      %v1164 = vld [vmem:[%s212] sm:$0xff]
      %v1165 = vld [vmem:[%s212 + $0x8] sm:$0xff]
      %v1166 = vld [vmem:[%s212 + $0x10] sm:$0xff]
      %v1167 = vld [vmem:[%s212 + $0x18] sm:$0xff]
      %v1168 = vld [vmem:[%s212 + $0x20] sm:$0xff]
      %v1169 = vld [vmem:[%s212 + $0x28] sm:$0xff]
      %v1170 = vld [vmem:[%s212 + $0x30] sm:$0xff]
      %v1171 = vld [vmem:[%s212 + $0x38] sm:$0xff]
      %v1172 = vld [vmem:[%s212 + $0x40] sm:$0xff]
      %v1173 = vld [vmem:[%s212 + $0x48] sm:$0xff]
      %v1174 = vld [vmem:[%s212 + $0x50] sm:$0xff]
      %v1175 = vld [vmem:[%s212 + $0x58] sm:$0xff]
      %v1176 = vld [vmem:[%s212 + $0x60] sm:$0xff]
      %v1177 = vld [vmem:[%s212 + $0x68] sm:$0xff]
      %v1178 = vld [vmem:[%s212 + $0x70] sm:$0xff]
      %v1179 = vld [vmem:[%s212 + $0x78] sm:$0xff]
      %v1180 = vld [vmem:[%s212 + $0x80] sm:$0xff]
      %v1181 = vld [vmem:[%s212 + $0x88] sm:$0xff]
      %v1182 = vld [vmem:[%s212 + $0x90] sm:$0xff]
      %v1183 = vld [vmem:[%s212 + $0x98] sm:$0xff]
      %v1184 = vld [vmem:[%s212 + $0xa0] sm:$0xff]
      %v1185 = vld [vmem:[%s212 + $0xa8] sm:$0xff]
      %v1186 = vld [vmem:[%s212 + $0xb0] sm:$0xff]
      %v1187 = vld [vmem:[%s212 + $0xb8] sm:$0xff]
      %v1188 = vld [vmem:[%s212 + $0xc0] sm:$0xff]
      %v1189 = vld [vmem:[%s212 + $0xc8] sm:$0xff]
      %v1190 = vld [vmem:[%s212 + $0xd0] sm:$0xff]
      %v1191 = vld [vmem:[%s212 + $0xd8] sm:$0xff]
      %v1192 = vld [vmem:[%s212 + $0xe0] sm:$0xff]
      %v1193 = vld [vmem:[%s212 + $0xe8] sm:$0xff]
      %v1194 = vld [vmem:[%s212 + $0xf0] sm:$0xff]
      %v1195 = vld [vmem:[%s212 + $0xf8] sm:$0xff]
      %v1196 = vld [vmem:[%s212 + $0x100] sm:$0xff]
      %v1197 = vld [vmem:[%s212 + $0x108] sm:$0xff]
      %v1198 = vld [vmem:[%s212 + $0x110] sm:$0xff]
      %v1199 = vld [vmem:[%s212 + $0x118] sm:$0xff]
      %v1200 = vld [vmem:[%s212 + $0x120] sm:$0xff]
      %v1201 = vld [vmem:[%s212 + $0x128] sm:$0xff]
      %v1202 = vld [vmem:[%s212 + $0x130] sm:$0xff]
      %v1203 = vld [vmem:[%s212 + $0x138] sm:$0xff]
      %v1204 = vadd.f32 %v1006, %v1164
      %v1205 = vadd.f32 %v1009, %v1165
      %v1206 = vadd.f32 %v1014, %v1166
      %v1207 = vadd.f32 %v1017, %v1167
      %v1208 = vadd.f32 %v1022, %v1168
      %v1209 = vadd.f32 %v1025, %v1169
      %v1210 = vadd.f32 %v1030, %v1170
      %v1211 = vadd.f32 %v1033, %v1171
      %v1212 = vadd.f32 %v1038, %v1172
      %v1213 = vadd.f32 %v1041, %v1173
      %v1214 = vadd.f32 %v1046, %v1174
      %v1215 = vadd.f32 %v1049, %v1175
      %v1216 = vadd.f32 %v1054, %v1176
      %v1217 = vadd.f32 %v1057, %v1177
      %v1218 = vadd.f32 %v1062, %v1178
      %v1219 = vadd.f32 %v1065, %v1179
      %v1220 = vadd.f32 %v1070, %v1180
      %v1221 = vadd.f32 %v1073, %v1181
      %v1222 = vadd.f32 %v1078, %v1182
      %v1223 = vadd.f32 %v1081, %v1183
      %v1224 = vadd.f32 %v1086, %v1184
      %v1225 = vadd.f32 %v1089, %v1185
      %v1226 = vadd.f32 %v1094, %v1186
      %v1227 = vadd.f32 %v1097, %v1187
      %v1228 = vadd.f32 %v1102, %v1188
      %v1229 = vadd.f32 %v1105, %v1189
      %v1230 = vadd.f32 %v1110, %v1190
      %v1231 = vadd.f32 %v1113, %v1191
      %v1232 = vadd.f32 %v1118, %v1192
      %v1233 = vadd.f32 %v1121, %v1193
      %v1234 = vadd.f32 %v1126, %v1194
      %v1235 = vadd.f32 %v1129, %v1195
      %v1236 = vadd.f32 %v1134, %v1196
      %v1237 = vadd.f32 %v1137, %v1197
      %v1238 = vadd.f32 %v1142, %v1198
      %v1239 = vadd.f32 %v1145, %v1199
      %v1240 = vadd.f32 %v1150, %v1200
      %v1241 = vadd.f32 %v1153, %v1201
      %v1242 = vadd.f32 %v1158, %v1202
      %v1243 = vadd.f32 %v1161, %v1203
      %v1244 = vmax.f32 %v1204, 0.0
      %v1245 = vmax.f32 %v1205, 0.0
      %v1246 = vmax.f32 %v1206, 0.0
      %v1247 = vmax.f32 %v1207, 0.0
      %v1248 = vmax.f32 %v1208, 0.0
      %v1249 = vmax.f32 %v1209, 0.0
      %v1250 = vmax.f32 %v1210, 0.0
      %v1251 = vmax.f32 %v1211, 0.0
      %v1252 = vmax.f32 %v1212, 0.0
      %v1253 = vmax.f32 %v1213, 0.0
      %v1254 = vmax.f32 %v1214, 0.0
      %v1255 = vmax.f32 %v1215, 0.0
      %v1256 = vmax.f32 %v1216, 0.0
      %v1257 = vmax.f32 %v1217, 0.0
      %v1258 = vmax.f32 %v1218, 0.0
      %v1259 = vmax.f32 %v1219, 0.0
      %v1260 = vmax.f32 %v1220, 0.0
      %v1261 = vmax.f32 %v1221, 0.0
      %v1262 = vmax.f32 %v1222, 0.0
      %v1263 = vmax.f32 %v1223, 0.0
      %v1264 = vmax.f32 %v1224, 0.0
      %v1265 = vmax.f32 %v1225, 0.0
      %v1266 = vmax.f32 %v1226, 0.0
      %v1267 = vmax.f32 %v1227, 0.0
      %v1268 = vmax.f32 %v1228, 0.0
      %v1269 = vmax.f32 %v1229, 0.0
      %v1270 = vmax.f32 %v1230, 0.0
      %v1271 = vmax.f32 %v1231, 0.0
      %v1272 = vmax.f32 %v1232, 0.0
      %v1273 = vmax.f32 %v1233, 0.0
      %v1274 = vmax.f32 %v1234, 0.0
      %v1275 = vmax.f32 %v1235, 0.0
      %v1276 = vmax.f32 %v1236, 0.0
      %v1277 = vmax.f32 %v1237, 0.0
      %v1278 = vmax.f32 %v1238, 0.0
      %v1279 = vmax.f32 %v1239, 0.0
      %v1280 = vmax.f32 %v1240, 0.0
      %v1281 = vmax.f32 %v1241, 0.0
      %v1282 = vmax.f32 %v1242, 0.0
      %v1283 = vmax.f32 %v1243, 0.0
      %1284 = vst [vmem:[%s217] sm:$0xff] %v1244
      %1285 = vst [vmem:[%s217 + $0x8] sm:$0xff] %v1245
      %1286 = vst [vmem:[%s217 + $0x10] sm:$0xff] %v1246
      %1287 = vst [vmem:[%s217 + $0x18] sm:$0xff] %v1247
      %1288 = vst [vmem:[%s217 + $0x20] sm:$0xff] %v1248
      %1289 = vst [vmem:[%s217 + $0x28] sm:$0xff] %v1249
      %1290 = vst [vmem:[%s217 + $0x30] sm:$0xff] %v1250
      %1291 = vst [vmem:[%s217 + $0x38] sm:$0xff] %v1251
      %1292 = vst [vmem:[%s217 + $0x40] sm:$0xff] %v1252
      %1293 = vst [vmem:[%s217 + $0x48] sm:$0xff] %v1253
      %1294 = vst [vmem:[%s217 + $0x50] sm:$0xff] %v1254
      %1295 = vst [vmem:[%s217 + $0x58] sm:$0xff] %v1255
      %1296 = vst [vmem:[%s217 + $0x60] sm:$0xff] %v1256
      %1297 = vst [vmem:[%s217 + $0x68] sm:$0xff] %v1257
      %1298 = vst [vmem:[%s217 + $0x70] sm:$0xff] %v1258
      %1299 = vst [vmem:[%s217 + $0x78] sm:$0xff] %v1259
      %1300 = vst [vmem:[%s217 + $0x80] sm:$0xff] %v1260
      %1301 = vst [vmem:[%s217 + $0x88] sm:$0xff] %v1261
      %1302 = vst [vmem:[%s217 + $0x90] sm:$0xff] %v1262
      %1303 = vst [vmem:[%s217 + $0x98] sm:$0xff] %v1263
      %1304 = vst [vmem:[%s217 + $0xa0] sm:$0xff] %v1264
      %1305 = vst [vmem:[%s217 + $0xa8] sm:$0xff] %v1265
      %1306 = vst [vmem:[%s217 + $0xb0] sm:$0xff] %v1266
      %1307 = vst [vmem:[%s217 + $0xb8] sm:$0xff] %v1267
      %1308 = vst [vmem:[%s217 + $0xc0] sm:$0xff] %v1268
      %1309 = vst [vmem:[%s217 + $0xc8] sm:$0xff] %v1269
      %1310 = vst [vmem:[%s217 + $0xd0] sm:$0xff] %v1270
      %1311 = vst [vmem:[%s217 + $0xd8] sm:$0xff] %v1271
      %1312 = vst [vmem:[%s217 + $0xe0] sm:$0xff] %v1272
      %1313 = vst [vmem:[%s217 + $0xe8] sm:$0xff] %v1273
      %1314 = vst [vmem:[%s217 + $0xf0] sm:$0xff] %v1274
      %1315 = vst [vmem:[%s217 + $0xf8] sm:$0xff] %v1275
      %1316 = vst [vmem:[%s217 + $0x100] sm:$0xff] %v1276
      %1317 = vst [vmem:[%s217 + $0x108] sm:$0xff] %v1277
      %1318 = vst [vmem:[%s217 + $0x110] sm:$0xff] %v1278
      %1319 = vst [vmem:[%s217 + $0x118] sm:$0xff] %v1279
      %1320 = vst [vmem:[%s217 + $0x120] sm:$0xff] %v1280
      %1321 = vst [vmem:[%s217 + $0x128] sm:$0xff] %v1281
      %1322 = vst [vmem:[%s217 + $0x130] sm:$0xff] %v1282
      %1323 = vst [vmem:[%s217 + $0x138] sm:$0xff] %v1283
      %p1324 = scmp.lt.s32.totalorder %s15, 1
      %s1325 = scalar_select %p1324, %s15, 1
      %s1326 = smul.addr %s1325, 40
      %s1327 = smul.addr %s1326, 8
      %s1328 = scalar_lea.vmem %s4, %s1327
      // Predicated region
      $region37: #{basic_block_2plus1d.7} parent=35 // pred_check
        %p1329 = pneg %p127
      $region38: #{basic_block_2plus1d.7} parent=35 // pred_check_branch
        %1331 = sbr.rel (%p1329) target = $region40
      $region39: #{basic_block_2plus1d.7} parent=35 // pred_region
        _
      $region40: #{basic_block_2plus1d.7} parent=35 // pred_fallthru
        _
    $region36: #{basic_block_2plus1d.7} parent=5 // pred_fallthru
      _
    %p1332 = scmp.le.s32.totalorder 2, %s10
    // Predicated region
    $region41: #{basic_block_2plus1d.7} parent=5 // pred_check
      %p1333 = pneg %p1332
    $region42: #{basic_block_2plus1d.7} parent=5 // pred_check_branch
      %1335 = sbr.rel (%p1333) target = $region44
    $region43: #{basic_block_2plus1d.7} parent=5 // pred_region
      %s1336 = ssub.s32 %s10, 2
      // Predicated region
      $region45: #{basic_block_2plus1d.7} parent=43 // pred_check
        %p1337 = pneg %p133
      $region46: #{basic_block_2plus1d.7} parent=43 // pred_check_branch
        %1339 = sbr.rel (%p1337) target = $region48
      $region47: #{basic_block_2plus1d.7} parent=43 // pred_region
        %p1340 = scmp.lt.s32.totalorder %s16, 1
        %s1341 = scalar_select %p1340, %s16, 1
        %s1342 = smul.addr %s1341, 40
        %s1343 = smul.addr %s1342, 8
        %s1344 = scalar_lea.vmem %s4, %s1343
      $region48: #{basic_block_2plus1d.7} parent=43 // pred_fallthru
        _
    $region44: #{basic_block_2plus1d.7} parent=5 // pred_fallthru
      _
  $region6: #{basic_block_2plus1d.7} parent=0 // loop_footer
    %s14 = sadd.s32 1, %s10
  $region7: #{basic_block_2plus1d.7} parent=0 // loop_footer_branch
    %9 = sbr.rel target = $region3
  $region8: #{basic_block_2plus1d.7} parent=0 // loop_exit
    _

</llo_original>
